<compile_context>
chip_gen: v7x
topology: tpu7x:2x2x1
jax: 0.10.0
libtpu: 0.0.40
codegen_flags: <defaults>
</compile_context>

<pallas_src>
import math

import jax
import jax.numpy as jnp
import numpy as np
from jax.experimental import pallas as pl
from jax.experimental.pallas import tpu as pltpu


# ---------------------------------------------------------------------------
# Generation-aware defaults (tile preferences + explicit scoped-VMEM limit)
# ---------------------------------------------------------------------------
def _tpu_defaults():
    try:
        vmem = int(pltpu.get_tpu_info().vmem_capacity_bytes)
        limit = min((vmem * 3) // 4, 100 * 1024 * 1024)
    except Exception:                      # unknown target -> safe defaults
        vmem, limit = None, None
    if vmem is not None and vmem <= 80 * 1024 * 1024:
        # v7x-class (64 MiB / TensorCore): smaller tiles, HBM re-reads are cheap.
        prefs = dict(tm=256, tn=256, tk=512, tq=128, tkv=256)
    else:
        # v5e / v6e-class (128 MiB physical VMEM). v5e's *default scoped* limit
        # is only 16 MiB, so the explicit vmem_limit_bytes below matters there.
        prefs = dict(tm=256, tn=512, tk=512, tq=256, tkv=512)
    return prefs, limit


_PREFS, _VMEM_LIMIT = _tpu_defaults()


def _mosaic(dimension_semantics):
    return pltpu.CompilerParams(dimension_semantics=dimension_semantics,
                                vmem_limit_bytes=_VMEM_LIMIT)


def _pick_tile(dim, pref):
    """Largest 128-aligned tile <= pref that evenly divides dim, else full dim."""
    if dim <= pref:
        return dim
    t = pref
    while t >= 128:
        if dim % t == 0:
            return t
        t //= 2
    return dim


# ---------------------------------------------------------------------------
# Tiled linear kernel:  y = act(LN(x) @ W_t + b) [+ residual]
#   - LayerNorm optionally fused into the prologue (requires tk == K)
#   - bias / ReLU / residual fused into the final-K epilogue
# ---------------------------------------------------------------------------
def _make_linear_kernel(activation, has_residual, has_ln, eps):
    def kernel(*refs):
        it = iter(refs)
        x_ref = next(it)
        w_ref = next(it)
        b_ref = next(it)
        g_ref = next(it) if has_ln else None
        bb_ref = next(it) if has_ln else None
        r_ref = next(it) if has_residual else None
        o_ref = next(it)
        acc_ref = next(it)

        @pl.when(pl.program_id(2) == 0)
        def _():
            acc_ref[...] = jnp.zeros_like(acc_ref)

        x = x_ref[...]
        if has_ln:
            # PyTorch LayerNorm semantics: unbiased std, eps added to the std.
            xf = x.astype(jnp.float32)
            n = xf.shape[-1]
            mean = jnp.mean(xf, axis=-1, keepdims=True)
            xc = xf - mean
            var = jnp.sum(xc * xc, axis=-1, keepdims=True) * (1.0 / (n - 1))
            xn = (g_ref[...].astype(jnp.float32) * (xc / (jnp.sqrt(var) + eps))
                  + bb_ref[...].astype(jnp.float32))
            x = xn.astype(x_ref.dtype)     # keep the MXU operand in native dtype

        acc_ref[...] += jnp.dot(x, w_ref[...],
                                preferred_element_type=jnp.float32)

        @pl.when(pl.program_id(2) == pl.num_programs(2) - 1)
        def _():
            y = acc_ref[...] + b_ref[...].astype(jnp.float32)
            if activation == "relu":
                y = jnp.maximum(y, 0.0)
            if has_residual:
                y = y + r_ref[...].astype(jnp.float32)
            o_ref[...] = y.astype(o_ref.dtype)

    return kernel


def pallas_linear(x2d, w_t, b, *, residual=None, activation=None, ln=None,
                  eps=1e-6, tm=None, tn=None, tk=None):
    """x2d: (M, K), w_t: (K, N) pre-transposed, b: (N,).
    ln: optional (gamma, beta) -> LayerNorm fused into the prologue (tk := K)."""
    M, K = x2d.shape
    N = w_t.shape[1]
    tm = _pick_tile(M, tm or _PREFS["tm"])
    tn = _pick_tile(N, tn or _PREFS["tn"])
    tk = K if ln is not None else _pick_tile(K, tk or _PREFS["tk"])
    grid = (M // tm, N // tn, K // tk)

    in_specs = [
        pl.BlockSpec((tm, tk), lambda i, j, k: (i, k)),
        pl.BlockSpec((tk, tn), lambda i, j, k: (k, j)),
        pl.BlockSpec((1, tn), lambda i, j, k: (0, j)),
    ]
    args = [x2d, w_t, b.reshape(1, N)]
    if ln is not None:
        gamma, beta = ln
        in_specs.append(pl.BlockSpec((1, tk), lambda i, j, k: (0, 0)))
        in_specs.append(pl.BlockSpec((1, tk), lambda i, j, k: (0, 0)))
        args += [gamma.reshape(1, K), beta.reshape(1, K)]
    if residual is not None:
        in_specs.append(pl.BlockSpec((tm, tn), lambda i, j, k: (i, j)))
        args.append(residual)

    kernel = _make_linear_kernel(activation, residual is not None,
                                 ln is not None, eps)
    return pl.pallas_call(
        kernel,
        out_shape=jax.ShapeDtypeStruct((M, N), x2d.dtype),
        grid_spec=pltpu.PrefetchScalarGridSpec(
            num_scalar_prefetch=0,
            grid=grid,
            in_specs=in_specs,
            out_specs=pl.BlockSpec((tm, tn), lambda i, j, k: (i, j)),
            scratch_shapes=[pltpu.VMEM((tm, tn), jnp.float32)],
        ),
        compiler_params=_mosaic(("parallel", "parallel", "arbitrary")),
    )(*args)


# ---------------------------------------------------------------------------
# Flash-style multi-head attention: grid (B, Sq-tiles, Sk-tiles), online
# softmax over the streamed Sk axis, all heads of a (batch, q-tile) block per
# step, per-head results stored directly into the lane-dense (tq, d_model)
# output block.
# ---------------------------------------------------------------------------
def _make_attention_kernel(num_heads, d_k, scale):
    def kernel(q_ref, k_ref, v_ref, mask_ref, o_ref, m_sc, l_sc, acc_sc):
        ki = pl.program_id(2)

        @pl.when(ki == 0)
        def _():
            m_sc[...] = jnp.full_like(m_sc, -jnp.inf)
            l_sc[...] = jnp.zeros_like(l_sc)
            acc_sc[...] = jnp.zeros_like(acc_sc)

        # int mask -> bool once per (q-tile, kv-tile); no f32 bias in HBM.
        masked = mask_ref[...] == 0                          # (1|tq, tkv)

        for hd in range(num_heads):                          # static unroll
            sl = slice(hd * d_k, (hd + 1) * d_k)
            qh = q_ref[:, sl] * scale                        # native dtype
            kh = k_ref[:, sl]
            vh = v_ref[:, sl]
            # contract last dims directly (no K transpose), f32 accumulation
            s = jax.lax.dot_general(qh, kh, (((1,), (1,)), ((), ())),
                                    preferred_element_type=jnp.float32)
            s = jnp.where(masked, -1e9, s)                   # (tq, tkv)

            m_prev = m_sc[hd]                                # (tq, 1)
            m_new = jnp.maximum(m_prev, jnp.max(s, axis=-1, keepdims=True))
            alpha = jnp.exp(m_prev - m_new)
            e = jnp.exp(s - m_new)
            l_sc[hd] = alpha * l_sc[hd] + jnp.sum(e, axis=-1, keepdims=True)
            acc_sc[:, sl] = alpha * acc_sc[:, sl] + jnp.dot(
                e.astype(v_ref.dtype), vh, preferred_element_type=jnp.float32)
            m_sc[hd] = m_new

        @pl.when(ki == pl.num_programs(2) - 1)
        def _():
            for hd in range(num_heads):
                sl = slice(hd * d_k, (hd + 1) * d_k)
                inv_l = pl.reciprocal(l_sc[hd], approx=True)      # (tq, 1)
                o_ref[:, sl] = (acc_sc[:, sl] * inv_l).astype(o_ref.dtype)

    return kernel


def pallas_attention(q, k, v, mask, num_heads, *, tq=None, tkv=None):
    """q: (B,Sq,D), k/v: (B,Sk,D), mask: (B, 1|Sq, Sk) integer (0 = masked)."""
    B, Sq, d_model = q.shape
    Sk = k.shape[1]
    Mq = mask.shape[1]
    d_k = d_model // num_heads
    tq = _pick_tile(Sq, tq or _PREFS["tq"])
    tkv = _pick_tile(Sk, tkv or _PREFS["tkv"])

    q_spec = pl.BlockSpec((None, tq, d_model), lambda b, qi, ki: (b, qi, 0))
    kv_spec = pl.BlockSpec((None, tkv, d_model), lambda b, qi, ki: (b, ki, 0))
    if Mq == 1:
        mask_spec = pl.BlockSpec((None, 1, tkv), lambda b, qi, ki: (b, 0, ki))
    else:
        mask_spec = pl.BlockSpec((None, tq, tkv), lambda b, qi, ki: (b, qi, ki))
    out_spec = pl.BlockSpec((None, tq, d_model), lambda b, qi, ki: (b, qi, 0))

    kernel = _make_attention_kernel(num_heads, d_k, 1.0 / math.sqrt(d_k))
    return pl.pallas_call(
        kernel,
        out_shape=jax.ShapeDtypeStruct((B, Sq, d_model), q.dtype),
        grid_spec=pltpu.PrefetchScalarGridSpec(
            num_scalar_prefetch=0,
            grid=(B, Sq // tq, Sk // tkv),
            in_specs=[q_spec, kv_spec, kv_spec, mask_spec],
            out_specs=out_spec,
            scratch_shapes=[
                pltpu.VMEM((num_heads, tq, 1), jnp.float32),   # running max
                pltpu.VMEM((num_heads, tq, 1), jnp.float32),   # running denom
                pltpu.VMEM((tq, d_model), jnp.float32),        # output accum
            ],
        ),
        compiler_params=_mosaic(("parallel", "parallel", "arbitrary")),
    )(q, k, v, mask)


# ---------------------------------------------------------------------------
# One-time parameter preparation (hoisted out of the forward path)
# ---------------------------------------------------------------------------
def prepare_params(params):
    wq, bq, wk, bk, wv, bv, wo, bo = params["self_attn"]
    self_attn = dict(w_qkv=jnp.concatenate([wq, wk, wv], axis=1),
                     b_qkv=jnp.concatenate([bq, bk, bv], axis=0),
                     w_o=wo, b_o=bo)
    wq, bq, wk, bk, wv, bv, wo, bo = params["src_attn"]
    src_attn = dict(w_q=wq, b_q=bq,
                    w_kv=jnp.concatenate([wk, wv], axis=1),
                    b_kv=jnp.concatenate([bk, bv], axis=0),
                    w_o=wo, b_o=bo)
    return dict(self_attn=self_attn, src_attn=src_attn,
                ff=params["ff"], ln=params["ln"])


# ---------------------------------------------------------------------------
# DecoderLayer forward
# ---------------------------------------------------------------------------
def decoder_layer_forward(x, memory, src_mask, tgt_mask, prepared, num_heads):
    # TODO(synk): dropout is a no-op (eval-mode identity; the reference
    #             SublayerConnection also ignores it).
    B, S, d_model = x.shape
    Sm = memory.shape[1]
    ln = prepared["ln"]
    x2 = x.reshape(B * S, d_model)

    # Sublayer 0: x + self_attn(LN0(x))   (LN fused into the QKV projection)
    p = prepared["self_attn"]
    qkv = pallas_linear(x2, p["w_qkv"], p["b_qkv"], ln=ln[0])
    q = qkv[:, :d_model].reshape(B, S, d_model)
    k = qkv[:, d_model:2 * d_model].reshape(B, S, d_model)
    v = qkv[:, 2 * d_model:].reshape(B, S, d_model)
    ctx = pallas_attention(q, k, v, tgt_mask, num_heads)
    x2 = pallas_linear(ctx.reshape(B * S, d_model), p["w_o"], p["b_o"],
                       residual=x2)

    # Sublayer 1: x + src_attn(LN1(x), memory, memory)
    p = prepared["src_attn"]
    q = pallas_linear(x2, p["w_q"], p["b_q"], ln=ln[1]).reshape(B, S, d_model)
    kv = pallas_linear(memory.reshape(B * Sm, d_model), p["w_kv"], p["b_kv"])
    k = kv[:, :d_model].reshape(B, Sm, d_model)
    v = kv[:, d_model:].reshape(B, Sm, d_model)
    ctx = pallas_attention(q, k, v, src_mask, num_heads)
    x2 = pallas_linear(ctx.reshape(B * S, d_model), p["w_o"], p["b_o"],
                       residual=x2)

    # Sublayer 2: x + FFN(LN2(x))  (LN+ReLU fused into FF1, residual into FF2)
    w1, b1, w2, b2 = prepared["ff"]
    hidden = pallas_linear(x2, w1, b1, activation="relu", ln=ln[2])
    x2 = pallas_linear(hidden, w2, b2, residual=x2)
    return x2.reshape(B, S, d_model)


# ---------------------------------------------------------------------------
# Pure-JAX references (mirror the PyTorch module semantics)
# ---------------------------------------------------------------------------
def reference_attention(q_in, k_in, v_in, mask, p, num_heads):
    wq, bq, wk, bk, wv, bv, wo, bo = p
    B, Sq, d_model = q_in.shape
    d_k = d_model // num_heads

    def split(t):
        return t.reshape(B, -1, num_heads, d_k).transpose(0, 2, 1, 3)

    q = split(q_in @ wq + bq)
    k = split(k_in @ wk + bk)
    v = split(v_in @ wv + bv)
    scores = jnp.einsum("bhqd,bhkd->bhqk", q, k) / math.sqrt(d_k)
    scores = jnp.where(mask[:, None, :, :] == 0, -1e9, scores)
    pa = jax.nn.softmax(scores, axis=-1)
    ctx = jnp.einsum("bhqk,bhkd->bhqd", pa, v)
    ctx = ctx.transpose(0, 2, 1, 3).reshape(B, Sq, d_model)
    return ctx @ wo + bo


def reference_core_attention(q, k, v, mask, num_heads):
    """Softmax attention on already-projected q/k/v (for the streaming check)."""
    B, Sq, d_model = q.shape
    d_k = d_model // num_heads

    def split(t):
        return t.reshape(B, -1, num_heads, d_k).transpose(0, 2, 1, 3)

    s = jnp.einsum("bhqd,bhkd->bhqk", split(q), split(k)) / math.sqrt(d_k)
    s = jnp.where(mask[:, None, :, :] == 0, -1e9, s)
    pa = jax.nn.softmax(s, axis=-1)
    ctx = jnp.einsum("bhqk,bhkd->bhqd", pa, split(v))
    return ctx.transpose(0, 2, 1, 3).reshape(B, Sq, d_model)


def reference_decoder_layer(x, memory, src_mask, tgt_mask, params, num_heads,
                            eps=1e-6):
    def layer_norm(t, a2, b2):
        mean = jnp.mean(t, axis=-1, keepdims=True)
        std = jnp.std(t, axis=-1, keepdims=True, ddof=1)    # torch unbiased std
        return a2 * (t - mean) / (std + eps) + b2

    ln = params["ln"]
    h = layer_norm(x, *ln[0])
    x = x + reference_attention(h, h, h, tgt_mask, params["self_attn"],
                                num_heads)
    h = layer_norm(x, *ln[1])
    x = x + reference_attention(h, memory, memory, src_mask,
                                params["src_attn"], num_heads)
    h = layer_norm(x, *ln[2])
    w1, b1, w2, b2 = params["ff"]
    return x + jnp.maximum(h @ w1 + b1, 0.0) @ w2 + b2


# ---------------------------------------------------------------------------
# Demo / correctness checks
# ---------------------------------------------------------------------------
if __name__ == "__main__":
    # ---- check 1: multi-step Sk streaming (online softmax) on its own ------
    kq, kk, kv_, = jax.random.split(jax.random.PRNGKey(42), 3)
    Bc, Sc, Dc, Hc = 1, 256, 128, 2
    qc = jax.random.normal(kq, (Bc, Sc, Dc), jnp.float32)
    kc = jax.random.normal(kk, (Bc, Sc, Dc), jnp.float32)
    vc = jax.random.normal(kv_, (Bc, Sc, Dc), jnp.float32)
    causal_big = jnp.tril(jnp.ones((Sc, Sc), jnp.int32))[None]
    ctx_k = pallas_attention(qc, kc, vc, causal_big, Hc, tq=128, tkv=128)
    ctx_r = reference_core_attention(qc, kc, vc, causal_big, Hc)
    np.testing.assert_allclose(np.asarray(jax.block_until_ready(ctx_k)),
                               np.asarray(ctx_r), rtol=2e-3, atol=2e-3)

    # ---- check 2: full DecoderLayer at small shapes -------------------------
    B, S_tgt, S_src, d_model, num_heads, d_ff = 2, 8, 10, 32, 4, 64
    keys = jax.random.split(jax.random.PRNGKey(0), 24)

    def init_linear(key, d_in, d_out):
        kw, kb = jax.random.split(key)
        bound = 1.0 / math.sqrt(d_in)
        w_t = jax.random.uniform(kw, (d_in, d_out), jnp.float32, -bound, bound)
        b = jax.random.uniform(kb, (d_out,), jnp.float32, -bound, bound)
        return w_t, b

    def init_attn(kset):
        ps = ()
        for kkk in kset:
            ps += init_linear(kkk, d_model, d_model)
        return ps  # (wq, bq, wk, bk, wv, bv, wo, bo)

    def init_ln(ka, kb):
        a2 = 1.0 + 0.1 * jax.random.normal(ka, (d_model,), jnp.float32)
        b2 = 0.1 * jax.random.normal(kb, (d_model,), jnp.float32)
        return a2, b2

    params = {
        "self_attn": init_attn(keys[0:4]),
        "src_attn": init_attn(keys[4:8]),
        "ff": init_linear(keys[8], d_model, d_ff) + init_linear(keys[9], d_ff,
                                                                d_model),
        "ln": [init_ln(keys[10], keys[11]),
               init_ln(keys[12], keys[13]),
               init_ln(keys[14], keys[15])],
    }
    prepared = prepare_params(params)     # one-time weight fusion (QKV / KV)

    x = jax.random.normal(keys[16], (B, S_tgt, d_model), jnp.float32)
    memory = jax.random.normal(keys[17], (B, S_src, d_model), jnp.float32)

    causal = jnp.tril(jnp.ones((S_tgt, S_tgt), jnp.int32))
    tgt_pad = jnp.ones((B, 1, S_tgt), jnp.int32).at[1, 0, -1].set(0)
    tgt_mask = causal[None, :, :] * tgt_pad                       # (B,S_tgt,S_tgt)
    src_mask = jnp.ones((B, 1, S_src), jnp.int32).at[1, 0, -2:].set(0)

    out = decoder_layer_forward(x, memory, src_mask, tgt_mask, prepared,
                                num_heads)
    out = jax.block_until_ready(out)

    ref = reference_decoder_layer(x, memory, src_mask, tgt_mask, params,
                                  num_heads)
    np.testing.assert_allclose(np.asarray(out), np.asarray(ref),
                               rtol=2e-3, atol=2e-3)

    print("KERNEL_OK")
</pallas_src>

<mosaic_0001>
module attributes {stable_mosaic.version = 11 : i64} {
  func.func @kernel(%arg0: i32, %arg1: i32, %arg2: i32, %arg3: memref<1x128x128xf32, #tpu.memory_space<vmem>>, %arg4: memref<1x128x128xf32, #tpu.memory_space<vmem>>, %arg5: memref<1x128x128xf32, #tpu.memory_space<vmem>>, %arg6: memref<1x128x128xi32, #tpu.memory_space<vmem>>, %arg7: memref<1x128x128xf32, #tpu.memory_space<vmem>>, %arg8: memref<2x128x1xf32, #tpu.memory_space<vmem>>, %arg9: memref<2x128x1xf32, #tpu.memory_space<vmem>>, %arg10: memref<128x128xf32, #tpu.memory_space<vmem>>) attributes {dimension_semantics = [#tpu.dimension_semantics<parallel>, #tpu.dimension_semantics<parallel>, #tpu.dimension_semantics<arbitrary>], iteration_bounds = array<i64: 1, 2, 2>, scalar_prefetch = 0 : i64, scratch_operands = 3 : i64, tpu.core_type = #tpu.core_type<tc>, window_params = [{transform_indices = @transform_0, window_bounds = array<i64: 1, 128, 128>}, {transform_indices = @transform_1, window_bounds = array<i64: 1, 128, 128>}, {transform_indices = @transform_2, window_bounds = array<i64: 1, 128, 128>}, {transform_indices = @transform_3, window_bounds = array<i64: 1, 128, 128>}, {transform_indices = @transform_4, window_bounds = array<i64: 1, 128, 128>}]} {
    %c0_i32 = arith.constant 0 : i32
    %0 = arith.cmpi eq, %arg2, %c0_i32 : i32
    %1 = arith.extui %0 : i1 to i32
    %c0_i32_0 = arith.constant 0 : i32
    %2 = arith.cmpi ne, %1, %c0_i32_0 : i32
    scf.if %2 {
      %cst_64 = arith.constant 0xFF800000 : f32
      %88 = vector.broadcast %cst_64 : f32 to vector<2x128x1xf32>
      %c0_65 = arith.constant 0 : index
      %c0_66 = arith.constant 0 : index
      %c0_67 = arith.constant 0 : index
      %89 = vector.load %arg8[%c0_65, %c0_66, %c0_67] : memref<2x128x1xf32, #tpu.memory_space<vmem>>, vector<2x128x1xf32>
      tpu.vector_store %arg8[%c0_65, %c0_66, %c0_67], %88 {strides = array<i32>} : memref<2x128x1xf32, #tpu.memory_space<vmem>>, vector<2x128x1xf32>,
      %cst_68 = arith.constant 0.000000e+00 : f32
      %90 = vector.broadcast %cst_68 : f32 to vector<2x128x1xf32>
      %c0_69 = arith.constant 0 : index
      %c0_70 = arith.constant 0 : index
      %c0_71 = arith.constant 0 : index
      %91 = vector.load %arg9[%c0_69, %c0_70, %c0_71] : memref<2x128x1xf32, #tpu.memory_space<vmem>>, vector<2x128x1xf32>
      tpu.vector_store %arg9[%c0_69, %c0_70, %c0_71], %90 {strides = array<i32>} : memref<2x128x1xf32, #tpu.memory_space<vmem>>, vector<2x128x1xf32>,
      %cst_72 = arith.constant 0.000000e+00 : f32
      %92 = vector.broadcast %cst_72 : f32 to vector<128x128xf32>
      %c0_73 = arith.constant 0 : index
      %c0_74 = arith.constant 0 : index
      %93 = vector.load %arg10[%c0_73, %c0_74] : memref<128x128xf32, #tpu.memory_space<vmem>>, vector<128x128xf32>
      tpu.vector_store %arg10[%c0_73, %c0_74], %92 {strides = array<i32>} : memref<128x128xf32, #tpu.memory_space<vmem>>, vector<128x128xf32>,
    } else {
    }
    %c0 = arith.constant 0 : index
    %c0_1 = arith.constant 0 : index
    %c0_2 = arith.constant 0 : index
    %3 = vector.load %arg6[%c0, %c0_1, %c0_2] : memref<1x128x128xi32, #tpu.memory_space<vmem>>, vector<1x128x128xi32>
    %4 = vector.shape_cast %3 : vector<1x128x128xi32> to vector<128x128xi32>
    %c0_i32_3 = arith.constant 0 : i32
    %5 = vector.broadcast %c0_i32_3 : i32 to vector<128x128xi32>
    %6 = arith.cmpi eq, %4, %5 : vector<128x128xi32>
    %c0_4 = arith.constant 0 : index
    %c0_5 = arith.constant 0 : index
    %c0_6 = arith.constant 0 : index
    %7 = vector.load %arg3[%c0_4, %c0_5, %c0_6] : memref<1x128x128xf32, #tpu.memory_space<vmem>>, vector<1x128x64xf32>
    %8 = vector.shape_cast %7 : vector<1x128x64xf32> to vector<128x64xf32>
    %cst = arith.constant 1.250000e-01 : f32
    %9 = vector.broadcast %cst : f32 to vector<128x64xf32>
    %10 = arith.mulf %8, %9 : vector<128x64xf32>
    %c0_7 = arith.constant 0 : index
    %c0_8 = arith.constant 0 : index
    %c0_9 = arith.constant 0 : index
    %11 = vector.load %arg4[%c0_7, %c0_8, %c0_9] : memref<1x128x128xf32, #tpu.memory_space<vmem>>, vector<1x128x64xf32>
    %12 = vector.shape_cast %11 : vector<1x128x64xf32> to vector<128x64xf32>
    %c0_10 = arith.constant 0 : index
    %c0_11 = arith.constant 0 : index
    %c0_12 = arith.constant 0 : index
    %13 = vector.load %arg5[%c0_10, %c0_11, %c0_12] : memref<1x128x128xf32, #tpu.memory_space<vmem>>, vector<1x128x64xf32>
    %14 = vector.shape_cast %13 : vector<1x128x64xf32> to vector<128x64xf32>
    %cst_13 = arith.constant dense<0.000000e+00> : vector<128x128xf32>
    %15 = tpu.matmul %10, %12, %cst_13 {dimension_numbers = #tpu.dot_dimension_numbers<[1], [1], [0], [0], [0, 0, 1, 0], [], []>} : vector<128x64xf32>, vector<128x64xf32>, vector<128x128xf32> -> vector<128x128xf32>
    %cst_14 = arith.constant -1.000000e+09 : f32
    %16 = vector.broadcast %cst_14 : f32 to vector<128x128xf32>
    %17 = arith.select %6, %16, %15 : vector<128x128xi1>, vector<128x128xf32>
    %c0_15 = arith.constant 0 : index
    %c0_16 = arith.constant 0 : index
    %c0_17 = arith.constant 0 : index
    %18 = vector.load %arg8[%c0_15, %c0_16, %c0_17] : memref<2x128x1xf32, #tpu.memory_space<vmem>>, vector<1x128x1xf32>
    %19 = vector.shape_cast %18 : vector<1x128x1xf32> to vector<128x1xf32>
    %cst_18 = arith.constant dense<0xFF800000> : vector<128xf32>
    %20 = vector.multi_reduction <maximumf>, %17, %cst_18 [1] : vector<128x128xf32> to vector<128xf32>
    %21 = vector.shape_cast %20 : vector<128xf32> to vector<128x1xf32>
    %22 = arith.maximumf %19, %21 : vector<128x1xf32>
    %23 = arith.subf %19, %22 : vector<128x1xf32>
    %24 = math.exp %23 : vector<128x1xf32>
    %25 = vector.broadcast %22 : vector<128x1xf32> to vector<128x128xf32>
    %26 = arith.subf %17, %25 : vector<128x128xf32>
    %27 = math.exp %26 : vector<128x128xf32>
    %c0_19 = arith.constant 0 : index
    %c0_20 = arith.constant 0 : index
    %c0_21 = arith.constant 0 : index
    %28 = vector.load %arg9[%c0_19, %c0_20, %c0_21] : memref<2x128x1xf32, #tpu.memory_space<vmem>>, vector<1x128x1xf32>
    %29 = vector.shape_cast %28 : vector<1x128x1xf32> to vector<128x1xf32>
    %30 = arith.mulf %24, %29 : vector<128x1xf32>
    %cst_22 = arith.constant dense<0.000000e+00> : vector<128xf32>
    %31 = vector.multi_reduction <add>, %27, %cst_22 [1] : vector<128x128xf32> to vector<128xf32>
    %32 = vector.shape_cast %31 : vector<128xf32> to vector<128x1xf32>
    %33 = arith.addf %30, %32 : vector<128x1xf32>
    %c0_23 = arith.constant 0 : index
    %c0_24 = arith.constant 0 : index
    %c0_25 = arith.constant 0 : index
    %34 = vector.load %arg9[%c0_23, %c0_24, %c0_25] : memref<2x128x1xf32, #tpu.memory_space<vmem>>, vector<1x128x1xf32>
    %35 = vector.shape_cast %34 : vector<1x128x1xf32> to vector<128x1xf32>
    %36 = vector.shape_cast %33 : vector<128x1xf32> to vector<1x128x1xf32>
    tpu.vector_store %arg9[%c0_23, %c0_24, %c0_25], %36 {strides = array<i32>} : memref<2x128x1xf32, #tpu.memory_space<vmem>>, vector<1x128x1xf32>,
    %c0_26 = arith.constant 0 : index
    %c0_27 = arith.constant 0 : index
    %37 = vector.load %arg10[%c0_26, %c0_27] : memref<128x128xf32, #tpu.memory_space<vmem>>, vector<128x64xf32>
    %38 = vector.broadcast %24 : vector<128x1xf32> to vector<128x64xf32>
    %39 = arith.mulf %38, %37 : vector<128x64xf32>
    %cst_28 = arith.constant dense<0.000000e+00> : vector<128x64xf32>
    %40 = tpu.matmul %27, %14, %cst_28 {dimension_numbers = #tpu.dot_dimension_numbers<[1], [0], [0], [1], [0, 0, 1, 1], [], []>} : vector<128x128xf32>, vector<128x64xf32>, vector<128x64xf32> -> vector<128x64xf32>
    %41 = arith.addf %39, %40 : vector<128x64xf32>
    %c0_29 = arith.constant 0 : index
    %c0_30 = arith.constant 0 : index
    %42 = vector.load %arg10[%c0_29, %c0_30] : memref<128x128xf32, #tpu.memory_space<vmem>>, vector<128x64xf32>
    tpu.vector_store %arg10[%c0_29, %c0_30], %41 {strides = array<i32>} : memref<128x128xf32, #tpu.memory_space<vmem>>, vector<128x64xf32>,
    %c0_31 = arith.constant 0 : index
    %c0_32 = arith.constant 0 : index
    %c0_33 = arith.constant 0 : index
    %43 = vector.load %arg8[%c0_31, %c0_32, %c0_33] : memref<2x128x1xf32, #tpu.memory_space<vmem>>, vector<1x128x1xf32>
    %44 = vector.shape_cast %43 : vector<1x128x1xf32> to vector<128x1xf32>
    %45 = vector.shape_cast %22 : vector<128x1xf32> to vector<1x128x1xf32>
    tpu.vector_store %arg8[%c0_31, %c0_32, %c0_33], %45 {strides = array<i32>} : memref<2x128x1xf32, #tpu.memory_space<vmem>>, vector<1x128x1xf32>,
    %c0_34 = arith.constant 0 : index
    %c0_35 = arith.constant 0 : index
    %c64 = arith.constant 64 : index
    %46 = vector.load %arg3[%c0_34, %c0_35, %c64] : memref<1x128x128xf32, #tpu.memory_space<vmem>>, vector<1x128x64xf32>
    %47 = vector.shape_cast %46 : vector<1x128x64xf32> to vector<128x64xf32>
    %cst_36 = arith.constant 1.250000e-01 : f32
    %48 = vector.broadcast %cst_36 : f32 to vector<128x64xf32>
    %49 = arith.mulf %47, %48 : vector<128x64xf32>
    %c0_37 = arith.constant 0 : index
    %c0_38 = arith.constant 0 : index
    %c64_39 = arith.constant 64 : index
    %50 = vector.load %arg4[%c0_37, %c0_38, %c64_39] : memref<1x128x128xf32, #tpu.memory_space<vmem>>, vector<1x128x64xf32>
    %51 = vector.shape_cast %50 : vector<1x128x64xf32> to vector<128x64xf32>
    %c0_40 = arith.constant 0 : index
    %c0_41 = arith.constant 0 : index
    %c64_42 = arith.constant 64 : index
    %52 = vector.load %arg5[%c0_40, %c0_41, %c64_42] : memref<1x128x128xf32, #tpu.memory_space<vmem>>, vector<1x128x64xf32>
    %53 = vector.shape_cast %52 : vector<1x128x64xf32> to vector<128x64xf32>
    %cst_43 = arith.constant dense<0.000000e+00> : vector<128x128xf32>
    %54 = tpu.matmul %49, %51, %cst_43 {dimension_numbers = #tpu.dot_dimension_numbers<[1], [1], [0], [0], [0, 0, 1, 0], [], []>} : vector<128x64xf32>, vector<128x64xf32>, vector<128x128xf32> -> vector<128x128xf32>
    %cst_44 = arith.constant -1.000000e+09 : f32
    %55 = vector.broadcast %cst_44 : f32 to vector<128x128xf32>
    %56 = arith.select %6, %55, %54 : vector<128x128xi1>, vector<128x128xf32>
    %c1 = arith.constant 1 : index
    %c0_45 = arith.constant 0 : index
    %c0_46 = arith.constant 0 : index
    %57 = vector.load %arg8[%c1, %c0_45, %c0_46] : memref<2x128x1xf32, #tpu.memory_space<vmem>>, vector<1x128x1xf32>
    %58 = vector.shape_cast %57 : vector<1x128x1xf32> to vector<128x1xf32>
    %cst_47 = arith.constant dense<0xFF800000> : vector<128xf32>
    %59 = vector.multi_reduction <maximumf>, %56, %cst_47 [1] : vector<128x128xf32> to vector<128xf32>
    %60 = vector.shape_cast %59 : vector<128xf32> to vector<128x1xf32>
    %61 = arith.maximumf %58, %60 : vector<128x1xf32>
    %62 = arith.subf %58, %61 : vector<128x1xf32>
    %63 = math.exp %62 : vector<128x1xf32>
    %64 = vector.broadcast %61 : vector<128x1xf32> to vector<128x128xf32>
    %65 = arith.subf %56, %64 : vector<128x128xf32>
    %66 = math.exp %65 : vector<128x128xf32>
    %c1_48 = arith.constant 1 : index
    %c0_49 = arith.constant 0 : index
    %c0_50 = arith.constant 0 : index
    %67 = vector.load %arg9[%c1_48, %c0_49, %c0_50] : memref<2x128x1xf32, #tpu.memory_space<vmem>>, vector<1x128x1xf32>
    %68 = vector.shape_cast %67 : vector<1x128x1xf32> to vector<128x1xf32>
    %69 = arith.mulf %63, %68 : vector<128x1xf32>
    %cst_51 = arith.constant dense<0.000000e+00> : vector<128xf32>
    %70 = vector.multi_reduction <add>, %66, %cst_51 [1] : vector<128x128xf32> to vector<128xf32>
    %71 = vector.shape_cast %70 : vector<128xf32> to vector<128x1xf32>
    %72 = arith.addf %69, %71 : vector<128x1xf32>
    %c1_52 = arith.constant 1 : index
    %c0_53 = arith.constant 0 : index
    %c0_54 = arith.constant 0 : index
    %73 = vector.load %arg9[%c1_52, %c0_53, %c0_54] : memref<2x128x1xf32, #tpu.memory_space<vmem>>, vector<1x128x1xf32>
    %74 = vector.shape_cast %73 : vector<1x128x1xf32> to vector<128x1xf32>
    %75 = vector.shape_cast %72 : vector<128x1xf32> to vector<1x128x1xf32>
    tpu.vector_store %arg9[%c1_52, %c0_53, %c0_54], %75 {strides = array<i32>} : memref<2x128x1xf32, #tpu.memory_space<vmem>>, vector<1x128x1xf32>,
    %c0_55 = arith.constant 0 : index
    %c64_56 = arith.constant 64 : index
    %76 = vector.load %arg10[%c0_55, %c64_56] : memref<128x128xf32, #tpu.memory_space<vmem>>, vector<128x64xf32>
    %77 = vector.broadcast %63 : vector<128x1xf32> to vector<128x64xf32>
    %78 = arith.mulf %77, %76 : vector<128x64xf32>
    %cst_57 = arith.constant dense<0.000000e+00> : vector<128x64xf32>
    %79 = tpu.matmul %66, %53, %cst_57 {dimension_numbers = #tpu.dot_dimension_numbers<[1], [0], [0], [1], [0, 0, 1, 1], [], []>} : vector<128x128xf32>, vector<128x64xf32>, vector<128x64xf32> -> vector<128x64xf32>
    %80 = arith.addf %78, %79 : vector<128x64xf32>
    %c0_58 = arith.constant 0 : index
    %c64_59 = arith.constant 64 : index
    %81 = vector.load %arg10[%c0_58, %c64_59] : memref<128x128xf32, #tpu.memory_space<vmem>>, vector<128x64xf32>
    tpu.vector_store %arg10[%c0_58, %c64_59], %80 {strides = array<i32>} : memref<128x128xf32, #tpu.memory_space<vmem>>, vector<128x64xf32>,
    %c1_60 = arith.constant 1 : index
    %c0_61 = arith.constant 0 : index
    %c0_62 = arith.constant 0 : index
    %82 = vector.load %arg8[%c1_60, %c0_61, %c0_62] : memref<2x128x1xf32, #tpu.memory_space<vmem>>, vector<1x128x1xf32>
    %83 = vector.shape_cast %82 : vector<1x128x1xf32> to vector<128x1xf32>
    %84 = vector.shape_cast %61 : vector<128x1xf32> to vector<1x128x1xf32>
    tpu.vector_store %arg8[%c1_60, %c0_61, %c0_62], %84 {strides = array<i32>} : memref<2x128x1xf32, #tpu.memory_space<vmem>>, vector<1x128x1xf32>,
    %c1_i32 = arith.constant 1 : i32
    %85 = arith.cmpi eq, %arg2, %c1_i32 : i32
    %86 = arith.extui %85 : i1 to i32
    %c0_i32_63 = arith.constant 0 : i32
    %87 = arith.cmpi ne, %86, %c0_i32_63 : i32
    scf.if %87 {
      %c0_64 = arith.constant 0 : index
      %c0_65 = arith.constant 0 : index
      %c0_66 = arith.constant 0 : index
      %88 = vector.load %arg9[%c0_64, %c0_65, %c0_66] : memref<2x128x1xf32, #tpu.memory_space<vmem>>, vector<1x128x1xf32>
      %89 = vector.shape_cast %88 : vector<1x128x1xf32> to vector<128x1xf32>
      %90 = tpu.reciprocal %89 {approx = true} : vector<128x1xf32> -> vector<128x1xf32>
      %c0_67 = arith.constant 0 : index
      %c0_68 = arith.constant 0 : index
      %91 = vector.load %arg10[%c0_67, %c0_68] : memref<128x128xf32, #tpu.memory_space<vmem>>, vector<128x64xf32>
      %92 = vector.broadcast %90 : vector<128x1xf32> to vector<128x64xf32>
      %93 = arith.mulf %91, %92 : vector<128x64xf32>
      %c0_69 = arith.constant 0 : index
      %c0_70 = arith.constant 0 : index
      %c0_71 = arith.constant 0 : index
      %94 = vector.load %arg7[%c0_69, %c0_70, %c0_71] : memref<1x128x128xf32, #tpu.memory_space<vmem>>, vector<1x128x64xf32>
      %95 = vector.shape_cast %94 : vector<1x128x64xf32> to vector<128x64xf32>
      %96 = vector.shape_cast %93 : vector<128x64xf32> to vector<1x128x64xf32>
      tpu.vector_store %arg7[%c0_69, %c0_70, %c0_71], %96 {strides = array<i32>} : memref<1x128x128xf32, #tpu.memory_space<vmem>>, vector<1x128x64xf32>,
      %c1_72 = arith.constant 1 : index
      %c0_73 = arith.constant 0 : index
      %c0_74 = arith.constant 0 : index
      %97 = vector.load %arg9[%c1_72, %c0_73, %c0_74] : memref<2x128x1xf32, #tpu.memory_space<vmem>>, vector<1x128x1xf32>
      %98 = vector.shape_cast %97 : vector<1x128x1xf32> to vector<128x1xf32>
      %99 = tpu.reciprocal %98 {approx = true} : vector<128x1xf32> -> vector<128x1xf32>
      %c0_75 = arith.constant 0 : index
      %c64_76 = arith.constant 64 : index
      %100 = vector.load %arg10[%c0_75, %c64_76] : memref<128x128xf32, #tpu.memory_space<vmem>>, vector<128x64xf32>
      %101 = vector.broadcast %99 : vector<128x1xf32> to vector<128x64xf32>
      %102 = arith.mulf %100, %101 : vector<128x64xf32>
      %c0_77 = arith.constant 0 : index
      %c0_78 = arith.constant 0 : index
      %c64_79 = arith.constant 64 : index
      %103 = vector.load %arg7[%c0_77, %c0_78, %c64_79] : memref<1x128x128xf32, #tpu.memory_space<vmem>>, vector<1x128x64xf32>
      %104 = vector.shape_cast %103 : vector<1x128x64xf32> to vector<128x64xf32>
      %105 = vector.shape_cast %102 : vector<128x64xf32> to vector<1x128x64xf32>
      tpu.vector_store %arg7[%c0_77, %c0_78, %c64_79], %105 {strides = array<i32>} : memref<1x128x128xf32, #tpu.memory_space<vmem>>, vector<1x128x64xf32>,
    } else {
    }
    return
  }
  func.func @transform_0(%arg0: i32, %arg1: i32, %arg2: i32) -> (i32, i32, i32) {
    %c0_i32 = arith.constant 0 : i32
    %c0_i32_0 = arith.constant 0 : i32
    return %arg0, %arg1, %c0_i32 : i32, i32, i32
  }
  func.func @transform_1(%arg0: i32, %arg1: i32, %arg2: i32) -> (i32, i32, i32) {
    %c0_i32 = arith.constant 0 : i32
    %c0_i32_0 = arith.constant 0 : i32
    return %arg0, %arg2, %c0_i32 : i32, i32, i32
  }
  func.func @transform_2(%arg0: i32, %arg1: i32, %arg2: i32) -> (i32, i32, i32) {
    %c0_i32 = arith.constant 0 : i32
    %c0_i32_0 = arith.constant 0 : i32
    return %arg0, %arg2, %c0_i32 : i32, i32, i32
  }
  func.func @transform_3(%arg0: i32, %arg1: i32, %arg2: i32) -> (i32, i32, i32) {
    %c0_i32 = arith.constant 0 : i32
    return %arg0, %arg1, %arg2 : i32, i32, i32
  }
  func.func @transform_4(%arg0: i32, %arg1: i32, %arg2: i32) -> (i32, i32, i32) {
    %c0_i32 = arith.constant 0 : i32
    %c0_i32_0 = arith.constant 0 : i32
    return %arg0, %arg1, %c0_i32 : i32, i32, i32
  }
}

</mosaic_0001>

<llo_original>
// kernel: tpu_custom_call.1
$region0: #{tpu_custom_call.1}
  #allocation0 [shape = 'u32[]', space=smem, size = 0x4, offset = 0x4, fixed_abs, tag = 'smem constant byte address 0x4 - core index']
  #allocation1 [shape = 'u32[144,128]{1,0:T(1,128)}', space=vmem, size = 0x12000, scoped, tag = 'internal scratch']
  #allocation2 [shape = 'f32[2,128,1]{2,1,0:T(8,128)}', space=vmem, size = 0x20000, scoped, tag = 'scratch operand']
  #allocation3 [shape = 'f32[2,128,1]{2,1,0:T(8,128)}', space=vmem, size = 0x20000, scoped, tag = 'scratch operand']
  #allocation4 [shape = 'f32[128,128]{1,0:T(8,128)}', space=vmem, size = 0x10000, scoped, tag = 'scratch operand']
  %s0 = inlined_call_operand.hbm [shape: f32[1,256,128], index: 0, kind: input, shape index: {}]
  %s1 = inlined_call_operand.hbm [shape: f32[1,256,128], index: 1, kind: input, shape index: {}]
  %s2 = inlined_call_operand.hbm [shape: f32[1,256,128], index: 2, kind: input, shape index: {}]
  %s3 = inlined_call_operand.hbm [shape: s32[1,256,256], index: 3, kind: input, shape index: {}]
  %s4 = inlined_call_operand.hbm [shape: f32[1,256,128], index: 4, kind: output, shape index: {}]
  %s5 = sld [smem:[#allocation0]]
  $region73: #{tpu_custom_call.1} parent=0
    _
  %s7 = ssub.s32 1, %s5
  %s8 = scalar_select 0, %s7, %s5
  $region1: #{tpu_custom_call.1} parent=0
    #allocation5 [shape = 'u8[131072]{0}', space=vmem, size = 0x20000, scoped, tag = 'input window, operand 0']
    #allocation6 [shape = 's32[2]{0}', space=sflag, size = 0x8, scoped, tag = 'scoped memory for tpu_custom_call.1']
    #allocation7 [shape = 's32[2]{0}', space=sflag, size = 0x8, scoped, tag = 'scoped memory for tpu_custom_call.1']
    #allocation8 [shape = 'u8[131072]{0}', space=vmem, size = 0x20000, scoped, tag = 'input window, operand 1']
    #allocation9 [shape = 's32[2]{0}', space=sflag, size = 0x8, scoped, tag = 'scoped memory for tpu_custom_call.1']
    #allocation10 [shape = 'u8[131072]{0}', space=vmem, size = 0x20000, scoped, tag = 'input window, operand 2']
    #allocation11 [shape = 'u8[131072]{0}', space=vmem, size = 0x20000, scoped, tag = 'input window, operand 3']
    #allocation12 [shape = 's32[2]{0}', space=sflag, size = 0x8, scoped, tag = 'scoped memory for tpu_custom_call.1']
    #allocation13 [shape = 'u8[131072]{0}', space=vmem, size = 0x20000, scoped, tag = 'output window, operand 0']
    %9 = vsyncpa [#allocation6], 0
    %s10 = scalar_lea.sflag [#allocation6], 1
    %11 = vsyncpa %s10, 0
    %12 = vsyncpa [#allocation9], 0
    %s13 = scalar_lea.sflag [#allocation9], 1
    %14 = vsyncpa %s13, 0
    %15 = vsyncpa [#allocation12], 0
    %s16 = scalar_lea.sflag [#allocation12], 1
    %17 = vsyncpa %s16, 0
    %18 = vsyncpa [#allocation7], 0
    %s19 = scalar_lea.sflag [#allocation7], 1
    %20 = vsyncpa %s19, 0
    loop: start=0, step=1, limit=6
    $region2: #{tpu_custom_call.1} parent=1 // loop_pre_header
      _
    $region3: #{tpu_custom_call.1} parent=1 // loop_header
      %s22 = sphi 0, %s26
      %p23 = scmp.ge.s32.totalorder %s22, 6
      %s29 = sphi 0, %s48
      %s30 = sphi 0, %s44
      %s31 = sphi 0, %s40
      %s32 = sphi 0, %s29
      %s33 = sphi 0, %s30
      %s34 = sphi 0, %s31
      %s35 = sphi 0, %s32
      %s36 = sphi 0, %s33
      %s37 = sphi 0, %s34
      %s53 = sphi 0, %s55
      %s56 = sphi 0, %s53
      %s57 = sphi 0, %s56
      %s73 = sphi 0, %s57
      %s81 = sphi 0, %s83
      %s84 = sphi 0, %s81
      %s85 = sphi 0, %s84
      %s101 = sphi 0, %s85
      %s109 = sphi 0, %s111
      %s112 = sphi 0, %s109
      %s113 = sphi 0, %s112
      %s129 = sphi 0, %s113
      %s139 = sphi 0, %s141
      %s142 = sphi 0, %s139
      %s143 = sphi 0, %s142
      %s159 = sphi 0, %s143
      %s167 = sphi 0, %s169
      %s170 = sphi 0, %s167
      %s171 = sphi 0, %s170
      %s187 = sphi 0, %s171
    $region4: #{tpu_custom_call.1} parent=1 // loop_header_branch
      %25 = sbr.rel (%p23) target = $region8
    $region5: #{tpu_custom_call.1} parent=1 // loop_body
      %s27 = ssub.s32 %s22, 1
      %s28 = ssub.s32 %s22, 2
      %s38 = sadd.s32 1, %s31
      %p39 = scmp.ge.s32.totalorder %s38, 2
      %s40 = scalar_select %p39, 0, %s38
      %s41 = sadd.s32 1, %s30
      %s42 = scalar_select %p39, %s41, %s30
      %p43 = scmp.ge.s32.totalorder %s42, 2
      %s44 = scalar_select %p43, 0, %s42
      %s45 = sadd.s32 1, %s29
      %s46 = scalar_select %p43, %s45, %s29
      %p47 = scmp.ge.s32.totalorder %s46, 1
      %s48 = scalar_select %p47, 0, %s46
      %s49 = ssub.s32 %s29, %s48
      %s50 = ssub.s32 %s30, %s44
      %s51 = sor.u32 %s49, %s50
      %p52 = scmp.eq.s32.totalorder %s51, 0
      %s54 = sadd.s32 %s53, 1
      %s55 = scalar_select %p52, %s53, %s54
      %p58 = pneg %p52
      %p59 = scmp.eq.s32.totalorder %s22, 3
      %p60 = por %p58, %p59
      %p61 = scmp.ne.s32.totalorder %s53, %s56
      %p62 = scmp.eq.s32.totalorder %s22, 0
      %p63 = por %p61, %p62
      %p64 = scmp.ne.s32.totalorder %s53, %s56
      %p65 = scmp.eq.s32.totalorder %s27, 3
      %p66 = por %p64, %p65
      %p67 = scmp.ne.s32.totalorder %s56, %s57
      %p68 = scmp.eq.s32.totalorder %s27, 0
      %p69 = por %p67, %p68
      %p70 = scmp.ne.s32.totalorder %s56, %s57
      %p71 = scmp.eq.s32.totalorder %s28, 3
      %p72 = por %p70, %p71
      %p74 = scmp.ne.s32.totalorder %s57, %s73
      %p75 = scmp.eq.s32.totalorder %s28, 0
      %p76 = por %p74, %p75
      %s77 = ssub.s32 %s29, %s48
      %s78 = ssub.s32 %s31, %s40
      %s79 = sor.u32 %s77, %s78
      %p80 = scmp.eq.s32.totalorder %s79, 0
      %s82 = sadd.s32 %s81, 1
      %s83 = scalar_select %p80, %s81, %s82
      %p86 = pneg %p80
      %p87 = scmp.eq.s32.totalorder %s22, 3
      %p88 = por %p86, %p87
      %p89 = scmp.ne.s32.totalorder %s81, %s84
      %p90 = scmp.eq.s32.totalorder %s22, 0
      %p91 = por %p89, %p90
      %p92 = scmp.ne.s32.totalorder %s81, %s84
      %p93 = scmp.eq.s32.totalorder %s27, 3
      %p94 = por %p92, %p93
      %p95 = scmp.ne.s32.totalorder %s84, %s85
      %p96 = scmp.eq.s32.totalorder %s27, 0
      %p97 = por %p95, %p96
      %p98 = scmp.ne.s32.totalorder %s84, %s85
      %p99 = scmp.eq.s32.totalorder %s28, 3
      %p100 = por %p98, %p99
      %p102 = scmp.ne.s32.totalorder %s85, %s101
      %p103 = scmp.eq.s32.totalorder %s28, 0
      %p104 = por %p102, %p103
      %s105 = ssub.s32 %s29, %s48
      %s106 = ssub.s32 %s31, %s40
      %s107 = sor.u32 %s105, %s106
      %p108 = scmp.eq.s32.totalorder %s107, 0
      %s110 = sadd.s32 %s109, 1
      %s111 = scalar_select %p108, %s109, %s110
      %p114 = pneg %p108
      %p115 = scmp.eq.s32.totalorder %s22, 3
      %p116 = por %p114, %p115
      %p117 = scmp.ne.s32.totalorder %s109, %s112
      %p118 = scmp.eq.s32.totalorder %s22, 0
      %p119 = por %p117, %p118
      %p120 = scmp.ne.s32.totalorder %s109, %s112
      %p121 = scmp.eq.s32.totalorder %s27, 3
      %p122 = por %p120, %p121
      %p123 = scmp.ne.s32.totalorder %s112, %s113
      %p124 = scmp.eq.s32.totalorder %s27, 0
      %p125 = por %p123, %p124
      %p126 = scmp.ne.s32.totalorder %s112, %s113
      %p127 = scmp.eq.s32.totalorder %s28, 3
      %p128 = por %p126, %p127
      %p130 = scmp.ne.s32.totalorder %s113, %s129
      %p131 = scmp.eq.s32.totalorder %s28, 0
      %p132 = por %p130, %p131
      %s133 = ssub.s32 %s29, %s48
      %s134 = ssub.s32 %s30, %s44
      %s135 = sor.u32 %s133, %s134
      %s136 = ssub.s32 %s31, %s40
      %s137 = sor.u32 %s135, %s136
      %p138 = scmp.eq.s32.totalorder %s137, 0
      %s140 = sadd.s32 %s139, 1
      %s141 = scalar_select %p138, %s139, %s140
      %p144 = pneg %p138
      %p145 = scmp.eq.s32.totalorder %s22, 3
      %p146 = por %p144, %p145
      %p147 = scmp.ne.s32.totalorder %s139, %s142
      %p148 = scmp.eq.s32.totalorder %s22, 0
      %p149 = por %p147, %p148
      %p150 = scmp.ne.s32.totalorder %s139, %s142
      %p151 = scmp.eq.s32.totalorder %s27, 3
      %p152 = por %p150, %p151
      %p153 = scmp.ne.s32.totalorder %s142, %s143
      %p154 = scmp.eq.s32.totalorder %s27, 0
      %p155 = por %p153, %p154
      %p156 = scmp.ne.s32.totalorder %s142, %s143
      %p157 = scmp.eq.s32.totalorder %s28, 3
      %p158 = por %p156, %p157
      %p160 = scmp.ne.s32.totalorder %s143, %s159
      %p161 = scmp.eq.s32.totalorder %s28, 0
      %p162 = por %p160, %p161
      %s163 = ssub.s32 %s29, %s48
      %s164 = ssub.s32 %s30, %s44
      %s165 = sor.u32 %s163, %s164
      %p166 = scmp.eq.s32.totalorder %s165, 0
      %s168 = sadd.s32 %s167, 1
      %s169 = scalar_select %p166, %s167, %s168
      %p172 = pneg %p166
      %p173 = scmp.eq.s32.totalorder %s22, 3
      %p174 = por %p172, %p173
      %p175 = scmp.ne.s32.totalorder %s167, %s170
      %p176 = scmp.eq.s32.totalorder %s22, 0
      %p177 = por %p175, %p176
      %p178 = scmp.ne.s32.totalorder %s167, %s170
      %p179 = scmp.eq.s32.totalorder %s27, 3
      %p180 = por %p178, %p179
      %p181 = scmp.ne.s32.totalorder %s170, %s171
      %p182 = scmp.eq.s32.totalorder %s27, 0
      %p183 = por %p181, %p182
      %p184 = scmp.ne.s32.totalorder %s170, %s171
      %p185 = scmp.eq.s32.totalorder %s28, 3
      %p186 = por %p184, %p185
      %p188 = scmp.ne.s32.totalorder %s171, %s187
      %p189 = scmp.eq.s32.totalorder %s28, 0
      %p190 = por %p188, %p189
      %p191 = scmp.le.s32.totalorder 1, %s22
      %p192 = scmp.lt.s32.totalorder %s22, 5
      %p193 = pnand %p191, %p192
      %p194 = pneg %p193
      // Predicated region
      $region9: #{tpu_custom_call.1} parent=5 // pred_check
        _
      $region10: #{tpu_custom_call.1} parent=5 // pred_check_branch
        %196 = sbr.rel (%p193) target = $region12
      $region11: #{tpu_custom_call.1} parent=5 // pred_region
        %s197 = ssub.s32 %s22, 1
      $region12: #{tpu_custom_call.1} parent=5 // pred_fallthru
        _
      %p198 = scmp.lt.s32.totalorder %s22, 4
      // Predicated region
      $region13: #{tpu_custom_call.1} parent=5 // pred_check
        %p199 = pneg %p198
      $region14: #{tpu_custom_call.1} parent=5 // pred_check_branch
        %201 = sbr.rel (%p199) target = $region16
      $region15: #{tpu_custom_call.1} parent=5 // pred_region
        // Predicated region
        $region17: #{tpu_custom_call.1} parent=15 // pred_check
          %p202 = pneg %p63
        $region18: #{tpu_custom_call.1} parent=15 // pred_check_branch
          %204 = sbr.rel (%p202) target = $region20
        $region19: #{tpu_custom_call.1} parent=15 // pred_region
          %s205 = sand.u32 %s53, 1
          %s206 = scalar_lea.sflag [#allocation6], %s205
          %s207 = sand.u32 %s53, 1
          %s208 = smul.addr %s207, 128
          %s209 = scalar_lea.vmem [#allocation5], %s208
          %s210 = smul.u32 16, %s30
          %s212 = ssub.s32 2048, 2048
          %213 = vsyncadd %s206, %s212
          %s214 = smul.addr %s29, 32
          %s215 = sadd.s32 %s210, %s214
          %s216 = smul.addr %s215, 128
          %s217 = scalar_lea.hbm %s0, %s216
          %s218 = sshll.u32 %s209, 4
          %s219 = int_to_ptr.vmem [resolvable:$true] %s218
          %224 = dma.hbm_to_vmem [thread:$0]  %s217, 2048, %s219, %s206, 128, 128, 8
        $region20: #{tpu_custom_call.1} parent=15 // pred_fallthru
          _
        // Predicated region
        $region21: #{tpu_custom_call.1} parent=15 // pred_check
          %p225 = pneg %p91
        $region22: #{tpu_custom_call.1} parent=15 // pred_check_branch
          %227 = sbr.rel (%p225) target = $region24
        $region23: #{tpu_custom_call.1} parent=15 // pred_region
          %s228 = sand.u32 %s22, 1
          %s229 = scalar_lea.sflag [#allocation9], %s228
          %s230 = sand.u32 %s81, 1
          %s231 = smul.addr %s230, 128
          %s232 = scalar_lea.vmem [#allocation8], %s231
          %s233 = smul.u32 16, %s31
          %s235 = ssub.s32 2048, 2048
          %236 = vsyncadd %s229, %s235
          %s237 = smul.addr %s29, 32
          %s238 = sadd.s32 %s233, %s237
          %s239 = smul.addr %s238, 128
          %s240 = scalar_lea.hbm %s1, %s239
          %s241 = sshll.u32 %s232, 4
          %s242 = int_to_ptr.vmem [resolvable:$true] %s241
          %247 = dma.hbm_to_vmem [thread:$0]  %s240, 2048, %s242, %s229, 128, 128, 8
        $region24: #{tpu_custom_call.1} parent=15 // pred_fallthru
          _
        // Predicated region
        $region25: #{tpu_custom_call.1} parent=15 // pred_check
          %p248 = pneg %p119
        $region26: #{tpu_custom_call.1} parent=15 // pred_check_branch
          %250 = sbr.rel (%p248) target = $region28
        $region27: #{tpu_custom_call.1} parent=15 // pred_region
          %s251 = sand.u32 %s22, 1
          %s252 = scalar_lea.sflag [#allocation9], %s251
          %s253 = sand.u32 %s109, 1
          %s254 = smul.addr %s253, 128
          %s255 = scalar_lea.vmem [#allocation10], %s254
          %s256 = smul.u32 16, %s31
          %s258 = ssub.s32 2048, 2048
          %259 = vsyncadd %s252, %s258
          %s260 = smul.addr %s29, 32
          %s261 = sadd.s32 %s256, %s260
          %s262 = smul.addr %s261, 128
          %s263 = scalar_lea.hbm %s2, %s262
          %s264 = sshll.u32 %s255, 4
          %s265 = int_to_ptr.vmem [resolvable:$true] %s264
          %270 = dma.hbm_to_vmem [thread:$0]  %s263, 2048, %s265, %s252, 128, 128, 8
        $region28: #{tpu_custom_call.1} parent=15 // pred_fallthru
          _
        // Predicated region
        $region29: #{tpu_custom_call.1} parent=15 // pred_check
          %p271 = pneg %p149
        $region30: #{tpu_custom_call.1} parent=15 // pred_check_branch
          %273 = sbr.rel (%p271) target = $region32
        $region31: #{tpu_custom_call.1} parent=15 // pred_region
          %s274 = sand.u32 %s139, 1
          %s275 = scalar_lea.sflag [#allocation12], %s274
          %s276 = sand.u32 %s139, 1
          %s277 = smul.addr %s276, 128
          %s278 = scalar_lea.vmem [#allocation11], %s277
          %s279 = smul.u32 16, %s30
          %s281 = ssub.s32 2048, 2048
          %282 = vsyncadd %s275, %s281
          %s283 = smul.addr %s279, 2
          %s284 = sadd.s32 %s31, %s283
          %s285 = smul.addr %s29, 64
          %s286 = sadd.s32 %s284, %s285
          %s287 = smul.addr %s286, 128
          %s288 = scalar_lea.hbm %s3, %s287
          %s289 = sshll.u32 %s278, 4
          %s290 = int_to_ptr.vmem [resolvable:$true] %s289
          %295 = dma.hbm_to_vmem [thread:$0]  %s288, 2048, %s290, %s275, 256, 128, 8
        $region32: #{tpu_custom_call.1} parent=15 // pred_fallthru
          _
      $region16: #{tpu_custom_call.1} parent=5 // pred_fallthru
        _
      %p296 = scmp.le.s32.totalorder 1, %s22
      %p297 = scmp.lt.s32.totalorder %s22, 5
      %p298 = pnand %p296, %p297
      %p299 = pneg %p298
      // Predicated region
      $region33: #{tpu_custom_call.1} parent=5 // pred_check
        _
      $region34: #{tpu_custom_call.1} parent=5 // pred_check_branch
        %301 = sbr.rel (%p298) target = $region36
      $region35: #{tpu_custom_call.1} parent=5 // pred_region
        %s302 = ssub.s32 %s22, 1
        %s303 = sand.u32 %s56, 1
        %s304 = scalar_lea.sflag [#allocation6], %s303
        %s305 = sand.u32 %s56, 1
        %s306 = smul.addr %s305, 128
        %s307 = scalar_lea.vmem [#allocation5], %s306
        // Predicated region
        $region37: #{tpu_custom_call.1} parent=35 // pred_check
          %p308 = pneg %p69
        $region38: #{tpu_custom_call.1} parent=35 // pred_check_branch
          %310 = sbr.rel (%p308) target = $region40
        $region39: #{tpu_custom_call.1} parent=35 // pred_region
          %311 = dma.done %s304, 2048
        $region40: #{tpu_custom_call.1} parent=35 // pred_fallthru
          _
        %s312 = sand.u32 %s27, 1
        %s313 = scalar_lea.sflag [#allocation9], %s312
        %s314 = sand.u32 %s84, 1
        %s315 = smul.addr %s314, 128
        %s316 = scalar_lea.vmem [#allocation8], %s315
        // Predicated region
        $region41: #{tpu_custom_call.1} parent=35 // pred_check
          %p317 = pneg %p97
        $region42: #{tpu_custom_call.1} parent=35 // pred_check_branch
          %319 = sbr.rel (%p317) target = $region44
        $region43: #{tpu_custom_call.1} parent=35 // pred_region
          %320 = dma.done %s313, 2048
        $region44: #{tpu_custom_call.1} parent=35 // pred_fallthru
          _
        %s321 = sand.u32 %s27, 1
        %s322 = scalar_lea.sflag [#allocation9], %s321
        %s323 = sand.u32 %s112, 1
        %s324 = smul.addr %s323, 128
        %s325 = scalar_lea.vmem [#allocation10], %s324
        // Predicated region
        $region45: #{tpu_custom_call.1} parent=35 // pred_check
          %p326 = pneg %p125
        $region46: #{tpu_custom_call.1} parent=35 // pred_check_branch
          %328 = sbr.rel (%p326) target = $region48
        $region47: #{tpu_custom_call.1} parent=35 // pred_region
          %329 = dma.done %s322, 2048
        $region48: #{tpu_custom_call.1} parent=35 // pred_fallthru
          _
        %s330 = sand.u32 %s142, 1
        %s331 = scalar_lea.sflag [#allocation12], %s330
        %s332 = sand.u32 %s142, 1
        %s333 = smul.addr %s332, 128
        %s334 = scalar_lea.vmem [#allocation11], %s333
        // Predicated region
        $region49: #{tpu_custom_call.1} parent=35 // pred_check
          %p335 = pneg %p155
        $region50: #{tpu_custom_call.1} parent=35 // pred_check_branch
          %337 = sbr.rel (%p335) target = $region52
        $region51: #{tpu_custom_call.1} parent=35 // pred_region
          %338 = dma.done %s331, 2048
        $region52: #{tpu_custom_call.1} parent=35 // pred_fallthru
          _
        %s339 = sand.u32 %s56, 1
        %s340 = scalar_lea.sflag [#allocation6], %s339
        %s341 = sand.u32 %s56, 1
        %s342 = smul.addr %s341, 128
        %s343 = scalar_lea.vmem [#allocation5], %s342
        %p344 = pneg %p69
        %p345 = pneg %p66
        %s346 = sand.u32 %s27, 1
        %s347 = scalar_lea.sflag [#allocation9], %s346
        %s348 = sand.u32 %s84, 1
        %s349 = smul.addr %s348, 128
        %s350 = scalar_lea.vmem [#allocation8], %s349
        %p351 = pneg %p97
        %p352 = pneg %p94
        %s353 = sand.u32 %s27, 1
        %s354 = scalar_lea.sflag [#allocation9], %s353
        %s355 = sand.u32 %s112, 1
        %s356 = smul.addr %s355, 128
        %s357 = scalar_lea.vmem [#allocation10], %s356
        %p358 = pneg %p125
        %p359 = pneg %p122
        %s360 = sand.u32 %s142, 1
        %s361 = scalar_lea.sflag [#allocation12], %s360
        %s362 = sand.u32 %s142, 1
        %s363 = smul.addr %s362, 128
        %s364 = scalar_lea.vmem [#allocation11], %s363
        %p365 = pneg %p155
        %p366 = pneg %p152
        %p367 = pneg %p183
        %p368 = pneg %p180
        %s369 = sand.u32 %s170, 1
        %s370 = scalar_lea.sflag [#allocation7], %s369
        %s371 = sand.u32 %s170, 1
        %s372 = smul.addr %s371, 128
        %s373 = scalar_lea.vmem [#allocation13], %s372
        %s374 = smul.u32 16, %s33
        %s375 = smul.u32 16, %s34
        %s376 = smul.u32 16, %s34
        %s377 = smul.u32 16, %s33
        %s378 = smul.u32 16, %s33
        %p379 = scmp.eq.s32.totalorder %s34, 0
        // Predicated region
        $region53: #{tpu_custom_call.1} parent=35 // pred_check
          %p380 = pneg %p379
        $region54: #{tpu_custom_call.1} parent=35 // pred_check_branch
          %382 = sbr.rel (%p380) target = $region56
        $region55: #{tpu_custom_call.1} parent=35 // pred_region
          %vm383 = vcmask 7168
          %384 = vst.msk [vmem:[#allocation2] sm:$0xff] %vm383, -inf
          %385 = vst.msk [vmem:[#allocation2 + $0x8] sm:$0xff] %vm383, -inf
          %386 = vst.msk [vmem:[#allocation2 + $0x10] sm:$0xff] %vm383, -inf
          %387 = vst.msk [vmem:[#allocation2 + $0x18] sm:$0xff] %vm383, -inf
          %388 = vst.msk [vmem:[#allocation2 + $0x20] sm:$0xff] %vm383, -inf
          %389 = vst.msk [vmem:[#allocation2 + $0x28] sm:$0xff] %vm383, -inf
          %390 = vst.msk [vmem:[#allocation2 + $0x30] sm:$0xff] %vm383, -inf
          %391 = vst.msk [vmem:[#allocation2 + $0x38] sm:$0xff] %vm383, -inf
          %392 = vst.msk [vmem:[#allocation2 + $0x40] sm:$0xff] %vm383, -inf
          %393 = vst.msk [vmem:[#allocation2 + $0x48] sm:$0xff] %vm383, -inf
          %394 = vst.msk [vmem:[#allocation2 + $0x50] sm:$0xff] %vm383, -inf
          %395 = vst.msk [vmem:[#allocation2 + $0x58] sm:$0xff] %vm383, -inf
          %396 = vst.msk [vmem:[#allocation2 + $0x60] sm:$0xff] %vm383, -inf
          %397 = vst.msk [vmem:[#allocation2 + $0x68] sm:$0xff] %vm383, -inf
          %398 = vst.msk [vmem:[#allocation2 + $0x70] sm:$0xff] %vm383, -inf
          %399 = vst.msk [vmem:[#allocation2 + $0x78] sm:$0xff] %vm383, -inf
          %400 = vst.msk [vmem:[#allocation2 + $0x80] sm:$0xff] %vm383, -inf
          %401 = vst.msk [vmem:[#allocation2 + $0x88] sm:$0xff] %vm383, -inf
          %402 = vst.msk [vmem:[#allocation2 + $0x90] sm:$0xff] %vm383, -inf
          %403 = vst.msk [vmem:[#allocation2 + $0x98] sm:$0xff] %vm383, -inf
          %404 = vst.msk [vmem:[#allocation2 + $0xa0] sm:$0xff] %vm383, -inf
          %405 = vst.msk [vmem:[#allocation2 + $0xa8] sm:$0xff] %vm383, -inf
          %406 = vst.msk [vmem:[#allocation2 + $0xb0] sm:$0xff] %vm383, -inf
          %407 = vst.msk [vmem:[#allocation2 + $0xb8] sm:$0xff] %vm383, -inf
          %408 = vst.msk [vmem:[#allocation2 + $0xc0] sm:$0xff] %vm383, -inf
          %409 = vst.msk [vmem:[#allocation2 + $0xc8] sm:$0xff] %vm383, -inf
          %410 = vst.msk [vmem:[#allocation2 + $0xd0] sm:$0xff] %vm383, -inf
          %411 = vst.msk [vmem:[#allocation2 + $0xd8] sm:$0xff] %vm383, -inf
          %412 = vst.msk [vmem:[#allocation2 + $0xe0] sm:$0xff] %vm383, -inf
          %413 = vst.msk [vmem:[#allocation2 + $0xe8] sm:$0xff] %vm383, -inf
          %414 = vst.msk [vmem:[#allocation2 + $0xf0] sm:$0xff] %vm383, -inf
          %415 = vst.msk [vmem:[#allocation2 + $0xf8] sm:$0xff] %vm383, -inf
          %416 = vst.msk [vmem:[#allocation3] sm:$0xff] %vm383, 0.0
          %417 = vst.msk [vmem:[#allocation3 + $0x8] sm:$0xff] %vm383, 0.0
          %418 = vst.msk [vmem:[#allocation3 + $0x10] sm:$0xff] %vm383, 0.0
          %419 = vst.msk [vmem:[#allocation3 + $0x18] sm:$0xff] %vm383, 0.0
          %420 = vst.msk [vmem:[#allocation3 + $0x20] sm:$0xff] %vm383, 0.0
          %421 = vst.msk [vmem:[#allocation3 + $0x28] sm:$0xff] %vm383, 0.0
          %422 = vst.msk [vmem:[#allocation3 + $0x30] sm:$0xff] %vm383, 0.0
          %423 = vst.msk [vmem:[#allocation3 + $0x38] sm:$0xff] %vm383, 0.0
          %424 = vst.msk [vmem:[#allocation3 + $0x40] sm:$0xff] %vm383, 0.0
          %425 = vst.msk [vmem:[#allocation3 + $0x48] sm:$0xff] %vm383, 0.0
          %426 = vst.msk [vmem:[#allocation3 + $0x50] sm:$0xff] %vm383, 0.0
          %427 = vst.msk [vmem:[#allocation3 + $0x58] sm:$0xff] %vm383, 0.0
          %428 = vst.msk [vmem:[#allocation3 + $0x60] sm:$0xff] %vm383, 0.0
          %429 = vst.msk [vmem:[#allocation3 + $0x68] sm:$0xff] %vm383, 0.0
          %430 = vst.msk [vmem:[#allocation3 + $0x70] sm:$0xff] %vm383, 0.0
          %431 = vst.msk [vmem:[#allocation3 + $0x78] sm:$0xff] %vm383, 0.0
          %432 = vst.msk [vmem:[#allocation3 + $0x80] sm:$0xff] %vm383, 0.0
          %433 = vst.msk [vmem:[#allocation3 + $0x88] sm:$0xff] %vm383, 0.0
          %434 = vst.msk [vmem:[#allocation3 + $0x90] sm:$0xff] %vm383, 0.0
          %435 = vst.msk [vmem:[#allocation3 + $0x98] sm:$0xff] %vm383, 0.0
          %436 = vst.msk [vmem:[#allocation3 + $0xa0] sm:$0xff] %vm383, 0.0
          %437 = vst.msk [vmem:[#allocation3 + $0xa8] sm:$0xff] %vm383, 0.0
          %438 = vst.msk [vmem:[#allocation3 + $0xb0] sm:$0xff] %vm383, 0.0
          %439 = vst.msk [vmem:[#allocation3 + $0xb8] sm:$0xff] %vm383, 0.0
          %440 = vst.msk [vmem:[#allocation3 + $0xc0] sm:$0xff] %vm383, 0.0
          %441 = vst.msk [vmem:[#allocation3 + $0xc8] sm:$0xff] %vm383, 0.0
          %442 = vst.msk [vmem:[#allocation3 + $0xd0] sm:$0xff] %vm383, 0.0
          %443 = vst.msk [vmem:[#allocation3 + $0xd8] sm:$0xff] %vm383, 0.0
          %444 = vst.msk [vmem:[#allocation3 + $0xe0] sm:$0xff] %vm383, 0.0
          %445 = vst.msk [vmem:[#allocation3 + $0xe8] sm:$0xff] %vm383, 0.0
          %446 = vst.msk [vmem:[#allocation3 + $0xf0] sm:$0xff] %vm383, 0.0
          %447 = vst.msk [vmem:[#allocation3 + $0xf8] sm:$0xff] %vm383, 0.0
          %448 = vst [vmem:[#allocation4] sm:$0xff] 0.0
          %449 = vst [vmem:[#allocation4 + $0x8] sm:$0xff] 0.0
          %450 = vst [vmem:[#allocation4 + $0x10] sm:$0xff] 0.0
          %451 = vst [vmem:[#allocation4 + $0x18] sm:$0xff] 0.0
          %452 = vst [vmem:[#allocation4 + $0x20] sm:$0xff] 0.0
          %453 = vst [vmem:[#allocation4 + $0x28] sm:$0xff] 0.0
          %454 = vst [vmem:[#allocation4 + $0x30] sm:$0xff] 0.0
          %455 = vst [vmem:[#allocation4 + $0x38] sm:$0xff] 0.0
          %456 = vst [vmem:[#allocation4 + $0x40] sm:$0xff] 0.0
          %457 = vst [vmem:[#allocation4 + $0x48] sm:$0xff] 0.0
          %458 = vst [vmem:[#allocation4 + $0x50] sm:$0xff] 0.0
          %459 = vst [vmem:[#allocation4 + $0x58] sm:$0xff] 0.0
          %460 = vst [vmem:[#allocation4 + $0x60] sm:$0xff] 0.0
          %461 = vst [vmem:[#allocation4 + $0x68] sm:$0xff] 0.0
          %462 = vst [vmem:[#allocation4 + $0x70] sm:$0xff] 0.0
          %463 = vst [vmem:[#allocation4 + $0x78] sm:$0xff] 0.0
        $region56: #{tpu_custom_call.1} parent=35 // pred_fallthru
          _
        %v464 = vld [vmem:[%s334] sm:$0xff]
        %v465 = vld [vmem:[%s334 + $0x8] sm:$0xff]
        %v466 = vld [vmem:[%s334 + $0x10] sm:$0xff]
        %v467 = vld [vmem:[%s334 + $0x18] sm:$0xff]
        %v468 = vld [vmem:[%s334 + $0x20] sm:$0xff]
        %v469 = vld [vmem:[%s334 + $0x28] sm:$0xff]
        %v470 = vld [vmem:[%s334 + $0x30] sm:$0xff]
        %v471 = vld [vmem:[%s334 + $0x38] sm:$0xff]
        %v472 = vld [vmem:[%s334 + $0x40] sm:$0xff]
        %v473 = vld [vmem:[%s334 + $0x48] sm:$0xff]
        %v474 = vld [vmem:[%s334 + $0x50] sm:$0xff]
        %v475 = vld [vmem:[%s334 + $0x58] sm:$0xff]
        %v476 = vld [vmem:[%s334 + $0x60] sm:$0xff]
        %v477 = vld [vmem:[%s334 + $0x68] sm:$0xff]
        %v478 = vld [vmem:[%s334 + $0x70] sm:$0xff]
        %v479 = vld [vmem:[%s334 + $0x78] sm:$0xff]
        %vm480 = vcmp.eq.s32.totalorder %v464, 0
        %vm481 = vcmp.eq.s32.totalorder %v465, 0
        %vm482 = vcmp.eq.s32.totalorder %v466, 0
        %vm483 = vcmp.eq.s32.totalorder %v467, 0
        %vm484 = vcmp.eq.s32.totalorder %v468, 0
        %vm485 = vcmp.eq.s32.totalorder %v469, 0
        %vm486 = vcmp.eq.s32.totalorder %v470, 0
        %vm487 = vcmp.eq.s32.totalorder %v471, 0
        %vm488 = vcmp.eq.s32.totalorder %v472, 0
        %vm489 = vcmp.eq.s32.totalorder %v473, 0
        %vm490 = vcmp.eq.s32.totalorder %v474, 0
        %vm491 = vcmp.eq.s32.totalorder %v475, 0
        %vm492 = vcmp.eq.s32.totalorder %v476, 0
        %vm493 = vcmp.eq.s32.totalorder %v477, 0
        %vm494 = vcmp.eq.s32.totalorder %v478, 0
        %vm495 = vcmp.eq.s32.totalorder %v479, 0
        %v496 = vld [vmem:[%s307] sm:$0xff]
        %v497 = vld [vmem:[%s307 + $0x8] sm:$0xff]
        %v498 = vld [vmem:[%s307 + $0x10] sm:$0xff]
        %v499 = vld [vmem:[%s307 + $0x18] sm:$0xff]
        %v500 = vld [vmem:[%s307 + $0x20] sm:$0xff]
        %v501 = vld [vmem:[%s307 + $0x28] sm:$0xff]
        %v502 = vld [vmem:[%s307 + $0x30] sm:$0xff]
        %v503 = vld [vmem:[%s307 + $0x38] sm:$0xff]
        %v504 = vld [vmem:[%s307 + $0x40] sm:$0xff]
        %v505 = vld [vmem:[%s307 + $0x48] sm:$0xff]
        %v506 = vld [vmem:[%s307 + $0x50] sm:$0xff]
        %v507 = vld [vmem:[%s307 + $0x58] sm:$0xff]
        %v508 = vld [vmem:[%s307 + $0x60] sm:$0xff]
        %v509 = vld [vmem:[%s307 + $0x68] sm:$0xff]
        %v510 = vld [vmem:[%s307 + $0x70] sm:$0xff]
        %v511 = vld [vmem:[%s307 + $0x78] sm:$0xff]
        %v512 = vmul.f32 %v496, 0.125
        %v513 = vmul.f32 %v497, 0.125
        %v514 = vmul.f32 %v498, 0.125
        %v515 = vmul.f32 %v499, 0.125
        %v516 = vmul.f32 %v500, 0.125
        %v517 = vmul.f32 %v501, 0.125
        %v518 = vmul.f32 %v502, 0.125
        %v519 = vmul.f32 %v503, 0.125
        %v520 = vmul.f32 %v504, 0.125
        %v521 = vmul.f32 %v505, 0.125
        %v522 = vmul.f32 %v506, 0.125
        %v523 = vmul.f32 %v507, 0.125
        %v524 = vmul.f32 %v508, 0.125
        %v525 = vmul.f32 %v509, 0.125
        %v526 = vmul.f32 %v510, 0.125
        %v527 = vmul.f32 %v511, 0.125
        %v528 = vld [vmem:[%s316] sm:$0xff]
        %v529 = vld [vmem:[%s316 + $0x8] sm:$0xff]
        %v530 = vld [vmem:[%s316 + $0x10] sm:$0xff]
        %v531 = vld [vmem:[%s316 + $0x18] sm:$0xff]
        %v532 = vld [vmem:[%s316 + $0x20] sm:$0xff]
        %v533 = vld [vmem:[%s316 + $0x28] sm:$0xff]
        %v534 = vld [vmem:[%s316 + $0x30] sm:$0xff]
        %v535 = vld [vmem:[%s316 + $0x38] sm:$0xff]
        %v536 = vld [vmem:[%s316 + $0x40] sm:$0xff]
        %v537 = vld [vmem:[%s316 + $0x48] sm:$0xff]
        %v538 = vld [vmem:[%s316 + $0x50] sm:$0xff]
        %v539 = vld [vmem:[%s316 + $0x58] sm:$0xff]
        %v540 = vld [vmem:[%s316 + $0x60] sm:$0xff]
        %v541 = vld [vmem:[%s316 + $0x68] sm:$0xff]
        %v542 = vld [vmem:[%s316 + $0x70] sm:$0xff]
        %v543 = vld [vmem:[%s316 + $0x78] sm:$0xff]
        %v544 = vld [vmem:[%s325] sm:$0xff]
        %v545 = vld [vmem:[%s325 + $0x8] sm:$0xff]
        %v546 = vld [vmem:[%s325 + $0x10] sm:$0xff]
        %v547 = vld [vmem:[%s325 + $0x18] sm:$0xff]
        %v548 = vld [vmem:[%s325 + $0x20] sm:$0xff]
        %v549 = vld [vmem:[%s325 + $0x28] sm:$0xff]
        %v550 = vld [vmem:[%s325 + $0x30] sm:$0xff]
        %v551 = vld [vmem:[%s325 + $0x38] sm:$0xff]
        %v552 = vld [vmem:[%s325 + $0x40] sm:$0xff]
        %v553 = vld [vmem:[%s325 + $0x48] sm:$0xff]
        %v554 = vld [vmem:[%s325 + $0x50] sm:$0xff]
        %v555 = vld [vmem:[%s325 + $0x58] sm:$0xff]
        %v556 = vld [vmem:[%s325 + $0x60] sm:$0xff]
        %v557 = vld [vmem:[%s325 + $0x68] sm:$0xff]
        %v558 = vld [vmem:[%s325 + $0x70] sm:$0xff]
        %v559 = vld [vmem:[%s325 + $0x78] sm:$0xff]
        %vm560 = vcmask 523264
        %v562 = vsel %vm560, %v512, 0
        %v565 = vsel %vm560, %v513, 0
        %v568 = vsel %vm560, %v514, 0
        %v571 = vsel %vm560, %v515, 0
        %v574 = vsel %vm560, %v516, 0
        %v577 = vsel %vm560, %v517, 0
        %v580 = vsel %vm560, %v518, 0
        %v583 = vsel %vm560, %v519, 0
        %v586 = vsel %vm560, %v520, 0
        %v589 = vsel %vm560, %v521, 0
        %v592 = vsel %vm560, %v522, 0
        %v595 = vsel %vm560, %v523, 0
        %v598 = vsel %vm560, %v524, 0
        %v601 = vsel %vm560, %v525, 0
        %v604 = vsel %vm560, %v526, 0
        %v607 = vsel %vm560, %v527, 0
        %v610 = vsel %vm560, %v528, 0
        %v613 = vsel %vm560, %v529, 0
        %v616 = vsel %vm560, %v530, 0
        %v619 = vsel %vm560, %v531, 0
        %v622 = vsel %vm560, %v532, 0
        %v625 = vsel %vm560, %v533, 0
        %v628 = vsel %vm560, %v534, 0
        %v631 = vsel %vm560, %v535, 0
        %v634 = vsel %vm560, %v536, 0
        %v637 = vsel %vm560, %v537, 0
        %v640 = vsel %vm560, %v538, 0
        %v643 = vsel %vm560, %v539, 0
        %v646 = vsel %vm560, %v540, 0
        %v649 = vsel %vm560, %v541, 0
        %v652 = vsel %vm560, %v542, 0
        %v655 = vsel %vm560, %v543, 0
        %657 = vmatprep.subr.mxu0 0.0
        %658 = vmatpush1.xpose.msra.mxu0 %v610
        %659 = vmatprep.subr.mxu0 0.0
        %660 = vmatpush1.xpose.msra.mxu0 %v613
        %661 = vmatprep.subr.mxu0 0.0
        %662 = vmatpush1.xpose.msra.mxu0 %v616
        %663 = vmatprep.subr.mxu0 0.0
        %664 = vmatpush1.xpose.msra.mxu0 %v619
        %665 = vmatprep.subr.mxu0 0.0
        %666 = vmatpush1.xpose.msra.mxu0 %v622
        %667 = vmatprep.subr.mxu0 0.0
        %668 = vmatpush1.xpose.msra.mxu0 %v625
        %669 = vmatprep.subr.mxu0 0.0
        %670 = vmatpush1.xpose.msra.mxu0 %v628
        %671 = vmatprep.subr.mxu0 0.0
        %672 = vmatpush1.xpose.msra.mxu0 %v631
        %673 = vmatprep.subr.mxu0 0.0
        %674 = vmatpush1.xpose.msra.mxu0 %v634
        %675 = vmatprep.subr.mxu0 0.0
        %676 = vmatpush1.xpose.msra.mxu0 %v637
        %677 = vmatprep.subr.mxu0 0.0
        %678 = vmatpush1.xpose.msra.mxu0 %v640
        %679 = vmatprep.subr.mxu0 0.0
        %680 = vmatpush1.xpose.msra.mxu0 %v643
        %681 = vmatprep.subr.mxu0 0.0
        %682 = vmatpush1.xpose.msra.mxu0 %v646
        %683 = vmatprep.subr.mxu0 0.0
        %684 = vmatpush1.xpose.msra.mxu0 %v649
        %685 = vmatprep.subr.mxu0 0.0
        %686 = vmatpush1.xpose.msra.mxu0 %v652
        %687 = vmatprep.subr.mxu0 0.0
        %688 = vmatpush1.xpose.msra.mxu0 %v655
        %689 = vmatprep.subr.mxu0 0.0
        %690 = vmatpush1.xpose.msra.mxu0 0.0
        %691 = vmatprep.subr.mxu0 0.0
        %692 = vmatpush1.xpose.msra.mxu0 0.0
        %693 = vmatprep.subr.mxu0 0.0
        %694 = vmatpush1.xpose.msra.mxu0 0.0
        %695 = vmatprep.subr.mxu0 0.0
        %696 = vmatpush1.xpose.msra.mxu0 0.0
        %697 = vmatprep.subr.mxu0 0.0
        %698 = vmatpush1.xpose.msra.mxu0 0.0
        %699 = vmatprep.subr.mxu0 0.0
        %700 = vmatpush1.xpose.msra.mxu0 0.0
        %701 = vmatprep.subr.mxu0 0.0
        %702 = vmatpush1.xpose.msra.mxu0 0.0
        %703 = vmatprep.subr.mxu0 0.0
        %704 = vmatpush1.xpose.msra.mxu0 0.0
        %705 = vmatprep.subr.mxu0 0.0
        %706 = vmatpush1.xpose.msra.mxu0 0.0
        %707 = vmatprep.subr.mxu0 0.0
        %708 = vmatpush1.xpose.msra.mxu0 0.0
        %709 = vmatprep.subr.mxu0 0.0
        %710 = vmatpush1.xpose.msra.mxu0 0.0
        %711 = vmatprep.subr.mxu0 0.0
        %712 = vmatpush1.xpose.msra.mxu0 0.0
        %713 = vmatprep.subr.mxu0 0.0
        %714 = vmatpush1.xpose.msra.mxu0 0.0
        %715 = vmatprep.subr.mxu0 0.0
        %716 = vmatpush1.xpose.msra.mxu0 0.0
        %717 = vmatprep.subr.mxu0 0.0
        %718 = vmatpush1.xpose.msra.mxu0 0.0
        %719 = vmatprep.subr.mxu0 0.0
        %720 = vmatpush1.xpose.msra.mxu0 0.0
        %721 = vmatprep.mubr.f32.mxu0 0.0
        %722 = vmatmul.mubr.f32.gmra.mrb[0].mxu0 %v562
        %v723 = vpop.f32.mrb[0].mxu0
        %v724 = vadd.f32 0.0, %v723
        %v725 = vpop.f32.mrb[0].mxu0
        %726 = vmatprep.mubr.f32.mxu0 0.0
        %727 = vmatmul.mubr.f32.gmra.mrb[0].mxu0 %v565
        %v728 = vpop.f32.mrb[0].mxu0
        %v729 = vadd.f32 0.0, %v728
        %v730 = vpop.f32.mrb[0].mxu0
        %731 = vmatprep.mubr.f32.mxu0 0.0
        %732 = vmatmul.mubr.f32.gmra.mrb[0].mxu0 %v568
        %v733 = vpop.f32.mrb[0].mxu0
        %v734 = vadd.f32 0.0, %v733
        %v735 = vpop.f32.mrb[0].mxu0
        %736 = vmatprep.mubr.f32.mxu0 0.0
        %737 = vmatmul.mubr.f32.gmra.mrb[0].mxu0 %v571
        %v738 = vpop.f32.mrb[0].mxu0
        %v739 = vadd.f32 0.0, %v738
        %v740 = vpop.f32.mrb[0].mxu0
        %741 = vmatprep.mubr.f32.mxu0 0.0
        %742 = vmatmul.mubr.f32.gmra.mrb[0].mxu0 %v574
        %v743 = vpop.f32.mrb[0].mxu0
        %v744 = vadd.f32 0.0, %v743
        %v745 = vpop.f32.mrb[0].mxu0
        %746 = vmatprep.mubr.f32.mxu0 0.0
        %747 = vmatmul.mubr.f32.gmra.mrb[0].mxu0 %v577
        %v748 = vpop.f32.mrb[0].mxu0
        %v749 = vadd.f32 0.0, %v748
        %v750 = vpop.f32.mrb[0].mxu0
        %751 = vmatprep.mubr.f32.mxu0 0.0
        %752 = vmatmul.mubr.f32.gmra.mrb[0].mxu0 %v580
        %v753 = vpop.f32.mrb[0].mxu0
        %v754 = vadd.f32 0.0, %v753
        %v755 = vpop.f32.mrb[0].mxu0
        %756 = vmatprep.mubr.f32.mxu0 0.0
        %757 = vmatmul.mubr.f32.gmra.mrb[0].mxu0 %v583
        %v758 = vpop.f32.mrb[0].mxu0
        %v759 = vadd.f32 0.0, %v758
        %v760 = vpop.f32.mrb[0].mxu0
        %761 = vmatprep.mubr.f32.mxu0 0.0
        %762 = vmatmul.mubr.f32.gmra.mrb[0].mxu0 %v586
        %v763 = vpop.f32.mrb[0].mxu0
        %v764 = vadd.f32 0.0, %v763
        %v765 = vpop.f32.mrb[0].mxu0
        %766 = vmatprep.mubr.f32.mxu0 0.0
        %767 = vmatmul.mubr.f32.gmra.mrb[0].mxu0 %v589
        %v768 = vpop.f32.mrb[0].mxu0
        %v769 = vadd.f32 0.0, %v768
        %v770 = vpop.f32.mrb[0].mxu0
        %771 = vmatprep.mubr.f32.mxu0 0.0
        %772 = vmatmul.mubr.f32.gmra.mrb[0].mxu0 %v592
        %v773 = vpop.f32.mrb[0].mxu0
        %v774 = vadd.f32 0.0, %v773
        %v775 = vpop.f32.mrb[0].mxu0
        %776 = vmatprep.mubr.f32.mxu0 0.0
        %777 = vmatmul.mubr.f32.gmra.mrb[0].mxu0 %v595
        %v778 = vpop.f32.mrb[0].mxu0
        %v779 = vadd.f32 0.0, %v778
        %v780 = vpop.f32.mrb[0].mxu0
        %781 = vmatprep.mubr.f32.mxu0 0.0
        %782 = vmatmul.mubr.f32.gmra.mrb[0].mxu0 %v598
        %v783 = vpop.f32.mrb[0].mxu0
        %v784 = vadd.f32 0.0, %v783
        %v785 = vpop.f32.mrb[0].mxu0
        %786 = vmatprep.mubr.f32.mxu0 0.0
        %787 = vmatmul.mubr.f32.gmra.mrb[0].mxu0 %v601
        %v788 = vpop.f32.mrb[0].mxu0
        %v789 = vadd.f32 0.0, %v788
        %v790 = vpop.f32.mrb[0].mxu0
        %791 = vmatprep.mubr.f32.mxu0 0.0
        %792 = vmatmul.mubr.f32.gmra.mrb[0].mxu0 %v604
        %v793 = vpop.f32.mrb[0].mxu0
        %v794 = vadd.f32 0.0, %v793
        %v795 = vpop.f32.mrb[0].mxu0
        %796 = vmatprep.mubr.f32.mxu0 0.0
        %797 = vmatmul.mubr.f32.gmra.mrb[0].mxu0 %v607
        %v798 = vpop.f32.mrb[0].mxu0
        %v799 = vadd.f32 0.0, %v798
        %v800 = vpop.f32.mrb[0].mxu0
        %801 = vdwg.mxu0
        %v802 = vsel %vm480, -1e+09, %v724
        %v803 = vsel %vm481, -1e+09, %v729
        %v804 = vsel %vm482, -1e+09, %v734
        %v805 = vsel %vm483, -1e+09, %v739
        %v806 = vsel %vm484, -1e+09, %v744
        %v807 = vsel %vm485, -1e+09, %v749
        %v808 = vsel %vm486, -1e+09, %v754
        %v809 = vsel %vm487, -1e+09, %v759
        %v810 = vsel %vm488, -1e+09, %v764
        %v811 = vsel %vm489, -1e+09, %v769
        %v812 = vsel %vm490, -1e+09, %v774
        %v813 = vsel %vm491, -1e+09, %v779
        %v814 = vsel %vm492, -1e+09, %v784
        %v815 = vsel %vm493, -1e+09, %v789
        %v816 = vsel %vm494, -1e+09, %v794
        %v817 = vsel %vm495, -1e+09, %v799
        %v818 = vld [vmem:[#allocation2] sm:$0xff]
        %v819 = vld [vmem:[#allocation2 + $0x8] sm:$0xff]
        %v820 = vld [vmem:[#allocation2 + $0x10] sm:$0xff]
        %v821 = vld [vmem:[#allocation2 + $0x18] sm:$0xff]
        %v822 = vld [vmem:[#allocation2 + $0x20] sm:$0xff]
        %v823 = vld [vmem:[#allocation2 + $0x28] sm:$0xff]
        %v824 = vld [vmem:[#allocation2 + $0x30] sm:$0xff]
        %v825 = vld [vmem:[#allocation2 + $0x38] sm:$0xff]
        %v826 = vld [vmem:[#allocation2 + $0x40] sm:$0xff]
        %v827 = vld [vmem:[#allocation2 + $0x48] sm:$0xff]
        %v828 = vld [vmem:[#allocation2 + $0x50] sm:$0xff]
        %v829 = vld [vmem:[#allocation2 + $0x58] sm:$0xff]
        %v830 = vld [vmem:[#allocation2 + $0x60] sm:$0xff]
        %v831 = vld [vmem:[#allocation2 + $0x68] sm:$0xff]
        %v832 = vld [vmem:[#allocation2 + $0x70] sm:$0xff]
        %v833 = vld [vmem:[#allocation2 + $0x78] sm:$0xff]
        %834 = vmax.xlane.f32.xlu0 %v802
        %v835 = vpop.xlane.xlu0 %834
        %836 = vmax.xlane.f32.xlu0 %v803
        %v837 = vpop.xlane.xlu0 %836
        %838 = vmax.xlane.f32.xlu0 %v804
        %v839 = vpop.xlane.xlu0 %838
        %840 = vmax.xlane.f32.xlu0 %v805
        %v841 = vpop.xlane.xlu0 %840
        %842 = vmax.xlane.f32.xlu0 %v806
        %v843 = vpop.xlane.xlu0 %842
        %844 = vmax.xlane.f32.xlu0 %v807
        %v845 = vpop.xlane.xlu0 %844
        %846 = vmax.xlane.f32.xlu0 %v808
        %v847 = vpop.xlane.xlu0 %846
        %848 = vmax.xlane.f32.xlu0 %v809
        %v849 = vpop.xlane.xlu0 %848
        %850 = vmax.xlane.f32.xlu0 %v810
        %v851 = vpop.xlane.xlu0 %850
        %852 = vmax.xlane.f32.xlu0 %v811
        %v853 = vpop.xlane.xlu0 %852
        %854 = vmax.xlane.f32.xlu0 %v812
        %v855 = vpop.xlane.xlu0 %854
        %856 = vmax.xlane.f32.xlu0 %v813
        %v857 = vpop.xlane.xlu0 %856
        %858 = vmax.xlane.f32.xlu0 %v814
        %v859 = vpop.xlane.xlu0 %858
        %860 = vmax.xlane.f32.xlu0 %v815
        %v861 = vpop.xlane.xlu0 %860
        %862 = vmax.xlane.f32.xlu0 %v816
        %v863 = vpop.xlane.xlu0 %862
        %864 = vmax.xlane.f32.xlu0 %v817
        %v865 = vpop.xlane.xlu0 %864
        %v866 = vmax.f32 %v818, %v835
        %v867 = vmax.f32 %v819, %v837
        %v868 = vmax.f32 %v820, %v839
        %v869 = vmax.f32 %v821, %v841
        %v870 = vmax.f32 %v822, %v843
        %v871 = vmax.f32 %v823, %v845
        %v872 = vmax.f32 %v824, %v847
        %v873 = vmax.f32 %v825, %v849
        %v874 = vmax.f32 %v826, %v851
        %v875 = vmax.f32 %v827, %v853
        %v876 = vmax.f32 %v828, %v855
        %v877 = vmax.f32 %v829, %v857
        %v878 = vmax.f32 %v830, %v859
        %v879 = vmax.f32 %v831, %v861
        %v880 = vmax.f32 %v832, %v863
        %v881 = vmax.f32 %v833, %v865
        %v882 = vsub.f32 %v818, %v866
        %v883 = vsub.f32 %v819, %v867
        %v884 = vsub.f32 %v820, %v868
        %v885 = vsub.f32 %v821, %v869
        %v886 = vsub.f32 %v822, %v870
        %v887 = vsub.f32 %v823, %v871
        %v888 = vsub.f32 %v824, %v872
        %v889 = vsub.f32 %v825, %v873
        %v890 = vsub.f32 %v826, %v874
        %v891 = vsub.f32 %v827, %v875
        %v892 = vsub.f32 %v828, %v876
        %v893 = vsub.f32 %v829, %v877
        %v894 = vsub.f32 %v830, %v878
        %v895 = vsub.f32 %v831, %v879
        %v896 = vsub.f32 %v832, %v880
        %v897 = vsub.f32 %v833, %v881
        %v898 = vmul.f32 %v882, 1.442695
        %v899 = vpow.pop %v898
        %v900 = vmul.f32 %v883, 1.442695
        %v901 = vpow.pop %v900
        %v902 = vmul.f32 %v884, 1.442695
        %v903 = vpow.pop %v902
        %v904 = vmul.f32 %v885, 1.442695
        %v905 = vpow.pop %v904
        %v906 = vmul.f32 %v886, 1.442695
        %v907 = vpow.pop %v906
        %v908 = vmul.f32 %v887, 1.442695
        %v909 = vpow.pop %v908
        %v910 = vmul.f32 %v888, 1.442695
        %v911 = vpow.pop %v910
        %v912 = vmul.f32 %v889, 1.442695
        %v913 = vpow.pop %v912
        %v914 = vmul.f32 %v890, 1.442695
        %v915 = vpow.pop %v914
        %v916 = vmul.f32 %v891, 1.442695
        %v917 = vpow.pop %v916
        %v918 = vmul.f32 %v892, 1.442695
        %v919 = vpow.pop %v918
        %v920 = vmul.f32 %v893, 1.442695
        %v921 = vpow.pop %v920
        %v922 = vmul.f32 %v894, 1.442695
        %v923 = vpow.pop %v922
        %v924 = vmul.f32 %v895, 1.442695
        %v925 = vpow.pop %v924
        %v926 = vmul.f32 %v896, 1.442695
        %v927 = vpow.pop %v926
        %v928 = vmul.f32 %v897, 1.442695
        %v929 = vpow.pop %v928
        %931 = vset.pattern.permute.xlu0 0
        %932 = vperm.xlu0 %931, %v866
        %v933 = vpop.permute.xlu0 %932
        %936 = vset.pattern.permute.xlu0 0
        %937 = vperm.xlu0 %936, %v867
        %v938 = vpop.permute.xlu0 %937
        %941 = vset.pattern.permute.xlu0 0
        %942 = vperm.xlu0 %941, %v868
        %v943 = vpop.permute.xlu0 %942
        %946 = vset.pattern.permute.xlu0 0
        %947 = vperm.xlu0 %946, %v869
        %v948 = vpop.permute.xlu0 %947
        %951 = vset.pattern.permute.xlu0 0
        %952 = vperm.xlu0 %951, %v870
        %v953 = vpop.permute.xlu0 %952
        %956 = vset.pattern.permute.xlu0 0
        %957 = vperm.xlu0 %956, %v871
        %v958 = vpop.permute.xlu0 %957
        %961 = vset.pattern.permute.xlu0 0
        %962 = vperm.xlu0 %961, %v872
        %v963 = vpop.permute.xlu0 %962
        %966 = vset.pattern.permute.xlu0 0
        %967 = vperm.xlu0 %966, %v873
        %v968 = vpop.permute.xlu0 %967
        %971 = vset.pattern.permute.xlu0 0
        %972 = vperm.xlu0 %971, %v874
        %v973 = vpop.permute.xlu0 %972
        %976 = vset.pattern.permute.xlu0 0
        %977 = vperm.xlu0 %976, %v875
        %v978 = vpop.permute.xlu0 %977
        %981 = vset.pattern.permute.xlu0 0
        %982 = vperm.xlu0 %981, %v876
        %v983 = vpop.permute.xlu0 %982
        %986 = vset.pattern.permute.xlu0 0
        %987 = vperm.xlu0 %986, %v877
        %v988 = vpop.permute.xlu0 %987
        %991 = vset.pattern.permute.xlu0 0
        %992 = vperm.xlu0 %991, %v878
        %v993 = vpop.permute.xlu0 %992
        %996 = vset.pattern.permute.xlu0 0
        %997 = vperm.xlu0 %996, %v879
        %v998 = vpop.permute.xlu0 %997
        %1001 = vset.pattern.permute.xlu0 0
        %1002 = vperm.xlu0 %1001, %v880
        %v1003 = vpop.permute.xlu0 %1002
        %1006 = vset.pattern.permute.xlu0 0
        %1007 = vperm.xlu0 %1006, %v881
        %v1008 = vpop.permute.xlu0 %1007
        %v1010 = vsub.f32 %v802, %v933
        %v1011 = vsub.f32 %v803, %v938
        %v1012 = vsub.f32 %v804, %v943
        %v1013 = vsub.f32 %v805, %v948
        %v1014 = vsub.f32 %v806, %v953
        %v1015 = vsub.f32 %v807, %v958
        %v1016 = vsub.f32 %v808, %v963
        %v1017 = vsub.f32 %v809, %v968
        %v1018 = vsub.f32 %v810, %v973
        %v1019 = vsub.f32 %v811, %v978
        %v1020 = vsub.f32 %v812, %v983
        %v1021 = vsub.f32 %v813, %v988
        %v1022 = vsub.f32 %v814, %v993
        %v1023 = vsub.f32 %v815, %v998
        %v1024 = vsub.f32 %v816, %v1003
        %v1025 = vsub.f32 %v817, %v1008
        %v1026 = vmul.f32 %v1010, 1.442695
        %v1027 = vpow.pop %v1026
        %v1028 = vmul.f32 %v1011, 1.442695
        %v1029 = vpow.pop %v1028
        %v1030 = vmul.f32 %v1012, 1.442695
        %v1031 = vpow.pop %v1030
        %v1032 = vmul.f32 %v1013, 1.442695
        %v1033 = vpow.pop %v1032
        %v1034 = vmul.f32 %v1014, 1.442695
        %v1035 = vpow.pop %v1034
        %v1036 = vmul.f32 %v1015, 1.442695
        %v1037 = vpow.pop %v1036
        %v1038 = vmul.f32 %v1016, 1.442695
        %v1039 = vpow.pop %v1038
        %v1040 = vmul.f32 %v1017, 1.442695
        %v1041 = vpow.pop %v1040
        %v1042 = vmul.f32 %v1018, 1.442695
        %v1043 = vpow.pop %v1042
        %v1044 = vmul.f32 %v1019, 1.442695
        %v1045 = vpow.pop %v1044
        %v1046 = vmul.f32 %v1020, 1.442695
        %v1047 = vpow.pop %v1046
        %v1048 = vmul.f32 %v1021, 1.442695
        %v1049 = vpow.pop %v1048
        %v1050 = vmul.f32 %v1022, 1.442695
        %v1051 = vpow.pop %v1050
        %v1052 = vmul.f32 %v1023, 1.442695
        %v1053 = vpow.pop %v1052
        %v1054 = vmul.f32 %v1024, 1.442695
        %v1055 = vpow.pop %v1054
        %v1056 = vmul.f32 %v1025, 1.442695
        %v1057 = vpow.pop %v1056
        %v1058 = vld [vmem:[#allocation3] sm:$0xff]
        %v1059 = vld [vmem:[#allocation3 + $0x8] sm:$0xff]
        %v1060 = vld [vmem:[#allocation3 + $0x10] sm:$0xff]
        %v1061 = vld [vmem:[#allocation3 + $0x18] sm:$0xff]
        %v1062 = vld [vmem:[#allocation3 + $0x20] sm:$0xff]
        %v1063 = vld [vmem:[#allocation3 + $0x28] sm:$0xff]
        %v1064 = vld [vmem:[#allocation3 + $0x30] sm:$0xff]
        %v1065 = vld [vmem:[#allocation3 + $0x38] sm:$0xff]
        %v1066 = vld [vmem:[#allocation3 + $0x40] sm:$0xff]
        %v1067 = vld [vmem:[#allocation3 + $0x48] sm:$0xff]
        %v1068 = vld [vmem:[#allocation3 + $0x50] sm:$0xff]
        %v1069 = vld [vmem:[#allocation3 + $0x58] sm:$0xff]
        %v1070 = vld [vmem:[#allocation3 + $0x60] sm:$0xff]
        %v1071 = vld [vmem:[#allocation3 + $0x68] sm:$0xff]
        %v1072 = vld [vmem:[#allocation3 + $0x70] sm:$0xff]
        %v1073 = vld [vmem:[#allocation3 + $0x78] sm:$0xff]
        %v1074 = vmul.f32 %v899, %v1058
        %v1075 = vmul.f32 %v901, %v1059
        %v1076 = vmul.f32 %v903, %v1060
        %v1077 = vmul.f32 %v905, %v1061
        %v1078 = vmul.f32 %v907, %v1062
        %v1079 = vmul.f32 %v909, %v1063
        %v1080 = vmul.f32 %v911, %v1064
        %v1081 = vmul.f32 %v913, %v1065
        %v1082 = vmul.f32 %v915, %v1066
        %v1083 = vmul.f32 %v917, %v1067
        %v1084 = vmul.f32 %v919, %v1068
        %v1085 = vmul.f32 %v921, %v1069
        %v1086 = vmul.f32 %v923, %v1070
        %v1087 = vmul.f32 %v925, %v1071
        %v1088 = vmul.f32 %v927, %v1072
        %v1089 = vmul.f32 %v929, %v1073
        %1090 = vadd.xlane.f32.xlu0 %v1027
        %v1091 = vpop.xlane.xlu0 %1090
        %1092 = vadd.xlane.f32.xlu0 %v1029
        %v1093 = vpop.xlane.xlu0 %1092
        %1094 = vadd.xlane.f32.xlu0 %v1031
        %v1095 = vpop.xlane.xlu0 %1094
        %1096 = vadd.xlane.f32.xlu0 %v1033
        %v1097 = vpop.xlane.xlu0 %1096
        %1098 = vadd.xlane.f32.xlu0 %v1035
        %v1099 = vpop.xlane.xlu0 %1098
        %1100 = vadd.xlane.f32.xlu0 %v1037
        %v1101 = vpop.xlane.xlu0 %1100
        %1102 = vadd.xlane.f32.xlu0 %v1039
        %v1103 = vpop.xlane.xlu0 %1102
        %1104 = vadd.xlane.f32.xlu0 %v1041
        %v1105 = vpop.xlane.xlu0 %1104
        %1106 = vadd.xlane.f32.xlu0 %v1043
        %v1107 = vpop.xlane.xlu0 %1106
        %1108 = vadd.xlane.f32.xlu0 %v1045
        %v1109 = vpop.xlane.xlu0 %1108
        %1110 = vadd.xlane.f32.xlu0 %v1047
        %v1111 = vpop.xlane.xlu0 %1110
        %1112 = vadd.xlane.f32.xlu0 %v1049
        %v1113 = vpop.xlane.xlu0 %1112
        %1114 = vadd.xlane.f32.xlu0 %v1051
        %v1115 = vpop.xlane.xlu0 %1114
        %1116 = vadd.xlane.f32.xlu0 %v1053
        %v1117 = vpop.xlane.xlu0 %1116
        %1118 = vadd.xlane.f32.xlu0 %v1055
        %v1119 = vpop.xlane.xlu0 %1118
        %1120 = vadd.xlane.f32.xlu0 %v1057
        %v1121 = vpop.xlane.xlu0 %1120
        %v1122 = vadd.f32 %v1074, %v1091
        %v1123 = vadd.f32 %v1075, %v1093
        %v1124 = vadd.f32 %v1076, %v1095
        %v1125 = vadd.f32 %v1077, %v1097
        %v1126 = vadd.f32 %v1078, %v1099
        %v1127 = vadd.f32 %v1079, %v1101
        %v1128 = vadd.f32 %v1080, %v1103
        %v1129 = vadd.f32 %v1081, %v1105
        %v1130 = vadd.f32 %v1082, %v1107
        %v1131 = vadd.f32 %v1083, %v1109
        %v1132 = vadd.f32 %v1084, %v1111
        %v1133 = vadd.f32 %v1085, %v1113
        %v1134 = vadd.f32 %v1086, %v1115
        %v1135 = vadd.f32 %v1087, %v1117
        %v1136 = vadd.f32 %v1088, %v1119
        %v1137 = vadd.f32 %v1089, %v1121
        %vm1138 = vcmask 7168
        %1139 = vst.msk [vmem:[#allocation3] sm:$0xff] %vm1138, %v1122
        %1140 = vst.msk [vmem:[#allocation3 + $0x8] sm:$0xff] %vm1138, %v1123
        %1141 = vst.msk [vmem:[#allocation3 + $0x10] sm:$0xff] %vm1138, %v1124
        %1142 = vst.msk [vmem:[#allocation3 + $0x18] sm:$0xff] %vm1138, %v1125
        %1143 = vst.msk [vmem:[#allocation3 + $0x20] sm:$0xff] %vm1138, %v1126
        %1144 = vst.msk [vmem:[#allocation3 + $0x28] sm:$0xff] %vm1138, %v1127
        %1145 = vst.msk [vmem:[#allocation3 + $0x30] sm:$0xff] %vm1138, %v1128
        %1146 = vst.msk [vmem:[#allocation3 + $0x38] sm:$0xff] %vm1138, %v1129
        %1147 = vst.msk [vmem:[#allocation3 + $0x40] sm:$0xff] %vm1138, %v1130
        %1148 = vst.msk [vmem:[#allocation3 + $0x48] sm:$0xff] %vm1138, %v1131
        %1149 = vst.msk [vmem:[#allocation3 + $0x50] sm:$0xff] %vm1138, %v1132
        %1150 = vst.msk [vmem:[#allocation3 + $0x58] sm:$0xff] %vm1138, %v1133
        %1151 = vst.msk [vmem:[#allocation3 + $0x60] sm:$0xff] %vm1138, %v1134
        %1152 = vst.msk [vmem:[#allocation3 + $0x68] sm:$0xff] %vm1138, %v1135
        %1153 = vst.msk [vmem:[#allocation3 + $0x70] sm:$0xff] %vm1138, %v1136
        %1154 = vst.msk [vmem:[#allocation3 + $0x78] sm:$0xff] %vm1138, %v1137
        %v1155 = vld [vmem:[#allocation4] sm:$0xff]
        %v1156 = vld [vmem:[#allocation4 + $0x8] sm:$0xff]
        %v1157 = vld [vmem:[#allocation4 + $0x10] sm:$0xff]
        %v1158 = vld [vmem:[#allocation4 + $0x18] sm:$0xff]
        %v1159 = vld [vmem:[#allocation4 + $0x20] sm:$0xff]
        %v1160 = vld [vmem:[#allocation4 + $0x28] sm:$0xff]
        %v1161 = vld [vmem:[#allocation4 + $0x30] sm:$0xff]
        %v1162 = vld [vmem:[#allocation4 + $0x38] sm:$0xff]
        %v1163 = vld [vmem:[#allocation4 + $0x40] sm:$0xff]
        %v1164 = vld [vmem:[#allocation4 + $0x48] sm:$0xff]
        %v1165 = vld [vmem:[#allocation4 + $0x50] sm:$0xff]
        %v1166 = vld [vmem:[#allocation4 + $0x58] sm:$0xff]
        %v1167 = vld [vmem:[#allocation4 + $0x60] sm:$0xff]
        %v1168 = vld [vmem:[#allocation4 + $0x68] sm:$0xff]
        %v1169 = vld [vmem:[#allocation4 + $0x70] sm:$0xff]
        %v1170 = vld [vmem:[#allocation4 + $0x78] sm:$0xff]
        %1172 = vset.pattern.permute.xlu0 0
        %1173 = vperm.xlu0 %1172, %v899
        %v1174 = vpop.permute.xlu0 %1173
        %1177 = vset.pattern.permute.xlu0 0
        %1178 = vperm.xlu0 %1177, %v901
        %v1179 = vpop.permute.xlu0 %1178
        %1182 = vset.pattern.permute.xlu0 0
        %1183 = vperm.xlu0 %1182, %v903
        %v1184 = vpop.permute.xlu0 %1183
        %1187 = vset.pattern.permute.xlu0 0
        %1188 = vperm.xlu0 %1187, %v905
        %v1189 = vpop.permute.xlu0 %1188
        %1192 = vset.pattern.permute.xlu0 0
        %1193 = vperm.xlu0 %1192, %v907
        %v1194 = vpop.permute.xlu0 %1193
        %1197 = vset.pattern.permute.xlu0 0
        %1198 = vperm.xlu0 %1197, %v909
        %v1199 = vpop.permute.xlu0 %1198
        %1202 = vset.pattern.permute.xlu0 0
        %1203 = vperm.xlu0 %1202, %v911
        %v1204 = vpop.permute.xlu0 %1203
        %1207 = vset.pattern.permute.xlu0 0
        %1208 = vperm.xlu0 %1207, %v913
        %v1209 = vpop.permute.xlu0 %1208
        %1212 = vset.pattern.permute.xlu0 0
        %1213 = vperm.xlu0 %1212, %v915
        %v1214 = vpop.permute.xlu0 %1213
        %1217 = vset.pattern.permute.xlu0 0
        %1218 = vperm.xlu0 %1217, %v917
        %v1219 = vpop.permute.xlu0 %1218
        %1222 = vset.pattern.permute.xlu0 0
        %1223 = vperm.xlu0 %1222, %v919
        %v1224 = vpop.permute.xlu0 %1223
        %1227 = vset.pattern.permute.xlu0 0
        %1228 = vperm.xlu0 %1227, %v921
        %v1229 = vpop.permute.xlu0 %1228
        %1232 = vset.pattern.permute.xlu0 0
        %1233 = vperm.xlu0 %1232, %v923
        %v1234 = vpop.permute.xlu0 %1233
        %1237 = vset.pattern.permute.xlu0 0
        %1238 = vperm.xlu0 %1237, %v925
        %v1239 = vpop.permute.xlu0 %1238
        %1242 = vset.pattern.permute.xlu0 0
        %1243 = vperm.xlu0 %1242, %v927
        %v1244 = vpop.permute.xlu0 %1243
        %1247 = vset.pattern.permute.xlu0 0
        %1248 = vperm.xlu0 %1247, %v929
        %v1249 = vpop.permute.xlu0 %1248
        %v1251 = vmul.f32 %v1174, %v1155
        %v1252 = vmul.f32 %v1179, %v1156
        %v1253 = vmul.f32 %v1184, %v1157
        %v1254 = vmul.f32 %v1189, %v1158
        %v1255 = vmul.f32 %v1194, %v1159
        %v1256 = vmul.f32 %v1199, %v1160
        %v1257 = vmul.f32 %v1204, %v1161
        %v1258 = vmul.f32 %v1209, %v1162
        %v1259 = vmul.f32 %v1214, %v1163
        %v1260 = vmul.f32 %v1219, %v1164
        %v1261 = vmul.f32 %v1224, %v1165
        %v1262 = vmul.f32 %v1229, %v1166
        %v1263 = vmul.f32 %v1234, %v1167
        %v1264 = vmul.f32 %v1239, %v1168
        %v1265 = vmul.f32 %v1244, %v1169
        %v1266 = vmul.f32 %v1249, %v1170
        %1267 = vmatprep.subr.mxu0 0.0
        %1268 = vmatpush1.msra.mxu0 %v544
        %1269 = vmatprep.subr.mxu0 0.0
        %1270 = vmatpush1.msra.mxu0 %v545
        %1271 = vmatprep.subr.mxu0 0.0
        %1272 = vmatpush1.msra.mxu0 %v546
        %1273 = vmatprep.subr.mxu0 0.0
        %1274 = vmatpush1.msra.mxu0 %v547
        %1275 = vmatprep.subr.mxu0 0.0
        %1276 = vmatpush1.msra.mxu0 %v548
        %1277 = vmatprep.subr.mxu0 0.0
        %1278 = vmatpush1.msra.mxu0 %v549
        %1279 = vmatprep.subr.mxu0 0.0
        %1280 = vmatpush1.msra.mxu0 %v550
        %1281 = vmatprep.subr.mxu0 0.0
        %1282 = vmatpush1.msra.mxu0 %v551
        %1283 = vmatprep.subr.mxu0 0.0
        %1284 = vmatpush1.msra.mxu0 %v552
        %1285 = vmatprep.subr.mxu0 0.0
        %1286 = vmatpush1.msra.mxu0 %v553
        %1287 = vmatprep.subr.mxu0 0.0
        %1288 = vmatpush1.msra.mxu0 %v554
        %1289 = vmatprep.subr.mxu0 0.0
        %1290 = vmatpush1.msra.mxu0 %v555
        %1291 = vmatprep.subr.mxu0 0.0
        %1292 = vmatpush1.msra.mxu0 %v556
        %1293 = vmatprep.subr.mxu0 0.0
        %1294 = vmatpush1.msra.mxu0 %v557
        %1295 = vmatprep.subr.mxu0 0.0
        %1296 = vmatpush1.msra.mxu0 %v558
        %1297 = vmatprep.subr.mxu0 0.0
        %1298 = vmatpush1.msra.mxu0 %v559
        %1299 = vmatprep.subr.mxu0 0.0
        %1300 = vmatpush1.msra.mxu0 0.0
        %1301 = vmatprep.subr.mxu0 0.0
        %1302 = vmatpush1.msra.mxu0 0.0
        %1303 = vmatprep.subr.mxu0 0.0
        %1304 = vmatpush1.msra.mxu0 0.0
        %1305 = vmatprep.subr.mxu0 0.0
        %1306 = vmatpush1.msra.mxu0 0.0
        %1307 = vmatprep.subr.mxu0 0.0
        %1308 = vmatpush1.msra.mxu0 0.0
        %1309 = vmatprep.subr.mxu0 0.0
        %1310 = vmatpush1.msra.mxu0 0.0
        %1311 = vmatprep.subr.mxu0 0.0
        %1312 = vmatpush1.msra.mxu0 0.0
        %1313 = vmatprep.subr.mxu0 0.0
        %1314 = vmatpush1.msra.mxu0 0.0
        %1315 = vmatprep.subr.mxu0 0.0
        %1316 = vmatpush1.msra.mxu0 0.0
        %1317 = vmatprep.subr.mxu0 0.0
        %1318 = vmatpush1.msra.mxu0 0.0
        %1319 = vmatprep.subr.mxu0 0.0
        %1320 = vmatpush1.msra.mxu0 0.0
        %1321 = vmatprep.subr.mxu0 0.0
        %1322 = vmatpush1.msra.mxu0 0.0
        %1323 = vmatprep.subr.mxu0 0.0
        %1324 = vmatpush1.msra.mxu0 0.0
        %1325 = vmatprep.subr.mxu0 0.0
        %1326 = vmatpush1.msra.mxu0 0.0
        %1327 = vmatprep.subr.mxu0 0.0
        %1328 = vmatpush1.msra.mxu0 0.0
        %1329 = vmatprep.subr.mxu0 0.0
        %1330 = vmatpush1.msra.mxu0 0.0
        %1331 = vmatprep.mubr.f32.mxu0 0.0
        %1332 = vmatmul.mubr.f32.gmra.mrb[0].mxu0 %v1027
        %v1333 = vpop.f32.mrb[0].mxu0
        %v1334 = vadd.f32 0.0, %v1333
        %v1335 = vpop.f32.mrb[0].mxu0
        %1336 = vmatprep.mubr.f32.mxu0 0.0
        %1337 = vmatmul.mubr.f32.gmra.mrb[0].mxu0 %v1029
        %v1338 = vpop.f32.mrb[0].mxu0
        %v1339 = vadd.f32 0.0, %v1338
        %v1340 = vpop.f32.mrb[0].mxu0
        %1341 = vmatprep.mubr.f32.mxu0 0.0
        %1342 = vmatmul.mubr.f32.gmra.mrb[0].mxu0 %v1031
        %v1343 = vpop.f32.mrb[0].mxu0
        %v1344 = vadd.f32 0.0, %v1343
        %v1345 = vpop.f32.mrb[0].mxu0
        %1346 = vmatprep.mubr.f32.mxu0 0.0
        %1347 = vmatmul.mubr.f32.gmra.mrb[0].mxu0 %v1033
        %v1348 = vpop.f32.mrb[0].mxu0
        %v1349 = vadd.f32 0.0, %v1348
        %v1350 = vpop.f32.mrb[0].mxu0
        %1351 = vmatprep.mubr.f32.mxu0 0.0
        %1352 = vmatmul.mubr.f32.gmra.mrb[0].mxu0 %v1035
        %v1353 = vpop.f32.mrb[0].mxu0
        %v1354 = vadd.f32 0.0, %v1353
        %v1355 = vpop.f32.mrb[0].mxu0
        %1356 = vmatprep.mubr.f32.mxu0 0.0
        %1357 = vmatmul.mubr.f32.gmra.mrb[0].mxu0 %v1037
        %v1358 = vpop.f32.mrb[0].mxu0
        %v1359 = vadd.f32 0.0, %v1358
        %v1360 = vpop.f32.mrb[0].mxu0
        %1361 = vmatprep.mubr.f32.mxu0 0.0
        %1362 = vmatmul.mubr.f32.gmra.mrb[0].mxu0 %v1039
        %v1363 = vpop.f32.mrb[0].mxu0
        %v1364 = vadd.f32 0.0, %v1363
        %v1365 = vpop.f32.mrb[0].mxu0
        %1366 = vmatprep.mubr.f32.mxu0 0.0
        %1367 = vmatmul.mubr.f32.gmra.mrb[0].mxu0 %v1041
        %v1368 = vpop.f32.mrb[0].mxu0
        %v1369 = vadd.f32 0.0, %v1368
        %v1370 = vpop.f32.mrb[0].mxu0
        %1371 = vmatprep.mubr.f32.mxu0 0.0
        %1372 = vmatmul.mubr.f32.gmra.mrb[0].mxu0 %v1043
        %v1373 = vpop.f32.mrb[0].mxu0
        %v1374 = vadd.f32 0.0, %v1373
        %v1375 = vpop.f32.mrb[0].mxu0
        %1376 = vmatprep.mubr.f32.mxu0 0.0
        %1377 = vmatmul.mubr.f32.gmra.mrb[0].mxu0 %v1045
        %v1378 = vpop.f32.mrb[0].mxu0
        %v1379 = vadd.f32 0.0, %v1378
        %v1380 = vpop.f32.mrb[0].mxu0
        %1381 = vmatprep.mubr.f32.mxu0 0.0
        %1382 = vmatmul.mubr.f32.gmra.mrb[0].mxu0 %v1047
        %v1383 = vpop.f32.mrb[0].mxu0
        %v1384 = vadd.f32 0.0, %v1383
        %v1385 = vpop.f32.mrb[0].mxu0
        %1386 = vmatprep.mubr.f32.mxu0 0.0
        %1387 = vmatmul.mubr.f32.gmra.mrb[0].mxu0 %v1049
        %v1388 = vpop.f32.mrb[0].mxu0
        %v1389 = vadd.f32 0.0, %v1388
        %v1390 = vpop.f32.mrb[0].mxu0
        %1391 = vmatprep.mubr.f32.mxu0 0.0
        %1392 = vmatmul.mubr.f32.gmra.mrb[0].mxu0 %v1051
        %v1393 = vpop.f32.mrb[0].mxu0
        %v1394 = vadd.f32 0.0, %v1393
        %v1395 = vpop.f32.mrb[0].mxu0
        %1396 = vmatprep.mubr.f32.mxu0 0.0
        %1397 = vmatmul.mubr.f32.gmra.mrb[0].mxu0 %v1053
        %v1398 = vpop.f32.mrb[0].mxu0
        %v1399 = vadd.f32 0.0, %v1398
        %v1400 = vpop.f32.mrb[0].mxu0
        %1401 = vmatprep.mubr.f32.mxu0 0.0
        %1402 = vmatmul.mubr.f32.gmra.mrb[0].mxu0 %v1055
        %v1403 = vpop.f32.mrb[0].mxu0
        %v1404 = vadd.f32 0.0, %v1403
        %v1405 = vpop.f32.mrb[0].mxu0
        %1406 = vmatprep.mubr.f32.mxu0 0.0
        %1407 = vmatmul.mubr.f32.gmra.mrb[0].mxu0 %v1057
        %v1408 = vpop.f32.mrb[0].mxu0
        %v1409 = vadd.f32 0.0, %v1408
        %v1410 = vpop.f32.mrb[0].mxu0
        %1411 = vdwg.mxu0
        %v1412 = vadd.f32 %v1251, %v1334
        %v1413 = vadd.f32 %v1252, %v1339
        %v1414 = vadd.f32 %v1253, %v1344
        %v1415 = vadd.f32 %v1254, %v1349
        %v1416 = vadd.f32 %v1255, %v1354
        %v1417 = vadd.f32 %v1256, %v1359
        %v1418 = vadd.f32 %v1257, %v1364
        %v1419 = vadd.f32 %v1258, %v1369
        %v1420 = vadd.f32 %v1259, %v1374
        %v1421 = vadd.f32 %v1260, %v1379
        %v1422 = vadd.f32 %v1261, %v1384
        %v1423 = vadd.f32 %v1262, %v1389
        %v1424 = vadd.f32 %v1263, %v1394
        %v1425 = vadd.f32 %v1264, %v1399
        %v1426 = vadd.f32 %v1265, %v1404
        %v1427 = vadd.f32 %v1266, %v1409
        %1428 = vst.msk [vmem:[#allocation4] sm:$0xff] %vm560, %v1412
        %1429 = vst.msk [vmem:[#allocation4 + $0x8] sm:$0xff] %vm560, %v1413
        %1430 = vst.msk [vmem:[#allocation4 + $0x10] sm:$0xff] %vm560, %v1414
        %1431 = vst.msk [vmem:[#allocation4 + $0x18] sm:$0xff] %vm560, %v1415
        %1432 = vst.msk [vmem:[#allocation4 + $0x20] sm:$0xff] %vm560, %v1416
        %1433 = vst.msk [vmem:[#allocation4 + $0x28] sm:$0xff] %vm560, %v1417
        %1434 = vst.msk [vmem:[#allocation4 + $0x30] sm:$0xff] %vm560, %v1418
        %1435 = vst.msk [vmem:[#allocation4 + $0x38] sm:$0xff] %vm560, %v1419
        %1436 = vst.msk [vmem:[#allocation4 + $0x40] sm:$0xff] %vm560, %v1420
        %1437 = vst.msk [vmem:[#allocation4 + $0x48] sm:$0xff] %vm560, %v1421
        %1438 = vst.msk [vmem:[#allocation4 + $0x50] sm:$0xff] %vm560, %v1422
        %1439 = vst.msk [vmem:[#allocation4 + $0x58] sm:$0xff] %vm560, %v1423
        %1440 = vst.msk [vmem:[#allocation4 + $0x60] sm:$0xff] %vm560, %v1424
        %1441 = vst.msk [vmem:[#allocation4 + $0x68] sm:$0xff] %vm560, %v1425
        %1442 = vst.msk [vmem:[#allocation4 + $0x70] sm:$0xff] %vm560, %v1426
        %1443 = vst.msk [vmem:[#allocation4 + $0x78] sm:$0xff] %vm560, %v1427
        %1444 = vst.msk [vmem:[#allocation2] sm:$0xff] %vm1138, %v866
        %1445 = vst.msk [vmem:[#allocation2 + $0x8] sm:$0xff] %vm1138, %v867
        %1446 = vst.msk [vmem:[#allocation2 + $0x10] sm:$0xff] %vm1138, %v868
        %1447 = vst.msk [vmem:[#allocation2 + $0x18] sm:$0xff] %vm1138, %v869
        %1448 = vst.msk [vmem:[#allocation2 + $0x20] sm:$0xff] %vm1138, %v870
        %1449 = vst.msk [vmem:[#allocation2 + $0x28] sm:$0xff] %vm1138, %v871
        %1450 = vst.msk [vmem:[#allocation2 + $0x30] sm:$0xff] %vm1138, %v872
        %1451 = vst.msk [vmem:[#allocation2 + $0x38] sm:$0xff] %vm1138, %v873
        %1452 = vst.msk [vmem:[#allocation2 + $0x40] sm:$0xff] %vm1138, %v874
        %1453 = vst.msk [vmem:[#allocation2 + $0x48] sm:$0xff] %vm1138, %v875
        %1454 = vst.msk [vmem:[#allocation2 + $0x50] sm:$0xff] %vm1138, %v876
        %1455 = vst.msk [vmem:[#allocation2 + $0x58] sm:$0xff] %vm1138, %v877
        %1456 = vst.msk [vmem:[#allocation2 + $0x60] sm:$0xff] %vm1138, %v878
        %1457 = vst.msk [vmem:[#allocation2 + $0x68] sm:$0xff] %vm1138, %v879
        %1458 = vst.msk [vmem:[#allocation2 + $0x70] sm:$0xff] %vm1138, %v880
        %1459 = vst.msk [vmem:[#allocation2 + $0x78] sm:$0xff] %vm1138, %v881
        %v1460 = vld [vmem:[%s307] sm:$0xff]
        %v1461 = vld [vmem:[%s307 + $0x8] sm:$0xff]
        %v1462 = vld [vmem:[%s307 + $0x10] sm:$0xff]
        %v1463 = vld [vmem:[%s307 + $0x18] sm:$0xff]
        %v1464 = vld [vmem:[%s307 + $0x20] sm:$0xff]
        %v1465 = vld [vmem:[%s307 + $0x28] sm:$0xff]
        %v1466 = vld [vmem:[%s307 + $0x30] sm:$0xff]
        %v1467 = vld [vmem:[%s307 + $0x38] sm:$0xff]
        %v1468 = vld [vmem:[%s307 + $0x40] sm:$0xff]
        %v1469 = vld [vmem:[%s307 + $0x48] sm:$0xff]
        %v1470 = vld [vmem:[%s307 + $0x50] sm:$0xff]
        %v1471 = vld [vmem:[%s307 + $0x58] sm:$0xff]
        %v1472 = vld [vmem:[%s307 + $0x60] sm:$0xff]
        %v1473 = vld [vmem:[%s307 + $0x68] sm:$0xff]
        %v1474 = vld [vmem:[%s307 + $0x70] sm:$0xff]
        %v1475 = vld [vmem:[%s307 + $0x78] sm:$0xff]
        %v1476 = vmul.f32 %v1460, 0.125
        %v1477 = vmul.f32 %v1461, 0.125
        %v1478 = vmul.f32 %v1462, 0.125
        %v1479 = vmul.f32 %v1463, 0.125
        %v1480 = vmul.f32 %v1464, 0.125
        %v1481 = vmul.f32 %v1465, 0.125
        %v1482 = vmul.f32 %v1466, 0.125
        %v1483 = vmul.f32 %v1467, 0.125
        %v1484 = vmul.f32 %v1468, 0.125
        %v1485 = vmul.f32 %v1469, 0.125
        %v1486 = vmul.f32 %v1470, 0.125
        %v1487 = vmul.f32 %v1471, 0.125
        %v1488 = vmul.f32 %v1472, 0.125
        %v1489 = vmul.f32 %v1473, 0.125
        %v1490 = vmul.f32 %v1474, 0.125
        %v1491 = vmul.f32 %v1475, 0.125
        %v1492 = vld [vmem:[%s316] sm:$0xff]
        %v1493 = vld [vmem:[%s316 + $0x8] sm:$0xff]
        %v1494 = vld [vmem:[%s316 + $0x10] sm:$0xff]
        %v1495 = vld [vmem:[%s316 + $0x18] sm:$0xff]
        %v1496 = vld [vmem:[%s316 + $0x20] sm:$0xff]
        %v1497 = vld [vmem:[%s316 + $0x28] sm:$0xff]
        %v1498 = vld [vmem:[%s316 + $0x30] sm:$0xff]
        %v1499 = vld [vmem:[%s316 + $0x38] sm:$0xff]
        %v1500 = vld [vmem:[%s316 + $0x40] sm:$0xff]
        %v1501 = vld [vmem:[%s316 + $0x48] sm:$0xff]
        %v1502 = vld [vmem:[%s316 + $0x50] sm:$0xff]
        %v1503 = vld [vmem:[%s316 + $0x58] sm:$0xff]
        %v1504 = vld [vmem:[%s316 + $0x60] sm:$0xff]
        %v1505 = vld [vmem:[%s316 + $0x68] sm:$0xff]
        %v1506 = vld [vmem:[%s316 + $0x70] sm:$0xff]
        %v1507 = vld [vmem:[%s316 + $0x78] sm:$0xff]
        %v1508 = vld [vmem:[%s325] sm:$0xff]
        %v1509 = vld [vmem:[%s325 + $0x8] sm:$0xff]
        %v1510 = vld [vmem:[%s325 + $0x10] sm:$0xff]
        %v1511 = vld [vmem:[%s325 + $0x18] sm:$0xff]
        %v1512 = vld [vmem:[%s325 + $0x20] sm:$0xff]
        %v1513 = vld [vmem:[%s325 + $0x28] sm:$0xff]
        %v1514 = vld [vmem:[%s325 + $0x30] sm:$0xff]
        %v1515 = vld [vmem:[%s325 + $0x38] sm:$0xff]
        %v1516 = vld [vmem:[%s325 + $0x40] sm:$0xff]
        %v1517 = vld [vmem:[%s325 + $0x48] sm:$0xff]
        %v1518 = vld [vmem:[%s325 + $0x50] sm:$0xff]
        %v1519 = vld [vmem:[%s325 + $0x58] sm:$0xff]
        %v1520 = vld [vmem:[%s325 + $0x60] sm:$0xff]
        %v1521 = vld [vmem:[%s325 + $0x68] sm:$0xff]
        %v1522 = vld [vmem:[%s325 + $0x70] sm:$0xff]
        %v1523 = vld [vmem:[%s325 + $0x78] sm:$0xff]
        %1540 = vrot.lane.b32.xlu0 %v1476, 64
        %v1541 = vpop.permute.xlu0 %1540
        %1542 = vrot.lane.b32.xlu0 %v1477, 64
        %v1543 = vpop.permute.xlu0 %1542
        %1544 = vrot.lane.b32.xlu0 %v1478, 64
        %v1545 = vpop.permute.xlu0 %1544
        %1546 = vrot.lane.b32.xlu0 %v1479, 64
        %v1547 = vpop.permute.xlu0 %1546
        %1548 = vrot.lane.b32.xlu0 %v1480, 64
        %v1549 = vpop.permute.xlu0 %1548
        %1550 = vrot.lane.b32.xlu0 %v1481, 64
        %v1551 = vpop.permute.xlu0 %1550
        %1552 = vrot.lane.b32.xlu0 %v1482, 64
        %v1553 = vpop.permute.xlu0 %1552
        %1554 = vrot.lane.b32.xlu0 %v1483, 64
        %v1555 = vpop.permute.xlu0 %1554
        %1556 = vrot.lane.b32.xlu0 %v1484, 64
        %v1557 = vpop.permute.xlu0 %1556
        %1558 = vrot.lane.b32.xlu0 %v1485, 64
        %v1559 = vpop.permute.xlu0 %1558
        %1560 = vrot.lane.b32.xlu0 %v1486, 64
        %v1561 = vpop.permute.xlu0 %1560
        %1562 = vrot.lane.b32.xlu0 %v1487, 64
        %v1563 = vpop.permute.xlu0 %1562
        %1564 = vrot.lane.b32.xlu0 %v1488, 64
        %v1565 = vpop.permute.xlu0 %1564
        %1566 = vrot.lane.b32.xlu0 %v1489, 64
        %v1567 = vpop.permute.xlu0 %1566
        %1568 = vrot.lane.b32.xlu0 %v1490, 64
        %v1569 = vpop.permute.xlu0 %1568
        %1570 = vrot.lane.b32.xlu0 %v1491, 64
        %v1571 = vpop.permute.xlu0 %1570
        %1588 = vrot.lane.b32.xlu0 %v1492, 64
        %v1589 = vpop.permute.xlu0 %1588
        %1590 = vrot.lane.b32.xlu0 %v1493, 64
        %v1591 = vpop.permute.xlu0 %1590
        %1592 = vrot.lane.b32.xlu0 %v1494, 64
        %v1593 = vpop.permute.xlu0 %1592
        %1594 = vrot.lane.b32.xlu0 %v1495, 64
        %v1595 = vpop.permute.xlu0 %1594
        %1596 = vrot.lane.b32.xlu0 %v1496, 64
        %v1597 = vpop.permute.xlu0 %1596
        %1598 = vrot.lane.b32.xlu0 %v1497, 64
        %v1599 = vpop.permute.xlu0 %1598
        %1600 = vrot.lane.b32.xlu0 %v1498, 64
        %v1601 = vpop.permute.xlu0 %1600
        %1602 = vrot.lane.b32.xlu0 %v1499, 64
        %v1603 = vpop.permute.xlu0 %1602
        %1604 = vrot.lane.b32.xlu0 %v1500, 64
        %v1605 = vpop.permute.xlu0 %1604
        %1606 = vrot.lane.b32.xlu0 %v1501, 64
        %v1607 = vpop.permute.xlu0 %1606
        %1608 = vrot.lane.b32.xlu0 %v1502, 64
        %v1609 = vpop.permute.xlu0 %1608
        %1610 = vrot.lane.b32.xlu0 %v1503, 64
        %v1611 = vpop.permute.xlu0 %1610
        %1612 = vrot.lane.b32.xlu0 %v1504, 64
        %v1613 = vpop.permute.xlu0 %1612
        %1614 = vrot.lane.b32.xlu0 %v1505, 64
        %v1615 = vpop.permute.xlu0 %1614
        %1616 = vrot.lane.b32.xlu0 %v1506, 64
        %v1617 = vpop.permute.xlu0 %1616
        %1618 = vrot.lane.b32.xlu0 %v1507, 64
        %v1619 = vpop.permute.xlu0 %1618
        %v1620 = vsel %vm560, %v1541, 0
        %v1622 = vsel %vm560, %v1543, 0
        %v1624 = vsel %vm560, %v1545, 0
        %v1626 = vsel %vm560, %v1547, 0
        %v1628 = vsel %vm560, %v1549, 0
        %v1630 = vsel %vm560, %v1551, 0
        %v1632 = vsel %vm560, %v1553, 0
        %v1634 = vsel %vm560, %v1555, 0
        %v1636 = vsel %vm560, %v1557, 0
        %v1638 = vsel %vm560, %v1559, 0
        %v1640 = vsel %vm560, %v1561, 0
        %v1642 = vsel %vm560, %v1563, 0
        %v1644 = vsel %vm560, %v1565, 0
        %v1646 = vsel %vm560, %v1567, 0
        %v1648 = vsel %vm560, %v1569, 0
        %v1650 = vsel %vm560, %v1571, 0
        %v1652 = vsel %vm560, %v1589, 0
        %v1654 = vsel %vm560, %v1591, 0
        %v1656 = vsel %vm560, %v1593, 0
        %v1658 = vsel %vm560, %v1595, 0
        %v1660 = vsel %vm560, %v1597, 0
        %v1662 = vsel %vm560, %v1599, 0
        %v1664 = vsel %vm560, %v1601, 0
        %v1666 = vsel %vm560, %v1603, 0
        %v1668 = vsel %vm560, %v1605, 0
        %v1670 = vsel %vm560, %v1607, 0
        %v1672 = vsel %vm560, %v1609, 0
        %v1674 = vsel %vm560, %v1611, 0
        %v1676 = vsel %vm560, %v1613, 0
        %v1678 = vsel %vm560, %v1615, 0
        %v1680 = vsel %vm560, %v1617, 0
        %v1682 = vsel %vm560, %v1619, 0
        %1684 = vmatprep.subr.mxu0 0.0
        %1685 = vmatpush1.xpose.msra.mxu0 %v1652
        %1686 = vmatprep.subr.mxu0 0.0
        %1687 = vmatpush1.xpose.msra.mxu0 %v1654
        %1688 = vmatprep.subr.mxu0 0.0
        %1689 = vmatpush1.xpose.msra.mxu0 %v1656
        %1690 = vmatprep.subr.mxu0 0.0
        %1691 = vmatpush1.xpose.msra.mxu0 %v1658
        %1692 = vmatprep.subr.mxu0 0.0
        %1693 = vmatpush1.xpose.msra.mxu0 %v1660
        %1694 = vmatprep.subr.mxu0 0.0
        %1695 = vmatpush1.xpose.msra.mxu0 %v1662
        %1696 = vmatprep.subr.mxu0 0.0
        %1697 = vmatpush1.xpose.msra.mxu0 %v1664
        %1698 = vmatprep.subr.mxu0 0.0
        %1699 = vmatpush1.xpose.msra.mxu0 %v1666
        %1700 = vmatprep.subr.mxu0 0.0
        %1701 = vmatpush1.xpose.msra.mxu0 %v1668
        %1702 = vmatprep.subr.mxu0 0.0
        %1703 = vmatpush1.xpose.msra.mxu0 %v1670
        %1704 = vmatprep.subr.mxu0 0.0
        %1705 = vmatpush1.xpose.msra.mxu0 %v1672
        %1706 = vmatprep.subr.mxu0 0.0
        %1707 = vmatpush1.xpose.msra.mxu0 %v1674
        %1708 = vmatprep.subr.mxu0 0.0
        %1709 = vmatpush1.xpose.msra.mxu0 %v1676
        %1710 = vmatprep.subr.mxu0 0.0
        %1711 = vmatpush1.xpose.msra.mxu0 %v1678
        %1712 = vmatprep.subr.mxu0 0.0
        %1713 = vmatpush1.xpose.msra.mxu0 %v1680
        %1714 = vmatprep.subr.mxu0 0.0
        %1715 = vmatpush1.xpose.msra.mxu0 %v1682
        %1716 = vmatprep.subr.mxu0 0.0
        %1717 = vmatpush1.xpose.msra.mxu0 0.0
        %1718 = vmatprep.subr.mxu0 0.0
        %1719 = vmatpush1.xpose.msra.mxu0 0.0
        %1720 = vmatprep.subr.mxu0 0.0
        %1721 = vmatpush1.xpose.msra.mxu0 0.0
        %1722 = vmatprep.subr.mxu0 0.0
        %1723 = vmatpush1.xpose.msra.mxu0 0.0
        %1724 = vmatprep.subr.mxu0 0.0
        %1725 = vmatpush1.xpose.msra.mxu0 0.0
        %1726 = vmatprep.subr.mxu0 0.0
        %1727 = vmatpush1.xpose.msra.mxu0 0.0
        %1728 = vmatprep.subr.mxu0 0.0
        %1729 = vmatpush1.xpose.msra.mxu0 0.0
        %1730 = vmatprep.subr.mxu0 0.0
        %1731 = vmatpush1.xpose.msra.mxu0 0.0
        %1732 = vmatprep.subr.mxu0 0.0
        %1733 = vmatpush1.xpose.msra.mxu0 0.0
        %1734 = vmatprep.subr.mxu0 0.0
        %1735 = vmatpush1.xpose.msra.mxu0 0.0
        %1736 = vmatprep.subr.mxu0 0.0
        %1737 = vmatpush1.xpose.msra.mxu0 0.0
        %1738 = vmatprep.subr.mxu0 0.0
        %1739 = vmatpush1.xpose.msra.mxu0 0.0
        %1740 = vmatprep.subr.mxu0 0.0
        %1741 = vmatpush1.xpose.msra.mxu0 0.0
        %1742 = vmatprep.subr.mxu0 0.0
        %1743 = vmatpush1.xpose.msra.mxu0 0.0
        %1744 = vmatprep.subr.mxu0 0.0
        %1745 = vmatpush1.xpose.msra.mxu0 0.0
        %1746 = vmatprep.subr.mxu0 0.0
        %1747 = vmatpush1.xpose.msra.mxu0 0.0
        %1748 = vmatprep.mubr.f32.mxu0 0.0
        %1749 = vmatmul.mubr.f32.gmra.mrb[0].mxu0 %v1620
        %v1750 = vpop.f32.mrb[0].mxu0
        %v1751 = vadd.f32 0.0, %v1750
        %v1752 = vpop.f32.mrb[0].mxu0
        %1753 = vmatprep.mubr.f32.mxu0 0.0
        %1754 = vmatmul.mubr.f32.gmra.mrb[0].mxu0 %v1622
        %v1755 = vpop.f32.mrb[0].mxu0
        %v1756 = vadd.f32 0.0, %v1755
        %v1757 = vpop.f32.mrb[0].mxu0
        %1758 = vmatprep.mubr.f32.mxu0 0.0
        %1759 = vmatmul.mubr.f32.gmra.mrb[0].mxu0 %v1624
        %v1760 = vpop.f32.mrb[0].mxu0
        %v1761 = vadd.f32 0.0, %v1760
        %v1762 = vpop.f32.mrb[0].mxu0
        %1763 = vmatprep.mubr.f32.mxu0 0.0
        %1764 = vmatmul.mubr.f32.gmra.mrb[0].mxu0 %v1626
        %v1765 = vpop.f32.mrb[0].mxu0
        %v1766 = vadd.f32 0.0, %v1765
        %v1767 = vpop.f32.mrb[0].mxu0
        %1768 = vmatprep.mubr.f32.mxu0 0.0
        %1769 = vmatmul.mubr.f32.gmra.mrb[0].mxu0 %v1628
        %v1770 = vpop.f32.mrb[0].mxu0
        %v1771 = vadd.f32 0.0, %v1770
        %v1772 = vpop.f32.mrb[0].mxu0
        %1773 = vmatprep.mubr.f32.mxu0 0.0
        %1774 = vmatmul.mubr.f32.gmra.mrb[0].mxu0 %v1630
        %v1775 = vpop.f32.mrb[0].mxu0
        %v1776 = vadd.f32 0.0, %v1775
        %v1777 = vpop.f32.mrb[0].mxu0
        %1778 = vmatprep.mubr.f32.mxu0 0.0
        %1779 = vmatmul.mubr.f32.gmra.mrb[0].mxu0 %v1632
        %v1780 = vpop.f32.mrb[0].mxu0
        %v1781 = vadd.f32 0.0, %v1780
        %v1782 = vpop.f32.mrb[0].mxu0
        %1783 = vmatprep.mubr.f32.mxu0 0.0
        %1784 = vmatmul.mubr.f32.gmra.mrb[0].mxu0 %v1634
        %v1785 = vpop.f32.mrb[0].mxu0
        %v1786 = vadd.f32 0.0, %v1785
        %v1787 = vpop.f32.mrb[0].mxu0
        %1788 = vmatprep.mubr.f32.mxu0 0.0
        %1789 = vmatmul.mubr.f32.gmra.mrb[0].mxu0 %v1636
        %v1790 = vpop.f32.mrb[0].mxu0
        %v1791 = vadd.f32 0.0, %v1790
        %v1792 = vpop.f32.mrb[0].mxu0
        %1793 = vmatprep.mubr.f32.mxu0 0.0
        %1794 = vmatmul.mubr.f32.gmra.mrb[0].mxu0 %v1638
        %v1795 = vpop.f32.mrb[0].mxu0
        %v1796 = vadd.f32 0.0, %v1795
        %v1797 = vpop.f32.mrb[0].mxu0
        %1798 = vmatprep.mubr.f32.mxu0 0.0
        %1799 = vmatmul.mubr.f32.gmra.mrb[0].mxu0 %v1640
        %v1800 = vpop.f32.mrb[0].mxu0
        %v1801 = vadd.f32 0.0, %v1800
        %v1802 = vpop.f32.mrb[0].mxu0
        %1803 = vmatprep.mubr.f32.mxu0 0.0
        %1804 = vmatmul.mubr.f32.gmra.mrb[0].mxu0 %v1642
        %v1805 = vpop.f32.mrb[0].mxu0
        %v1806 = vadd.f32 0.0, %v1805
        %v1807 = vpop.f32.mrb[0].mxu0
        %1808 = vmatprep.mubr.f32.mxu0 0.0
        %1809 = vmatmul.mubr.f32.gmra.mrb[0].mxu0 %v1644
        %v1810 = vpop.f32.mrb[0].mxu0
        %v1811 = vadd.f32 0.0, %v1810
        %v1812 = vpop.f32.mrb[0].mxu0
        %1813 = vmatprep.mubr.f32.mxu0 0.0
        %1814 = vmatmul.mubr.f32.gmra.mrb[0].mxu0 %v1646
        %v1815 = vpop.f32.mrb[0].mxu0
        %v1816 = vadd.f32 0.0, %v1815
        %v1817 = vpop.f32.mrb[0].mxu0
        %1818 = vmatprep.mubr.f32.mxu0 0.0
        %1819 = vmatmul.mubr.f32.gmra.mrb[0].mxu0 %v1648
        %v1820 = vpop.f32.mrb[0].mxu0
        %v1821 = vadd.f32 0.0, %v1820
        %v1822 = vpop.f32.mrb[0].mxu0
        %1823 = vmatprep.mubr.f32.mxu0 0.0
        %1824 = vmatmul.mubr.f32.gmra.mrb[0].mxu0 %v1650
        %v1825 = vpop.f32.mrb[0].mxu0
        %v1826 = vadd.f32 0.0, %v1825
        %v1827 = vpop.f32.mrb[0].mxu0
        %1828 = vdwg.mxu0
        %v1829 = vsel %vm480, -1e+09, %v1751
        %v1830 = vsel %vm481, -1e+09, %v1756
        %v1831 = vsel %vm482, -1e+09, %v1761
        %v1832 = vsel %vm483, -1e+09, %v1766
        %v1833 = vsel %vm484, -1e+09, %v1771
        %v1834 = vsel %vm485, -1e+09, %v1776
        %v1835 = vsel %vm486, -1e+09, %v1781
        %v1836 = vsel %vm487, -1e+09, %v1786
        %v1837 = vsel %vm488, -1e+09, %v1791
        %v1838 = vsel %vm489, -1e+09, %v1796
        %v1839 = vsel %vm490, -1e+09, %v1801
        %v1840 = vsel %vm491, -1e+09, %v1806
        %v1841 = vsel %vm492, -1e+09, %v1811
        %v1842 = vsel %vm493, -1e+09, %v1816
        %v1843 = vsel %vm494, -1e+09, %v1821
        %v1844 = vsel %vm495, -1e+09, %v1826
        %s1845 = scalar_lea.vmem [#allocation2], 128
        %v1846 = vld [vmem:[%s1845] sm:$0xff]
        %v1847 = vld [vmem:[%s1845 + $0x8] sm:$0xff]
        %v1848 = vld [vmem:[%s1845 + $0x10] sm:$0xff]
        %v1849 = vld [vmem:[%s1845 + $0x18] sm:$0xff]
        %v1850 = vld [vmem:[%s1845 + $0x20] sm:$0xff]
        %v1851 = vld [vmem:[%s1845 + $0x28] sm:$0xff]
        %v1852 = vld [vmem:[%s1845 + $0x30] sm:$0xff]
        %v1853 = vld [vmem:[%s1845 + $0x38] sm:$0xff]
        %v1854 = vld [vmem:[%s1845 + $0x40] sm:$0xff]
        %v1855 = vld [vmem:[%s1845 + $0x48] sm:$0xff]
        %v1856 = vld [vmem:[%s1845 + $0x50] sm:$0xff]
        %v1857 = vld [vmem:[%s1845 + $0x58] sm:$0xff]
        %v1858 = vld [vmem:[%s1845 + $0x60] sm:$0xff]
        %v1859 = vld [vmem:[%s1845 + $0x68] sm:$0xff]
        %v1860 = vld [vmem:[%s1845 + $0x70] sm:$0xff]
        %v1861 = vld [vmem:[%s1845 + $0x78] sm:$0xff]
        %1862 = vmax.xlane.f32.xlu0 %v1829
        %v1863 = vpop.xlane.xlu0 %1862
        %1864 = vmax.xlane.f32.xlu0 %v1830
        %v1865 = vpop.xlane.xlu0 %1864
        %1866 = vmax.xlane.f32.xlu0 %v1831
        %v1867 = vpop.xlane.xlu0 %1866
        %1868 = vmax.xlane.f32.xlu0 %v1832
        %v1869 = vpop.xlane.xlu0 %1868
        %1870 = vmax.xlane.f32.xlu0 %v1833
        %v1871 = vpop.xlane.xlu0 %1870
        %1872 = vmax.xlane.f32.xlu0 %v1834
        %v1873 = vpop.xlane.xlu0 %1872
        %1874 = vmax.xlane.f32.xlu0 %v1835
        %v1875 = vpop.xlane.xlu0 %1874
        %1876 = vmax.xlane.f32.xlu0 %v1836
        %v1877 = vpop.xlane.xlu0 %1876
        %1878 = vmax.xlane.f32.xlu0 %v1837
        %v1879 = vpop.xlane.xlu0 %1878
        %1880 = vmax.xlane.f32.xlu0 %v1838
        %v1881 = vpop.xlane.xlu0 %1880
        %1882 = vmax.xlane.f32.xlu0 %v1839
        %v1883 = vpop.xlane.xlu0 %1882
        %1884 = vmax.xlane.f32.xlu0 %v1840
        %v1885 = vpop.xlane.xlu0 %1884
        %1886 = vmax.xlane.f32.xlu0 %v1841
        %v1887 = vpop.xlane.xlu0 %1886
        %1888 = vmax.xlane.f32.xlu0 %v1842
        %v1889 = vpop.xlane.xlu0 %1888
        %1890 = vmax.xlane.f32.xlu0 %v1843
        %v1891 = vpop.xlane.xlu0 %1890
        %1892 = vmax.xlane.f32.xlu0 %v1844
        %v1893 = vpop.xlane.xlu0 %1892
        %v1894 = vmax.f32 %v1846, %v1863
        %v1895 = vmax.f32 %v1847, %v1865
        %v1896 = vmax.f32 %v1848, %v1867
        %v1897 = vmax.f32 %v1849, %v1869
        %v1898 = vmax.f32 %v1850, %v1871
        %v1899 = vmax.f32 %v1851, %v1873
        %v1900 = vmax.f32 %v1852, %v1875
        %v1901 = vmax.f32 %v1853, %v1877
        %v1902 = vmax.f32 %v1854, %v1879
        %v1903 = vmax.f32 %v1855, %v1881
        %v1904 = vmax.f32 %v1856, %v1883
        %v1905 = vmax.f32 %v1857, %v1885
        %v1906 = vmax.f32 %v1858, %v1887
        %v1907 = vmax.f32 %v1859, %v1889
        %v1908 = vmax.f32 %v1860, %v1891
        %v1909 = vmax.f32 %v1861, %v1893
        %v1910 = vsub.f32 %v1846, %v1894
        %v1911 = vsub.f32 %v1847, %v1895
        %v1912 = vsub.f32 %v1848, %v1896
        %v1913 = vsub.f32 %v1849, %v1897
        %v1914 = vsub.f32 %v1850, %v1898
        %v1915 = vsub.f32 %v1851, %v1899
        %v1916 = vsub.f32 %v1852, %v1900
        %v1917 = vsub.f32 %v1853, %v1901
        %v1918 = vsub.f32 %v1854, %v1902
        %v1919 = vsub.f32 %v1855, %v1903
        %v1920 = vsub.f32 %v1856, %v1904
        %v1921 = vsub.f32 %v1857, %v1905
        %v1922 = vsub.f32 %v1858, %v1906
        %v1923 = vsub.f32 %v1859, %v1907
        %v1924 = vsub.f32 %v1860, %v1908
        %v1925 = vsub.f32 %v1861, %v1909
        %v1926 = vmul.f32 %v1910, 1.442695
        %v1927 = vpow.pop %v1926
        %v1928 = vmul.f32 %v1911, 1.442695
        %v1929 = vpow.pop %v1928
        %v1930 = vmul.f32 %v1912, 1.442695
        %v1931 = vpow.pop %v1930
        %v1932 = vmul.f32 %v1913, 1.442695
        %v1933 = vpow.pop %v1932
        %v1934 = vmul.f32 %v1914, 1.442695
        %v1935 = vpow.pop %v1934
        %v1936 = vmul.f32 %v1915, 1.442695
        %v1937 = vpow.pop %v1936
        %v1938 = vmul.f32 %v1916, 1.442695
        %v1939 = vpow.pop %v1938
        %v1940 = vmul.f32 %v1917, 1.442695
        %v1941 = vpow.pop %v1940
        %v1942 = vmul.f32 %v1918, 1.442695
        %v1943 = vpow.pop %v1942
        %v1944 = vmul.f32 %v1919, 1.442695
        %v1945 = vpow.pop %v1944
        %v1946 = vmul.f32 %v1920, 1.442695
        %v1947 = vpow.pop %v1946
        %v1948 = vmul.f32 %v1921, 1.442695
        %v1949 = vpow.pop %v1948
        %v1950 = vmul.f32 %v1922, 1.442695
        %v1951 = vpow.pop %v1950
        %v1952 = vmul.f32 %v1923, 1.442695
        %v1953 = vpow.pop %v1952
        %v1954 = vmul.f32 %v1924, 1.442695
        %v1955 = vpow.pop %v1954
        %v1956 = vmul.f32 %v1925, 1.442695
        %v1957 = vpow.pop %v1956
        %1959 = vset.pattern.permute.xlu0 0
        %1960 = vperm.xlu0 %1959, %v1894
        %v1961 = vpop.permute.xlu0 %1960
        %1964 = vset.pattern.permute.xlu0 0
        %1965 = vperm.xlu0 %1964, %v1895
        %v1966 = vpop.permute.xlu0 %1965
        %1969 = vset.pattern.permute.xlu0 0
        %1970 = vperm.xlu0 %1969, %v1896
        %v1971 = vpop.permute.xlu0 %1970
        %1974 = vset.pattern.permute.xlu0 0
        %1975 = vperm.xlu0 %1974, %v1897
        %v1976 = vpop.permute.xlu0 %1975
        %1979 = vset.pattern.permute.xlu0 0
        %1980 = vperm.xlu0 %1979, %v1898
        %v1981 = vpop.permute.xlu0 %1980
        %1984 = vset.pattern.permute.xlu0 0
        %1985 = vperm.xlu0 %1984, %v1899
        %v1986 = vpop.permute.xlu0 %1985
        %1989 = vset.pattern.permute.xlu0 0
        %1990 = vperm.xlu0 %1989, %v1900
        %v1991 = vpop.permute.xlu0 %1990
        %1994 = vset.pattern.permute.xlu0 0
        %1995 = vperm.xlu0 %1994, %v1901
        %v1996 = vpop.permute.xlu0 %1995
        %1999 = vset.pattern.permute.xlu0 0
        %2000 = vperm.xlu0 %1999, %v1902
        %v2001 = vpop.permute.xlu0 %2000
        %2004 = vset.pattern.permute.xlu0 0
        %2005 = vperm.xlu0 %2004, %v1903
        %v2006 = vpop.permute.xlu0 %2005
        %2009 = vset.pattern.permute.xlu0 0
        %2010 = vperm.xlu0 %2009, %v1904
        %v2011 = vpop.permute.xlu0 %2010
        %2014 = vset.pattern.permute.xlu0 0
        %2015 = vperm.xlu0 %2014, %v1905
        %v2016 = vpop.permute.xlu0 %2015
        %2019 = vset.pattern.permute.xlu0 0
        %2020 = vperm.xlu0 %2019, %v1906
        %v2021 = vpop.permute.xlu0 %2020
        %2024 = vset.pattern.permute.xlu0 0
        %2025 = vperm.xlu0 %2024, %v1907
        %v2026 = vpop.permute.xlu0 %2025
        %2029 = vset.pattern.permute.xlu0 0
        %2030 = vperm.xlu0 %2029, %v1908
        %v2031 = vpop.permute.xlu0 %2030
        %2034 = vset.pattern.permute.xlu0 0
        %2035 = vperm.xlu0 %2034, %v1909
        %v2036 = vpop.permute.xlu0 %2035
        %v2038 = vsub.f32 %v1829, %v1961
        %v2039 = vsub.f32 %v1830, %v1966
        %v2040 = vsub.f32 %v1831, %v1971
        %v2041 = vsub.f32 %v1832, %v1976
        %v2042 = vsub.f32 %v1833, %v1981
        %v2043 = vsub.f32 %v1834, %v1986
        %v2044 = vsub.f32 %v1835, %v1991
        %v2045 = vsub.f32 %v1836, %v1996
        %v2046 = vsub.f32 %v1837, %v2001
        %v2047 = vsub.f32 %v1838, %v2006
        %v2048 = vsub.f32 %v1839, %v2011
        %v2049 = vsub.f32 %v1840, %v2016
        %v2050 = vsub.f32 %v1841, %v2021
        %v2051 = vsub.f32 %v1842, %v2026
        %v2052 = vsub.f32 %v1843, %v2031
        %v2053 = vsub.f32 %v1844, %v2036
        %v2054 = vmul.f32 %v2038, 1.442695
        %v2055 = vpow.pop %v2054
        %v2056 = vmul.f32 %v2039, 1.442695
        %v2057 = vpow.pop %v2056
        %v2058 = vmul.f32 %v2040, 1.442695
        %v2059 = vpow.pop %v2058
        %v2060 = vmul.f32 %v2041, 1.442695
        %v2061 = vpow.pop %v2060
        %v2062 = vmul.f32 %v2042, 1.442695
        %v2063 = vpow.pop %v2062
        %v2064 = vmul.f32 %v2043, 1.442695
        %v2065 = vpow.pop %v2064
        %v2066 = vmul.f32 %v2044, 1.442695
        %v2067 = vpow.pop %v2066
        %v2068 = vmul.f32 %v2045, 1.442695
        %v2069 = vpow.pop %v2068
        %v2070 = vmul.f32 %v2046, 1.442695
        %v2071 = vpow.pop %v2070
        %v2072 = vmul.f32 %v2047, 1.442695
        %v2073 = vpow.pop %v2072
        %v2074 = vmul.f32 %v2048, 1.442695
        %v2075 = vpow.pop %v2074
        %v2076 = vmul.f32 %v2049, 1.442695
        %v2077 = vpow.pop %v2076
        %v2078 = vmul.f32 %v2050, 1.442695
        %v2079 = vpow.pop %v2078
        %v2080 = vmul.f32 %v2051, 1.442695
        %v2081 = vpow.pop %v2080
        %v2082 = vmul.f32 %v2052, 1.442695
        %v2083 = vpow.pop %v2082
        %v2084 = vmul.f32 %v2053, 1.442695
        %v2085 = vpow.pop %v2084
        %s2086 = scalar_lea.vmem [#allocation3], 128
        %v2087 = vld [vmem:[%s2086] sm:$0xff]
        %v2088 = vld [vmem:[%s2086 + $0x8] sm:$0xff]
        %v2089 = vld [vmem:[%s2086 + $0x10] sm:$0xff]
        %v2090 = vld [vmem:[%s2086 + $0x18] sm:$0xff]
        %v2091 = vld [vmem:[%s2086 + $0x20] sm:$0xff]
        %v2092 = vld [vmem:[%s2086 + $0x28] sm:$0xff]
        %v2093 = vld [vmem:[%s2086 + $0x30] sm:$0xff]
        %v2094 = vld [vmem:[%s2086 + $0x38] sm:$0xff]
        %v2095 = vld [vmem:[%s2086 + $0x40] sm:$0xff]
        %v2096 = vld [vmem:[%s2086 + $0x48] sm:$0xff]
        %v2097 = vld [vmem:[%s2086 + $0x50] sm:$0xff]
        %v2098 = vld [vmem:[%s2086 + $0x58] sm:$0xff]
        %v2099 = vld [vmem:[%s2086 + $0x60] sm:$0xff]
        %v2100 = vld [vmem:[%s2086 + $0x68] sm:$0xff]
        %v2101 = vld [vmem:[%s2086 + $0x70] sm:$0xff]
        %v2102 = vld [vmem:[%s2086 + $0x78] sm:$0xff]
        %v2103 = vmul.f32 %v1927, %v2087
        %v2104 = vmul.f32 %v1929, %v2088
        %v2105 = vmul.f32 %v1931, %v2089
        %v2106 = vmul.f32 %v1933, %v2090
        %v2107 = vmul.f32 %v1935, %v2091
        %v2108 = vmul.f32 %v1937, %v2092
        %v2109 = vmul.f32 %v1939, %v2093
        %v2110 = vmul.f32 %v1941, %v2094
        %v2111 = vmul.f32 %v1943, %v2095
        %v2112 = vmul.f32 %v1945, %v2096
        %v2113 = vmul.f32 %v1947, %v2097
        %v2114 = vmul.f32 %v1949, %v2098
        %v2115 = vmul.f32 %v1951, %v2099
        %v2116 = vmul.f32 %v1953, %v2100
        %v2117 = vmul.f32 %v1955, %v2101
        %v2118 = vmul.f32 %v1957, %v2102
        %2119 = vadd.xlane.f32.xlu0 %v2055
        %v2120 = vpop.xlane.xlu0 %2119
        %2121 = vadd.xlane.f32.xlu0 %v2057
        %v2122 = vpop.xlane.xlu0 %2121
        %2123 = vadd.xlane.f32.xlu0 %v2059
        %v2124 = vpop.xlane.xlu0 %2123
        %2125 = vadd.xlane.f32.xlu0 %v2061
        %v2126 = vpop.xlane.xlu0 %2125
        %2127 = vadd.xlane.f32.xlu0 %v2063
        %v2128 = vpop.xlane.xlu0 %2127
        %2129 = vadd.xlane.f32.xlu0 %v2065
        %v2130 = vpop.xlane.xlu0 %2129
        %2131 = vadd.xlane.f32.xlu0 %v2067
        %v2132 = vpop.xlane.xlu0 %2131
        %2133 = vadd.xlane.f32.xlu0 %v2069
        %v2134 = vpop.xlane.xlu0 %2133
        %2135 = vadd.xlane.f32.xlu0 %v2071
        %v2136 = vpop.xlane.xlu0 %2135
        %2137 = vadd.xlane.f32.xlu0 %v2073
        %v2138 = vpop.xlane.xlu0 %2137
        %2139 = vadd.xlane.f32.xlu0 %v2075
        %v2140 = vpop.xlane.xlu0 %2139
        %2141 = vadd.xlane.f32.xlu0 %v2077
        %v2142 = vpop.xlane.xlu0 %2141
        %2143 = vadd.xlane.f32.xlu0 %v2079
        %v2144 = vpop.xlane.xlu0 %2143
        %2145 = vadd.xlane.f32.xlu0 %v2081
        %v2146 = vpop.xlane.xlu0 %2145
        %2147 = vadd.xlane.f32.xlu0 %v2083
        %v2148 = vpop.xlane.xlu0 %2147
        %2149 = vadd.xlane.f32.xlu0 %v2085
        %v2150 = vpop.xlane.xlu0 %2149
        %v2151 = vadd.f32 %v2103, %v2120
        %v2152 = vadd.f32 %v2104, %v2122
        %v2153 = vadd.f32 %v2105, %v2124
        %v2154 = vadd.f32 %v2106, %v2126
        %v2155 = vadd.f32 %v2107, %v2128
        %v2156 = vadd.f32 %v2108, %v2130
        %v2157 = vadd.f32 %v2109, %v2132
        %v2158 = vadd.f32 %v2110, %v2134
        %v2159 = vadd.f32 %v2111, %v2136
        %v2160 = vadd.f32 %v2112, %v2138
        %v2161 = vadd.f32 %v2113, %v2140
        %v2162 = vadd.f32 %v2114, %v2142
        %v2163 = vadd.f32 %v2115, %v2144
        %v2164 = vadd.f32 %v2116, %v2146
        %v2165 = vadd.f32 %v2117, %v2148
        %v2166 = vadd.f32 %v2118, %v2150
        %2167 = vst.msk [vmem:[%s2086] sm:$0xff] %vm1138, %v2151
        %2168 = vst.msk [vmem:[%s2086 + $0x8] sm:$0xff] %vm1138, %v2152
        %2169 = vst.msk [vmem:[%s2086 + $0x10] sm:$0xff] %vm1138, %v2153
        %2170 = vst.msk [vmem:[%s2086 + $0x18] sm:$0xff] %vm1138, %v2154
        %2171 = vst.msk [vmem:[%s2086 + $0x20] sm:$0xff] %vm1138, %v2155
        %2172 = vst.msk [vmem:[%s2086 + $0x28] sm:$0xff] %vm1138, %v2156
        %2173 = vst.msk [vmem:[%s2086 + $0x30] sm:$0xff] %vm1138, %v2157
        %2174 = vst.msk [vmem:[%s2086 + $0x38] sm:$0xff] %vm1138, %v2158
        %2175 = vst.msk [vmem:[%s2086 + $0x40] sm:$0xff] %vm1138, %v2159
        %2176 = vst.msk [vmem:[%s2086 + $0x48] sm:$0xff] %vm1138, %v2160
        %2177 = vst.msk [vmem:[%s2086 + $0x50] sm:$0xff] %vm1138, %v2161
        %2178 = vst.msk [vmem:[%s2086 + $0x58] sm:$0xff] %vm1138, %v2162
        %2179 = vst.msk [vmem:[%s2086 + $0x60] sm:$0xff] %vm1138, %v2163
        %2180 = vst.msk [vmem:[%s2086 + $0x68] sm:$0xff] %vm1138, %v2164
        %2181 = vst.msk [vmem:[%s2086 + $0x70] sm:$0xff] %vm1138, %v2165
        %2182 = vst.msk [vmem:[%s2086 + $0x78] sm:$0xff] %vm1138, %v2166
        %v2183 = vld [vmem:[#allocation4] sm:$0xff]
        %v2184 = vld [vmem:[#allocation4 + $0x8] sm:$0xff]
        %v2185 = vld [vmem:[#allocation4 + $0x10] sm:$0xff]
        %v2186 = vld [vmem:[#allocation4 + $0x18] sm:$0xff]
        %v2187 = vld [vmem:[#allocation4 + $0x20] sm:$0xff]
        %v2188 = vld [vmem:[#allocation4 + $0x28] sm:$0xff]
        %v2189 = vld [vmem:[#allocation4 + $0x30] sm:$0xff]
        %v2190 = vld [vmem:[#allocation4 + $0x38] sm:$0xff]
        %v2191 = vld [vmem:[#allocation4 + $0x40] sm:$0xff]
        %v2192 = vld [vmem:[#allocation4 + $0x48] sm:$0xff]
        %v2193 = vld [vmem:[#allocation4 + $0x50] sm:$0xff]
        %v2194 = vld [vmem:[#allocation4 + $0x58] sm:$0xff]
        %v2195 = vld [vmem:[#allocation4 + $0x60] sm:$0xff]
        %v2196 = vld [vmem:[#allocation4 + $0x68] sm:$0xff]
        %v2197 = vld [vmem:[#allocation4 + $0x70] sm:$0xff]
        %v2198 = vld [vmem:[#allocation4 + $0x78] sm:$0xff]
        %2200 = vset.pattern.permute.xlu0 0
        %2201 = vperm.xlu0 %2200, %v1927
        %v2202 = vpop.permute.xlu0 %2201
        %2205 = vset.pattern.permute.xlu0 0
        %2206 = vperm.xlu0 %2205, %v1929
        %v2207 = vpop.permute.xlu0 %2206
        %2210 = vset.pattern.permute.xlu0 0
        %2211 = vperm.xlu0 %2210, %v1931
        %v2212 = vpop.permute.xlu0 %2211
        %2215 = vset.pattern.permute.xlu0 0
        %2216 = vperm.xlu0 %2215, %v1933
        %v2217 = vpop.permute.xlu0 %2216
        %2220 = vset.pattern.permute.xlu0 0
        %2221 = vperm.xlu0 %2220, %v1935
        %v2222 = vpop.permute.xlu0 %2221
        %2225 = vset.pattern.permute.xlu0 0
        %2226 = vperm.xlu0 %2225, %v1937
        %v2227 = vpop.permute.xlu0 %2226
        %2230 = vset.pattern.permute.xlu0 0
        %2231 = vperm.xlu0 %2230, %v1939
        %v2232 = vpop.permute.xlu0 %2231
        %2235 = vset.pattern.permute.xlu0 0
        %2236 = vperm.xlu0 %2235, %v1941
        %v2237 = vpop.permute.xlu0 %2236
        %2240 = vset.pattern.permute.xlu0 0
        %2241 = vperm.xlu0 %2240, %v1943
        %v2242 = vpop.permute.xlu0 %2241
        %2245 = vset.pattern.permute.xlu0 0
        %2246 = vperm.xlu0 %2245, %v1945
        %v2247 = vpop.permute.xlu0 %2246
        %2250 = vset.pattern.permute.xlu0 0
        %2251 = vperm.xlu0 %2250, %v1947
        %v2252 = vpop.permute.xlu0 %2251
        %2255 = vset.pattern.permute.xlu0 0
        %2256 = vperm.xlu0 %2255, %v1949
        %v2257 = vpop.permute.xlu0 %2256
        %2260 = vset.pattern.permute.xlu0 0
        %2261 = vperm.xlu0 %2260, %v1951
        %v2262 = vpop.permute.xlu0 %2261
        %2265 = vset.pattern.permute.xlu0 0
        %2266 = vperm.xlu0 %2265, %v1953
        %v2267 = vpop.permute.xlu0 %2266
        %2270 = vset.pattern.permute.xlu0 0
        %2271 = vperm.xlu0 %2270, %v1955
        %v2272 = vpop.permute.xlu0 %2271
        %2275 = vset.pattern.permute.xlu0 0
        %2276 = vperm.xlu0 %2275, %v1957
        %v2277 = vpop.permute.xlu0 %2276
        %v2279 = vmul.f32 %v2202, %v2183
        %v2280 = vmul.f32 %v2207, %v2184
        %v2281 = vmul.f32 %v2212, %v2185
        %v2282 = vmul.f32 %v2217, %v2186
        %v2283 = vmul.f32 %v2222, %v2187
        %v2284 = vmul.f32 %v2227, %v2188
        %v2285 = vmul.f32 %v2232, %v2189
        %v2286 = vmul.f32 %v2237, %v2190
        %v2287 = vmul.f32 %v2242, %v2191
        %v2288 = vmul.f32 %v2247, %v2192
        %v2289 = vmul.f32 %v2252, %v2193
        %v2290 = vmul.f32 %v2257, %v2194
        %v2291 = vmul.f32 %v2262, %v2195
        %v2292 = vmul.f32 %v2267, %v2196
        %v2293 = vmul.f32 %v2272, %v2197
        %v2294 = vmul.f32 %v2277, %v2198
        %2311 = vrot.lane.b32.xlu0 %v1508, 64
        %v2312 = vpop.permute.xlu0 %2311
        %2313 = vrot.lane.b32.xlu0 %v1509, 64
        %v2314 = vpop.permute.xlu0 %2313
        %2315 = vrot.lane.b32.xlu0 %v1510, 64
        %v2316 = vpop.permute.xlu0 %2315
        %2317 = vrot.lane.b32.xlu0 %v1511, 64
        %v2318 = vpop.permute.xlu0 %2317
        %2319 = vrot.lane.b32.xlu0 %v1512, 64
        %v2320 = vpop.permute.xlu0 %2319
        %2321 = vrot.lane.b32.xlu0 %v1513, 64
        %v2322 = vpop.permute.xlu0 %2321
        %2323 = vrot.lane.b32.xlu0 %v1514, 64
        %v2324 = vpop.permute.xlu0 %2323
        %2325 = vrot.lane.b32.xlu0 %v1515, 64
        %v2326 = vpop.permute.xlu0 %2325
        %2327 = vrot.lane.b32.xlu0 %v1516, 64
        %v2328 = vpop.permute.xlu0 %2327
        %2329 = vrot.lane.b32.xlu0 %v1517, 64
        %v2330 = vpop.permute.xlu0 %2329
        %2331 = vrot.lane.b32.xlu0 %v1518, 64
        %v2332 = vpop.permute.xlu0 %2331
        %2333 = vrot.lane.b32.xlu0 %v1519, 64
        %v2334 = vpop.permute.xlu0 %2333
        %2335 = vrot.lane.b32.xlu0 %v1520, 64
        %v2336 = vpop.permute.xlu0 %2335
        %2337 = vrot.lane.b32.xlu0 %v1521, 64
        %v2338 = vpop.permute.xlu0 %2337
        %2339 = vrot.lane.b32.xlu0 %v1522, 64
        %v2340 = vpop.permute.xlu0 %2339
        %2341 = vrot.lane.b32.xlu0 %v1523, 64
        %v2342 = vpop.permute.xlu0 %2341
        %2359 = vmatprep.subr.mxu0 0.0
        %2360 = vmatpush1.msra.mxu0 %v2312
        %2361 = vmatprep.subr.mxu0 0.0
        %2362 = vmatpush1.msra.mxu0 %v2314
        %2363 = vmatprep.subr.mxu0 0.0
        %2364 = vmatpush1.msra.mxu0 %v2316
        %2365 = vmatprep.subr.mxu0 0.0
        %2366 = vmatpush1.msra.mxu0 %v2318
        %2367 = vmatprep.subr.mxu0 0.0
        %2368 = vmatpush1.msra.mxu0 %v2320
        %2369 = vmatprep.subr.mxu0 0.0
        %2370 = vmatpush1.msra.mxu0 %v2322
        %2371 = vmatprep.subr.mxu0 0.0
        %2372 = vmatpush1.msra.mxu0 %v2324
        %2373 = vmatprep.subr.mxu0 0.0
        %2374 = vmatpush1.msra.mxu0 %v2326
        %2375 = vmatprep.subr.mxu0 0.0
        %2376 = vmatpush1.msra.mxu0 %v2328
        %2377 = vmatprep.subr.mxu0 0.0
        %2378 = vmatpush1.msra.mxu0 %v2330
        %2379 = vmatprep.subr.mxu0 0.0
        %2380 = vmatpush1.msra.mxu0 %v2332
        %2381 = vmatprep.subr.mxu0 0.0
        %2382 = vmatpush1.msra.mxu0 %v2334
        %2383 = vmatprep.subr.mxu0 0.0
        %2384 = vmatpush1.msra.mxu0 %v2336
        %2385 = vmatprep.subr.mxu0 0.0
        %2386 = vmatpush1.msra.mxu0 %v2338
        %2387 = vmatprep.subr.mxu0 0.0
        %2388 = vmatpush1.msra.mxu0 %v2340
        %2389 = vmatprep.subr.mxu0 0.0
        %2390 = vmatpush1.msra.mxu0 %v2342
        %2391 = vmatprep.subr.mxu0 0.0
        %2392 = vmatpush1.msra.mxu0 0.0
        %2393 = vmatprep.subr.mxu0 0.0
        %2394 = vmatpush1.msra.mxu0 0.0
        %2395 = vmatprep.subr.mxu0 0.0
        %2396 = vmatpush1.msra.mxu0 0.0
        %2397 = vmatprep.subr.mxu0 0.0
        %2398 = vmatpush1.msra.mxu0 0.0
        %2399 = vmatprep.subr.mxu0 0.0
        %2400 = vmatpush1.msra.mxu0 0.0
        %2401 = vmatprep.subr.mxu0 0.0
        %2402 = vmatpush1.msra.mxu0 0.0
        %2403 = vmatprep.subr.mxu0 0.0
        %2404 = vmatpush1.msra.mxu0 0.0
        %2405 = vmatprep.subr.mxu0 0.0
        %2406 = vmatpush1.msra.mxu0 0.0
        %2407 = vmatprep.subr.mxu0 0.0
        %2408 = vmatpush1.msra.mxu0 0.0
        %2409 = vmatprep.subr.mxu0 0.0
        %2410 = vmatpush1.msra.mxu0 0.0
        %2411 = vmatprep.subr.mxu0 0.0
        %2412 = vmatpush1.msra.mxu0 0.0
        %2413 = vmatprep.subr.mxu0 0.0
        %2414 = vmatpush1.msra.mxu0 0.0
        %2415 = vmatprep.subr.mxu0 0.0
        %2416 = vmatpush1.msra.mxu0 0.0
        %2417 = vmatprep.subr.mxu0 0.0
        %2418 = vmatpush1.msra.mxu0 0.0
        %2419 = vmatprep.subr.mxu0 0.0
        %2420 = vmatpush1.msra.mxu0 0.0
        %2421 = vmatprep.subr.mxu0 0.0
        %2422 = vmatpush1.msra.mxu0 0.0
        %2423 = vmatprep.mubr.f32.mxu0 0.0
        %2424 = vmatmul.mubr.f32.gmra.mrb[0].mxu0 %v2055
        %v2425 = vpop.f32.mrb[0].mxu0
        %v2426 = vadd.f32 0.0, %v2425
        %v2427 = vpop.f32.mrb[0].mxu0
        %2428 = vmatprep.mubr.f32.mxu0 0.0
        %2429 = vmatmul.mubr.f32.gmra.mrb[0].mxu0 %v2057
        %v2430 = vpop.f32.mrb[0].mxu0
        %v2431 = vadd.f32 0.0, %v2430
        %v2432 = vpop.f32.mrb[0].mxu0
        %2433 = vmatprep.mubr.f32.mxu0 0.0
        %2434 = vmatmul.mubr.f32.gmra.mrb[0].mxu0 %v2059
        %v2435 = vpop.f32.mrb[0].mxu0
        %v2436 = vadd.f32 0.0, %v2435
        %v2437 = vpop.f32.mrb[0].mxu0
        %2438 = vmatprep.mubr.f32.mxu0 0.0
        %2439 = vmatmul.mubr.f32.gmra.mrb[0].mxu0 %v2061
        %v2440 = vpop.f32.mrb[0].mxu0
        %v2441 = vadd.f32 0.0, %v2440
        %v2442 = vpop.f32.mrb[0].mxu0
        %2443 = vmatprep.mubr.f32.mxu0 0.0
        %2444 = vmatmul.mubr.f32.gmra.mrb[0].mxu0 %v2063
        %v2445 = vpop.f32.mrb[0].mxu0
        %v2446 = vadd.f32 0.0, %v2445
        %v2447 = vpop.f32.mrb[0].mxu0
        %2448 = vmatprep.mubr.f32.mxu0 0.0
        %2449 = vmatmul.mubr.f32.gmra.mrb[0].mxu0 %v2065
        %v2450 = vpop.f32.mrb[0].mxu0
        %v2451 = vadd.f32 0.0, %v2450
        %v2452 = vpop.f32.mrb[0].mxu0
        %2453 = vmatprep.mubr.f32.mxu0 0.0
        %2454 = vmatmul.mubr.f32.gmra.mrb[0].mxu0 %v2067
        %v2455 = vpop.f32.mrb[0].mxu0
        %v2456 = vadd.f32 0.0, %v2455
        %v2457 = vpop.f32.mrb[0].mxu0
        %2458 = vmatprep.mubr.f32.mxu0 0.0
        %2459 = vmatmul.mubr.f32.gmra.mrb[0].mxu0 %v2069
        %v2460 = vpop.f32.mrb[0].mxu0
        %v2461 = vadd.f32 0.0, %v2460
        %v2462 = vpop.f32.mrb[0].mxu0
        %2463 = vmatprep.mubr.f32.mxu0 0.0
        %2464 = vmatmul.mubr.f32.gmra.mrb[0].mxu0 %v2071
        %v2465 = vpop.f32.mrb[0].mxu0
        %v2466 = vadd.f32 0.0, %v2465
        %v2467 = vpop.f32.mrb[0].mxu0
        %2468 = vmatprep.mubr.f32.mxu0 0.0
        %2469 = vmatmul.mubr.f32.gmra.mrb[0].mxu0 %v2073
        %v2470 = vpop.f32.mrb[0].mxu0
        %v2471 = vadd.f32 0.0, %v2470
        %v2472 = vpop.f32.mrb[0].mxu0
        %2473 = vmatprep.mubr.f32.mxu0 0.0
        %2474 = vmatmul.mubr.f32.gmra.mrb[0].mxu0 %v2075
        %v2475 = vpop.f32.mrb[0].mxu0
        %v2476 = vadd.f32 0.0, %v2475
        %v2477 = vpop.f32.mrb[0].mxu0
        %2478 = vmatprep.mubr.f32.mxu0 0.0
        %2479 = vmatmul.mubr.f32.gmra.mrb[0].mxu0 %v2077
        %v2480 = vpop.f32.mrb[0].mxu0
        %v2481 = vadd.f32 0.0, %v2480
        %v2482 = vpop.f32.mrb[0].mxu0
        %2483 = vmatprep.mubr.f32.mxu0 0.0
        %2484 = vmatmul.mubr.f32.gmra.mrb[0].mxu0 %v2079
        %v2485 = vpop.f32.mrb[0].mxu0
        %v2486 = vadd.f32 0.0, %v2485
        %v2487 = vpop.f32.mrb[0].mxu0
        %2488 = vmatprep.mubr.f32.mxu0 0.0
        %2489 = vmatmul.mubr.f32.gmra.mrb[0].mxu0 %v2081
        %v2490 = vpop.f32.mrb[0].mxu0
        %v2491 = vadd.f32 0.0, %v2490
        %v2492 = vpop.f32.mrb[0].mxu0
        %2493 = vmatprep.mubr.f32.mxu0 0.0
        %2494 = vmatmul.mubr.f32.gmra.mrb[0].mxu0 %v2083
        %v2495 = vpop.f32.mrb[0].mxu0
        %v2496 = vadd.f32 0.0, %v2495
        %v2497 = vpop.f32.mrb[0].mxu0
        %2498 = vmatprep.mubr.f32.mxu0 0.0
        %2499 = vmatmul.mubr.f32.gmra.mrb[0].mxu0 %v2085
        %v2500 = vpop.f32.mrb[0].mxu0
        %v2501 = vadd.f32 0.0, %v2500
        %v2502 = vpop.f32.mrb[0].mxu0
        %2503 = vdwg.mxu0
        %2520 = vrot.lane.b32.xlu0 %v2426, 64
        %v2521 = vpop.permute.xlu0 %2520
        %2522 = vrot.lane.b32.xlu0 %v2431, 64
        %v2523 = vpop.permute.xlu0 %2522
        %2524 = vrot.lane.b32.xlu0 %v2436, 64
        %v2525 = vpop.permute.xlu0 %2524
        %2526 = vrot.lane.b32.xlu0 %v2441, 64
        %v2527 = vpop.permute.xlu0 %2526
        %2528 = vrot.lane.b32.xlu0 %v2446, 64
        %v2529 = vpop.permute.xlu0 %2528
        %2530 = vrot.lane.b32.xlu0 %v2451, 64
        %v2531 = vpop.permute.xlu0 %2530
        %2532 = vrot.lane.b32.xlu0 %v2456, 64
        %v2533 = vpop.permute.xlu0 %2532
        %2534 = vrot.lane.b32.xlu0 %v2461, 64
        %v2535 = vpop.permute.xlu0 %2534
        %2536 = vrot.lane.b32.xlu0 %v2466, 64
        %v2537 = vpop.permute.xlu0 %2536
        %2538 = vrot.lane.b32.xlu0 %v2471, 64
        %v2539 = vpop.permute.xlu0 %2538
        %2540 = vrot.lane.b32.xlu0 %v2476, 64
        %v2541 = vpop.permute.xlu0 %2540
        %2542 = vrot.lane.b32.xlu0 %v2481, 64
        %v2543 = vpop.permute.xlu0 %2542
        %2544 = vrot.lane.b32.xlu0 %v2486, 64
        %v2545 = vpop.permute.xlu0 %2544
        %2546 = vrot.lane.b32.xlu0 %v2491, 64
        %v2547 = vpop.permute.xlu0 %2546
        %2548 = vrot.lane.b32.xlu0 %v2496, 64
        %v2549 = vpop.permute.xlu0 %2548
        %2550 = vrot.lane.b32.xlu0 %v2501, 64
        %v2551 = vpop.permute.xlu0 %2550
        %v2568 = vadd.f32 %v2279, %v2521
        %v2569 = vadd.f32 %v2280, %v2523
        %v2570 = vadd.f32 %v2281, %v2525
        %v2571 = vadd.f32 %v2282, %v2527
        %v2572 = vadd.f32 %v2283, %v2529
        %v2573 = vadd.f32 %v2284, %v2531
        %v2574 = vadd.f32 %v2285, %v2533
        %v2575 = vadd.f32 %v2286, %v2535
        %v2576 = vadd.f32 %v2287, %v2537
        %v2577 = vadd.f32 %v2288, %v2539
        %v2578 = vadd.f32 %v2289, %v2541
        %v2579 = vadd.f32 %v2290, %v2543
        %v2580 = vadd.f32 %v2291, %v2545
        %v2581 = vadd.f32 %v2292, %v2547
        %v2582 = vadd.f32 %v2293, %v2549
        %v2583 = vadd.f32 %v2294, %v2551
        %vm2584 = vcmask 1048064
        %2585 = vst.msk [vmem:[#allocation4] sm:$0xff] %vm2584, %v2568
        %2586 = vst.msk [vmem:[#allocation4 + $0x8] sm:$0xff] %vm2584, %v2569
        %2587 = vst.msk [vmem:[#allocation4 + $0x10] sm:$0xff] %vm2584, %v2570
        %2588 = vst.msk [vmem:[#allocation4 + $0x18] sm:$0xff] %vm2584, %v2571
        %2589 = vst.msk [vmem:[#allocation4 + $0x20] sm:$0xff] %vm2584, %v2572
        %2590 = vst.msk [vmem:[#allocation4 + $0x28] sm:$0xff] %vm2584, %v2573
        %2591 = vst.msk [vmem:[#allocation4 + $0x30] sm:$0xff] %vm2584, %v2574
        %2592 = vst.msk [vmem:[#allocation4 + $0x38] sm:$0xff] %vm2584, %v2575
        %2593 = vst.msk [vmem:[#allocation4 + $0x40] sm:$0xff] %vm2584, %v2576
        %2594 = vst.msk [vmem:[#allocation4 + $0x48] sm:$0xff] %vm2584, %v2577
        %2595 = vst.msk [vmem:[#allocation4 + $0x50] sm:$0xff] %vm2584, %v2578
        %2596 = vst.msk [vmem:[#allocation4 + $0x58] sm:$0xff] %vm2584, %v2579
        %2597 = vst.msk [vmem:[#allocation4 + $0x60] sm:$0xff] %vm2584, %v2580
        %2598 = vst.msk [vmem:[#allocation4 + $0x68] sm:$0xff] %vm2584, %v2581
        %2599 = vst.msk [vmem:[#allocation4 + $0x70] sm:$0xff] %vm2584, %v2582
        %2600 = vst.msk [vmem:[#allocation4 + $0x78] sm:$0xff] %vm2584, %v2583
        %2601 = vst.msk [vmem:[%s1845] sm:$0xff] %vm1138, %v1894
        %2602 = vst.msk [vmem:[%s1845 + $0x8] sm:$0xff] %vm1138, %v1895
        %2603 = vst.msk [vmem:[%s1845 + $0x10] sm:$0xff] %vm1138, %v1896
        %2604 = vst.msk [vmem:[%s1845 + $0x18] sm:$0xff] %vm1138, %v1897
        %2605 = vst.msk [vmem:[%s1845 + $0x20] sm:$0xff] %vm1138, %v1898
        %2606 = vst.msk [vmem:[%s1845 + $0x28] sm:$0xff] %vm1138, %v1899
        %2607 = vst.msk [vmem:[%s1845 + $0x30] sm:$0xff] %vm1138, %v1900
        %2608 = vst.msk [vmem:[%s1845 + $0x38] sm:$0xff] %vm1138, %v1901
        %2609 = vst.msk [vmem:[%s1845 + $0x40] sm:$0xff] %vm1138, %v1902
        %2610 = vst.msk [vmem:[%s1845 + $0x48] sm:$0xff] %vm1138, %v1903
        %2611 = vst.msk [vmem:[%s1845 + $0x50] sm:$0xff] %vm1138, %v1904
        %2612 = vst.msk [vmem:[%s1845 + $0x58] sm:$0xff] %vm1138, %v1905
        %2613 = vst.msk [vmem:[%s1845 + $0x60] sm:$0xff] %vm1138, %v1906
        %2614 = vst.msk [vmem:[%s1845 + $0x68] sm:$0xff] %vm1138, %v1907
        %2615 = vst.msk [vmem:[%s1845 + $0x70] sm:$0xff] %vm1138, %v1908
        %2616 = vst.msk [vmem:[%s1845 + $0x78] sm:$0xff] %vm1138, %v1909
        %p2617 = scmp.eq.s32.totalorder %s34, 1
        // Predicated region
        $region57: #{tpu_custom_call.1} parent=35 // pred_check
          %p2618 = pneg %p2617
        $region58: #{tpu_custom_call.1} parent=35 // pred_check_branch
          %2620 = sbr.rel (%p2618) target = $region60
        $region59: #{tpu_custom_call.1} parent=35 // pred_region
          %v2621 = vld [vmem:[#allocation3] sm:$0xff]
          %v2622 = vld [vmem:[#allocation3 + $0x8] sm:$0xff]
          %v2623 = vld [vmem:[#allocation3 + $0x10] sm:$0xff]
          %v2624 = vld [vmem:[#allocation3 + $0x18] sm:$0xff]
          %v2625 = vld [vmem:[#allocation3 + $0x20] sm:$0xff]
          %v2626 = vld [vmem:[#allocation3 + $0x28] sm:$0xff]
          %v2627 = vld [vmem:[#allocation3 + $0x30] sm:$0xff]
          %v2628 = vld [vmem:[#allocation3 + $0x38] sm:$0xff]
          %v2629 = vld [vmem:[#allocation3 + $0x40] sm:$0xff]
          %v2630 = vld [vmem:[#allocation3 + $0x48] sm:$0xff]
          %v2631 = vld [vmem:[#allocation3 + $0x50] sm:$0xff]
          %v2632 = vld [vmem:[#allocation3 + $0x58] sm:$0xff]
          %v2633 = vld [vmem:[#allocation3 + $0x60] sm:$0xff]
          %v2634 = vld [vmem:[#allocation3 + $0x68] sm:$0xff]
          %v2635 = vld [vmem:[#allocation3 + $0x70] sm:$0xff]
          %v2636 = vld [vmem:[#allocation3 + $0x78] sm:$0xff]
          %v2637 = vrcp.pop %v2621
          %v2638 = vrcp.pop %v2622
          %v2639 = vrcp.pop %v2623
          %v2640 = vrcp.pop %v2624
          %v2641 = vrcp.pop %v2625
          %v2642 = vrcp.pop %v2626
          %v2643 = vrcp.pop %v2627
          %v2644 = vrcp.pop %v2628
          %v2645 = vrcp.pop %v2629
          %v2646 = vrcp.pop %v2630
          %v2647 = vrcp.pop %v2631
          %v2648 = vrcp.pop %v2632
          %v2649 = vrcp.pop %v2633
          %v2650 = vrcp.pop %v2634
          %v2651 = vrcp.pop %v2635
          %v2652 = vrcp.pop %v2636
          %v2653 = vld [vmem:[#allocation4] sm:$0xff]
          %v2654 = vld [vmem:[#allocation4 + $0x8] sm:$0xff]
          %v2655 = vld [vmem:[#allocation4 + $0x10] sm:$0xff]
          %v2656 = vld [vmem:[#allocation4 + $0x18] sm:$0xff]
          %v2657 = vld [vmem:[#allocation4 + $0x20] sm:$0xff]
          %v2658 = vld [vmem:[#allocation4 + $0x28] sm:$0xff]
          %v2659 = vld [vmem:[#allocation4 + $0x30] sm:$0xff]
          %v2660 = vld [vmem:[#allocation4 + $0x38] sm:$0xff]
          %v2661 = vld [vmem:[#allocation4 + $0x40] sm:$0xff]
          %v2662 = vld [vmem:[#allocation4 + $0x48] sm:$0xff]
          %v2663 = vld [vmem:[#allocation4 + $0x50] sm:$0xff]
          %v2664 = vld [vmem:[#allocation4 + $0x58] sm:$0xff]
          %v2665 = vld [vmem:[#allocation4 + $0x60] sm:$0xff]
          %v2666 = vld [vmem:[#allocation4 + $0x68] sm:$0xff]
          %v2667 = vld [vmem:[#allocation4 + $0x70] sm:$0xff]
          %v2668 = vld [vmem:[#allocation4 + $0x78] sm:$0xff]
          %2670 = vset.pattern.permute.xlu0 0
          %2671 = vperm.xlu0 %2670, %v2637
          %v2672 = vpop.permute.xlu0 %2671
          %2675 = vset.pattern.permute.xlu0 0
          %2676 = vperm.xlu0 %2675, %v2638
          %v2677 = vpop.permute.xlu0 %2676
          %2680 = vset.pattern.permute.xlu0 0
          %2681 = vperm.xlu0 %2680, %v2639
          %v2682 = vpop.permute.xlu0 %2681
          %2685 = vset.pattern.permute.xlu0 0
          %2686 = vperm.xlu0 %2685, %v2640
          %v2687 = vpop.permute.xlu0 %2686
          %2690 = vset.pattern.permute.xlu0 0
          %2691 = vperm.xlu0 %2690, %v2641
          %v2692 = vpop.permute.xlu0 %2691
          %2695 = vset.pattern.permute.xlu0 0
          %2696 = vperm.xlu0 %2695, %v2642
          %v2697 = vpop.permute.xlu0 %2696
          %2700 = vset.pattern.permute.xlu0 0
          %2701 = vperm.xlu0 %2700, %v2643
          %v2702 = vpop.permute.xlu0 %2701
          %2705 = vset.pattern.permute.xlu0 0
          %2706 = vperm.xlu0 %2705, %v2644
          %v2707 = vpop.permute.xlu0 %2706
          %2710 = vset.pattern.permute.xlu0 0
          %2711 = vperm.xlu0 %2710, %v2645
          %v2712 = vpop.permute.xlu0 %2711
          %2715 = vset.pattern.permute.xlu0 0
          %2716 = vperm.xlu0 %2715, %v2646
          %v2717 = vpop.permute.xlu0 %2716
          %2720 = vset.pattern.permute.xlu0 0
          %2721 = vperm.xlu0 %2720, %v2647
          %v2722 = vpop.permute.xlu0 %2721
          %2725 = vset.pattern.permute.xlu0 0
          %2726 = vperm.xlu0 %2725, %v2648
          %v2727 = vpop.permute.xlu0 %2726
          %2730 = vset.pattern.permute.xlu0 0
          %2731 = vperm.xlu0 %2730, %v2649
          %v2732 = vpop.permute.xlu0 %2731
          %2735 = vset.pattern.permute.xlu0 0
          %2736 = vperm.xlu0 %2735, %v2650
          %v2737 = vpop.permute.xlu0 %2736
          %2740 = vset.pattern.permute.xlu0 0
          %2741 = vperm.xlu0 %2740, %v2651
          %v2742 = vpop.permute.xlu0 %2741
          %2745 = vset.pattern.permute.xlu0 0
          %2746 = vperm.xlu0 %2745, %v2652
          %v2747 = vpop.permute.xlu0 %2746
          %v2749 = vmul.f32 %v2653, %v2672
          %v2750 = vmul.f32 %v2654, %v2677
          %v2751 = vmul.f32 %v2655, %v2682
          %v2752 = vmul.f32 %v2656, %v2687
          %v2753 = vmul.f32 %v2657, %v2692
          %v2754 = vmul.f32 %v2658, %v2697
          %v2755 = vmul.f32 %v2659, %v2702
          %v2756 = vmul.f32 %v2660, %v2707
          %v2757 = vmul.f32 %v2661, %v2712
          %v2758 = vmul.f32 %v2662, %v2717
          %v2759 = vmul.f32 %v2663, %v2722
          %v2760 = vmul.f32 %v2664, %v2727
          %v2761 = vmul.f32 %v2665, %v2732
          %v2762 = vmul.f32 %v2666, %v2737
          %v2763 = vmul.f32 %v2667, %v2742
          %v2764 = vmul.f32 %v2668, %v2747
          %2765 = vst.msk [vmem:[%s373] sm:$0xff] %vm560, %v2749
          %2766 = vst.msk [vmem:[%s373 + $0x8] sm:$0xff] %vm560, %v2750
          %2767 = vst.msk [vmem:[%s373 + $0x10] sm:$0xff] %vm560, %v2751
          %2768 = vst.msk [vmem:[%s373 + $0x18] sm:$0xff] %vm560, %v2752
          %2769 = vst.msk [vmem:[%s373 + $0x20] sm:$0xff] %vm560, %v2753
          %2770 = vst.msk [vmem:[%s373 + $0x28] sm:$0xff] %vm560, %v2754
          %2771 = vst.msk [vmem:[%s373 + $0x30] sm:$0xff] %vm560, %v2755
          %2772 = vst.msk [vmem:[%s373 + $0x38] sm:$0xff] %vm560, %v2756
          %2773 = vst.msk [vmem:[%s373 + $0x40] sm:$0xff] %vm560, %v2757
          %2774 = vst.msk [vmem:[%s373 + $0x48] sm:$0xff] %vm560, %v2758
          %2775 = vst.msk [vmem:[%s373 + $0x50] sm:$0xff] %vm560, %v2759
          %2776 = vst.msk [vmem:[%s373 + $0x58] sm:$0xff] %vm560, %v2760
          %2777 = vst.msk [vmem:[%s373 + $0x60] sm:$0xff] %vm560, %v2761
          %2778 = vst.msk [vmem:[%s373 + $0x68] sm:$0xff] %vm560, %v2762
          %2779 = vst.msk [vmem:[%s373 + $0x70] sm:$0xff] %vm560, %v2763
          %2780 = vst.msk [vmem:[%s373 + $0x78] sm:$0xff] %vm560, %v2764
          %v2781 = vld [vmem:[%s2086] sm:$0xff]
          %v2782 = vld [vmem:[%s2086 + $0x8] sm:$0xff]
          %v2783 = vld [vmem:[%s2086 + $0x10] sm:$0xff]
          %v2784 = vld [vmem:[%s2086 + $0x18] sm:$0xff]
          %v2785 = vld [vmem:[%s2086 + $0x20] sm:$0xff]
          %v2786 = vld [vmem:[%s2086 + $0x28] sm:$0xff]
          %v2787 = vld [vmem:[%s2086 + $0x30] sm:$0xff]
          %v2788 = vld [vmem:[%s2086 + $0x38] sm:$0xff]
          %v2789 = vld [vmem:[%s2086 + $0x40] sm:$0xff]
          %v2790 = vld [vmem:[%s2086 + $0x48] sm:$0xff]
          %v2791 = vld [vmem:[%s2086 + $0x50] sm:$0xff]
          %v2792 = vld [vmem:[%s2086 + $0x58] sm:$0xff]
          %v2793 = vld [vmem:[%s2086 + $0x60] sm:$0xff]
          %v2794 = vld [vmem:[%s2086 + $0x68] sm:$0xff]
          %v2795 = vld [vmem:[%s2086 + $0x70] sm:$0xff]
          %v2796 = vld [vmem:[%s2086 + $0x78] sm:$0xff]
          %v2797 = vrcp.pop %v2781
          %v2798 = vrcp.pop %v2782
          %v2799 = vrcp.pop %v2783
          %v2800 = vrcp.pop %v2784
          %v2801 = vrcp.pop %v2785
          %v2802 = vrcp.pop %v2786
          %v2803 = vrcp.pop %v2787
          %v2804 = vrcp.pop %v2788
          %v2805 = vrcp.pop %v2789
          %v2806 = vrcp.pop %v2790
          %v2807 = vrcp.pop %v2791
          %v2808 = vrcp.pop %v2792
          %v2809 = vrcp.pop %v2793
          %v2810 = vrcp.pop %v2794
          %v2811 = vrcp.pop %v2795
          %v2812 = vrcp.pop %v2796
          %v2813 = vld [vmem:[#allocation4] sm:$0xff]
          %v2814 = vld [vmem:[#allocation4 + $0x8] sm:$0xff]
          %v2815 = vld [vmem:[#allocation4 + $0x10] sm:$0xff]
          %v2816 = vld [vmem:[#allocation4 + $0x18] sm:$0xff]
          %v2817 = vld [vmem:[#allocation4 + $0x20] sm:$0xff]
          %v2818 = vld [vmem:[#allocation4 + $0x28] sm:$0xff]
          %v2819 = vld [vmem:[#allocation4 + $0x30] sm:$0xff]
          %v2820 = vld [vmem:[#allocation4 + $0x38] sm:$0xff]
          %v2821 = vld [vmem:[#allocation4 + $0x40] sm:$0xff]
          %v2822 = vld [vmem:[#allocation4 + $0x48] sm:$0xff]
          %v2823 = vld [vmem:[#allocation4 + $0x50] sm:$0xff]
          %v2824 = vld [vmem:[#allocation4 + $0x58] sm:$0xff]
          %v2825 = vld [vmem:[#allocation4 + $0x60] sm:$0xff]
          %v2826 = vld [vmem:[#allocation4 + $0x68] sm:$0xff]
          %v2827 = vld [vmem:[#allocation4 + $0x70] sm:$0xff]
          %v2828 = vld [vmem:[#allocation4 + $0x78] sm:$0xff]
          %2830 = vset.pattern.permute.xlu0 0
          %2831 = vperm.xlu0 %2830, %v2797
          %v2832 = vpop.permute.xlu0 %2831
          %2835 = vset.pattern.permute.xlu0 0
          %2836 = vperm.xlu0 %2835, %v2798
          %v2837 = vpop.permute.xlu0 %2836
          %2840 = vset.pattern.permute.xlu0 0
          %2841 = vperm.xlu0 %2840, %v2799
          %v2842 = vpop.permute.xlu0 %2841
          %2845 = vset.pattern.permute.xlu0 0
          %2846 = vperm.xlu0 %2845, %v2800
          %v2847 = vpop.permute.xlu0 %2846
          %2850 = vset.pattern.permute.xlu0 0
          %2851 = vperm.xlu0 %2850, %v2801
          %v2852 = vpop.permute.xlu0 %2851
          %2855 = vset.pattern.permute.xlu0 0
          %2856 = vperm.xlu0 %2855, %v2802
          %v2857 = vpop.permute.xlu0 %2856
          %2860 = vset.pattern.permute.xlu0 0
          %2861 = vperm.xlu0 %2860, %v2803
          %v2862 = vpop.permute.xlu0 %2861
          %2865 = vset.pattern.permute.xlu0 0
          %2866 = vperm.xlu0 %2865, %v2804
          %v2867 = vpop.permute.xlu0 %2866
          %2870 = vset.pattern.permute.xlu0 0
          %2871 = vperm.xlu0 %2870, %v2805
          %v2872 = vpop.permute.xlu0 %2871
          %2875 = vset.pattern.permute.xlu0 0
          %2876 = vperm.xlu0 %2875, %v2806
          %v2877 = vpop.permute.xlu0 %2876
          %2880 = vset.pattern.permute.xlu0 0
          %2881 = vperm.xlu0 %2880, %v2807
          %v2882 = vpop.permute.xlu0 %2881
          %2885 = vset.pattern.permute.xlu0 0
          %2886 = vperm.xlu0 %2885, %v2808
          %v2887 = vpop.permute.xlu0 %2886
          %2890 = vset.pattern.permute.xlu0 0
          %2891 = vperm.xlu0 %2890, %v2809
          %v2892 = vpop.permute.xlu0 %2891
          %2895 = vset.pattern.permute.xlu0 0
          %2896 = vperm.xlu0 %2895, %v2810
          %v2897 = vpop.permute.xlu0 %2896
          %2900 = vset.pattern.permute.xlu0 0
          %2901 = vperm.xlu0 %2900, %v2811
          %v2902 = vpop.permute.xlu0 %2901
          %2905 = vset.pattern.permute.xlu0 0
          %2906 = vperm.xlu0 %2905, %v2812
          %v2907 = vpop.permute.xlu0 %2906
          %v2909 = vmul.f32 %v2813, %v2832
          %v2910 = vmul.f32 %v2814, %v2837
          %v2911 = vmul.f32 %v2815, %v2842
          %v2912 = vmul.f32 %v2816, %v2847
          %v2913 = vmul.f32 %v2817, %v2852
          %v2914 = vmul.f32 %v2818, %v2857
          %v2915 = vmul.f32 %v2819, %v2862
          %v2916 = vmul.f32 %v2820, %v2867
          %v2917 = vmul.f32 %v2821, %v2872
          %v2918 = vmul.f32 %v2822, %v2877
          %v2919 = vmul.f32 %v2823, %v2882
          %v2920 = vmul.f32 %v2824, %v2887
          %v2921 = vmul.f32 %v2825, %v2892
          %v2922 = vmul.f32 %v2826, %v2897
          %v2923 = vmul.f32 %v2827, %v2902
          %v2924 = vmul.f32 %v2828, %v2907
          %2925 = vst.msk [vmem:[%s373] sm:$0xff] %vm2584, %v2909
          %2926 = vst.msk [vmem:[%s373 + $0x8] sm:$0xff] %vm2584, %v2910
          %2927 = vst.msk [vmem:[%s373 + $0x10] sm:$0xff] %vm2584, %v2911
          %2928 = vst.msk [vmem:[%s373 + $0x18] sm:$0xff] %vm2584, %v2912
          %2929 = vst.msk [vmem:[%s373 + $0x20] sm:$0xff] %vm2584, %v2913
          %2930 = vst.msk [vmem:[%s373 + $0x28] sm:$0xff] %vm2584, %v2914
          %2931 = vst.msk [vmem:[%s373 + $0x30] sm:$0xff] %vm2584, %v2915
          %2932 = vst.msk [vmem:[%s373 + $0x38] sm:$0xff] %vm2584, %v2916
          %2933 = vst.msk [vmem:[%s373 + $0x40] sm:$0xff] %vm2584, %v2917
          %2934 = vst.msk [vmem:[%s373 + $0x48] sm:$0xff] %vm2584, %v2918
          %2935 = vst.msk [vmem:[%s373 + $0x50] sm:$0xff] %vm2584, %v2919
          %2936 = vst.msk [vmem:[%s373 + $0x58] sm:$0xff] %vm2584, %v2920
          %2937 = vst.msk [vmem:[%s373 + $0x60] sm:$0xff] %vm2584, %v2921
          %2938 = vst.msk [vmem:[%s373 + $0x68] sm:$0xff] %vm2584, %v2922
          %2939 = vst.msk [vmem:[%s373 + $0x70] sm:$0xff] %vm2584, %v2923
          %2940 = vst.msk [vmem:[%s373 + $0x78] sm:$0xff] %vm2584, %v2924
        $region60: #{tpu_custom_call.1} parent=35 // pred_fallthru
          _
        %s2941 = sand.u32 %s170, 1
        %s2942 = scalar_lea.sflag [#allocation7], %s2941
        %s2943 = sand.u32 %s170, 1
        %s2944 = smul.addr %s2943, 128
        %s2945 = scalar_lea.vmem [#allocation13], %s2944
        // Predicated region
        $region61: #{tpu_custom_call.1} parent=35 // pred_check
          %p2946 = pneg %p180
        $region62: #{tpu_custom_call.1} parent=35 // pred_check_branch
          %2948 = sbr.rel (%p2946) target = $region64
        $region63: #{tpu_custom_call.1} parent=35 // pred_region
          %s2949 = smul.u32 16, %s33
          %s2951 = ssub.s32 2048, 2048
          %2952 = vsyncadd %s2942, %s2951
          %s2953 = smul.addr %s32, 32
          %s2954 = sadd.s32 %s2949, %s2953
          %s2955 = smul.addr %s2954, 128
          %s2956 = scalar_lea.hbm %s4, %s2955
          %s2957 = sshll.u32 %s2945, 4
          %s2958 = int_to_ptr.vmem [resolvable:$true] %s2957
          %2963 = dma.vmem_to_hbm [thread:$0]  %s2958, 2048, %s2956, %s2942, 128, 128, 8
        $region64: #{tpu_custom_call.1} parent=35 // pred_fallthru
          _
      $region36: #{tpu_custom_call.1} parent=5 // pred_fallthru
        _
      %p2964 = scmp.le.s32.totalorder 2, %s22
      // Predicated region
      $region65: #{tpu_custom_call.1} parent=5 // pred_check
        %p2965 = pneg %p2964
      $region66: #{tpu_custom_call.1} parent=5 // pred_check_branch
        %2967 = sbr.rel (%p2965) target = $region68
      $region67: #{tpu_custom_call.1} parent=5 // pred_region
        %s2968 = ssub.s32 %s22, 2
        // Predicated region
        $region69: #{tpu_custom_call.1} parent=67 // pred_check
          %p2969 = pneg %p186
        $region70: #{tpu_custom_call.1} parent=67 // pred_check_branch
          %2971 = sbr.rel (%p2969) target = $region72
        $region71: #{tpu_custom_call.1} parent=67 // pred_region
          %s2972 = sand.u32 %s171, 1
          %s2973 = scalar_lea.sflag [#allocation7], %s2972
          %s2974 = sand.u32 %s171, 1
          %s2975 = smul.addr %s2974, 128
          %s2976 = scalar_lea.vmem [#allocation13], %s2975
          %2977 = dma.done %s2973, 2048
        $region72: #{tpu_custom_call.1} parent=67 // pred_fallthru
          _
      $region68: #{tpu_custom_call.1} parent=5 // pred_fallthru
        _
    $region6: #{tpu_custom_call.1} parent=1 // loop_footer
      %s26 = sadd.s32 1, %s22
    $region7: #{tpu_custom_call.1} parent=1 // loop_footer_branch
      %21 = sbr.rel target = $region3
    $region8: #{tpu_custom_call.1} parent=1 // loop_exit
      _
    %2978 = vsyncpa [#allocation6], 1
    %s2979 = scalar_lea.sflag [#allocation6], 1
    %2980 = vsyncpa %s2979, 1
    %2981 = vsyncpa [#allocation9], 1
    %s2982 = scalar_lea.sflag [#allocation9], 1
    %2983 = vsyncpa %s2982, 1
    %2984 = vsyncpa [#allocation12], 1
    %s2985 = scalar_lea.sflag [#allocation12], 1
    %2986 = vsyncpa %s2985, 1
    %2987 = vsyncpa [#allocation7], 1
    %s2988 = scalar_lea.sflag [#allocation7], 1
    %2989 = vsyncpa %s2988, 1

</llo_original>
